<compile_context>
chip_gen: v7x
topology: tpu7x:2x2x1
jax: 0.10.0
libtpu: 0.0.40
codegen_flags: <defaults>
</compile_context>

<pallas_src>
import functools

import numpy as np
import jax
import jax.numpy as jnp
from jax import lax
from jax.experimental import pallas as pl
from jax.experimental.pallas import tpu as pltpu


# ----------------------------- Pallas kernel -----------------------------
def _attn_gnn_kernel(x0_ref, x1_ref, wq_ref, bq_ref, wkv_ref, bkv_ref,
                     wm_ref, bm_ref, wmlp_a_ref, wmlp_b_ref,
                     out_ref, kv_scratch, attn_scratch,
                     *, num_heads, head_dim):
    f32 = jnp.float32
    dot = functools.partial(lax.dot_general, preferred_element_type=f32)
    F = num_heads * head_dim

    x0_cf = x0_ref[0]                                     # (F, tn) channels-first, f32

    # K^T / V^T projection: compute once per batch element (first N0 tile), reuse for
    # every N0 tile.  Safe because the tile axis is marked "arbitrary" (not core-split).
    @pl.when(pl.program_id(1) == 0)
    def _():
        x1_cf = x1_ref[0]                                 # (F, N1)
        kv_scratch[...] = dot(wkv_ref[...], x1_cf,
                              (((1,), (0,)), ((), ()))) + bkv_ref[...]   # (2F, N1)

    # Q projection, channels-first, head-major rows; 1/sqrt(dh) folded into weights.
    q_cf = dot(wq_ref[...], x0_cf, (((1,), (0,)), ((), ()))) + bq_ref[...]   # (F, tn)

    n1 = x1_ref.shape[2]
    ones_row = jnp.ones((1, n1), f32)                     # for MXU row-sum (hoisted)

    # Per-head attention (static unrolled; all slices compile-time constant).
    for h in range(num_heads):
        lo = h * head_dim
        qh = q_cf[lo:lo + head_dim, :]                    # (dh, tn)
        kh = kv_scratch[lo:lo + head_dim, :]              # (dh, N1)
        vh = kv_scratch[F + lo:F + lo + head_dim, :]      # (dh, N1)

        # scores_h = q_h^T k_h   (contract head-dim of both)  -> (tn, N1)
        s = dot(qh, kh, (((0,), (0,)), ((), ())))
        s = s - jnp.max(s, axis=-1, keepdims=True)        # f32 stability max-subtract
        e = jnp.exp(s)                                    # unnormalized probs (tn, N1)

        # softmax denominator on the MXU, already lane-oriented (1, tn)
        l = dot(ones_row, e, (((1,), (1,)), ((), ())))    # (1, tn)
        inv = pl.reciprocal(l, approx=True)

        # unnormalized PV, channels-first (contract the N1 axis of both) -> (dh, tn);
        # deferred normalization touches only (dh, tn) instead of (tn, N1).
        oh = dot(vh, e, (((1,), (1,)), ((), ())))
        attn_scratch[lo:lo + head_dim, :] = oh * inv      # head-major slab write

    # merge conv (input cols pre-permuted to head-major), output back in original order.
    message_cf = dot(wm_ref[...], attn_scratch[...],
                     (((1,), (0,)), ((), ()))) + bm_ref[...]              # (F, tn)

    # MLP([2F, F]) without materializing the concat: split weight into two dots.
    delta_cf = (dot(wmlp_a_ref[...], x0_cf, (((1,), (0,)), ((), ())))
                + dot(wmlp_b_ref[...], message_cf, (((1,), (0,)), ((), ()))))

    out_ref[...] = (delta_cf + x0_cf)[None]               # (1, F, tn), lane-dense store


# ----------------------------- weight preparation (run once) -----------------------------
def prepare_params(params, num_heads):
    """Permute / fold / stack the torch-layout weights once, outside the forward."""
    Wq, bq, Wk, bk, Wv, bv, Wm, bm, Wmlp = params
    F = Wq.shape[0]
    dh = F // num_heads
    scale = 1.0 / np.sqrt(dh)

    # torch .view(B, dim, heads, N) splits channels dim-major: c = d*H + h.
    # Head-major position p = h*dh + d  <->  original channel perm[p] = d*H + h.
    perm = np.arange(F).reshape(dh, num_heads).T.reshape(F)

    wq = jnp.asarray(Wq)[perm] * scale                    # (F, F)  rows head-major, scale folded
    bq_ = (jnp.asarray(bq)[perm] * scale)[:, None]        # (F, 1)
    wkv = jnp.concatenate([jnp.asarray(Wk)[perm],
                           jnp.asarray(Wv)[perm]], axis=0)            # (2F, F)
    bkv = jnp.concatenate([jnp.asarray(bk)[perm],
                           jnp.asarray(bv)[perm]])[:, None]           # (2F, 1)
    wm = jnp.asarray(Wm)[:, perm]                         # (F, F)  input cols head-major
    bm_ = jnp.asarray(bm)[:, None]                        # (F, 1)
    wmlp_a = jnp.asarray(Wmlp)[:, :F]                     # acts on desc0 part of the concat
    wmlp_b = jnp.asarray(Wmlp)[:, F:]                     # acts on message part
    return (wq, bq_, wkv, bkv, wm, bm_, wmlp_a, wmlp_b)


# ----------------------------- wrapper -----------------------------
@functools.partial(jax.jit, static_argnames=("num_heads", "tile_n"))
def attentional_gnn_forward(desc0, desc1, prepped, *, num_heads=4, tile_n=128):
    """desc0: (B, F, N0), desc1: (B, F, N1) f32 -> (B, F, N0) f32 (matches torch)."""
    wq, bq, wkv, bkv, wm, bm, wmlp_a, wmlp_b = prepped
    B, F, N0 = desc0.shape
    N1 = desc1.shape[2]
    assert F % num_heads == 0
    dh = F // num_heads
    if N0 % tile_n != 0:
        tile_n = N0                      # fallback: one (possibly lane-masked) tile

    kernel = functools.partial(_attn_gnn_kernel, num_heads=num_heads, head_dim=dh)

    return pl.pallas_call(
        kernel,
        out_shape=jax.ShapeDtypeStruct((B, F, N0), jnp.float32),
        grid=(B, N0 // tile_n),
        in_specs=[
            pl.BlockSpec((1, F, tile_n), lambda b, i: (b, 0, i)),   # desc0 tile
            pl.BlockSpec((1, F, N1), lambda b, i: (b, 0, 0)),       # full desc1 (K/V source)
            pl.BlockSpec((F, F), lambda b, i: (0, 0)),              # wq
            pl.BlockSpec((F, 1), lambda b, i: (0, 0)),              # bq
            pl.BlockSpec((2 * F, F), lambda b, i: (0, 0)),          # wkv (stacked)
            pl.BlockSpec((2 * F, 1), lambda b, i: (0, 0)),          # bkv
            pl.BlockSpec((F, F), lambda b, i: (0, 0)),              # wm (merge)
            pl.BlockSpec((F, 1), lambda b, i: (0, 0)),              # bm
            pl.BlockSpec((F, F), lambda b, i: (0, 0)),              # wmlp[:, :F]
            pl.BlockSpec((F, F), lambda b, i: (0, 0)),              # wmlp[:, F:]
        ],
        out_specs=pl.BlockSpec((1, F, tile_n), lambda b, i: (b, 0, i)),
        scratch_shapes=[
            pltpu.VMEM((2 * F, N1), jnp.float32),   # K^T;V^T slab (per batch element)
            pltpu.VMEM((F, tile_n), jnp.float32),   # per-head attention output slab
        ],
        compiler_params=pltpu.CompilerParams(
            dimension_semantics=("parallel", "arbitrary")),
    )(desc0, desc1, wq, bq, wkv, bkv, wm, bm, wmlp_a, wmlp_b)


# ----------------------------- deterministic parameters -----------------------------
def init_params(key, feature_dim):
    F = feature_dim
    ks = jax.random.split(key, 9)
    s = 1.0 / np.sqrt(F)
    Wq = jax.random.normal(ks[0], (F, F), jnp.float32) * s
    bq = 0.1 * jax.random.normal(ks[1], (F,), jnp.float32)
    Wk = jax.random.normal(ks[2], (F, F), jnp.float32) * s
    bk = 0.1 * jax.random.normal(ks[3], (F,), jnp.float32)
    Wv = jax.random.normal(ks[4], (F, F), jnp.float32) * s
    bv = 0.1 * jax.random.normal(ks[5], (F,), jnp.float32)
    Wm = jax.random.normal(ks[6], (F, F), jnp.float32) * s
    bm = 0.1 * jax.random.normal(ks[7], (F,), jnp.float32)
    Wmlp = jax.random.normal(ks[8], (F, 2 * F), jnp.float32) / np.sqrt(2 * F)
    return (Wq, bq, Wk, bk, Wv, bv, Wm, bm, Wmlp)


# ----------------------------- pure-JAX reference (mirrors torch exactly) -----------------------------
def reference_forward(desc0, desc1, params, num_heads=4):
    Wq, bq, Wk, bk, Wv, bv, Wm, bm, Wmlp = params
    B, F, N0 = desc0.shape
    N1 = desc1.shape[2]
    dh = F // num_heads
    q = jnp.einsum("oi,bin->bon", Wq, desc0) + bq[None, :, None]
    k = jnp.einsum("oi,bin->bon", Wk, desc1) + bk[None, :, None]
    v = jnp.einsum("oi,bin->bon", Wv, desc1) + bv[None, :, None]
    qh = q.reshape(B, dh, num_heads, N0)
    kh = k.reshape(B, dh, num_heads, N1)
    vh = v.reshape(B, dh, num_heads, N1)
    scores = jnp.einsum("bdhn,bdhm->bhnm", qh, kh) / (dh ** 0.5)
    prob = jax.nn.softmax(scores, axis=-1)
    xh = jnp.einsum("bhnm,bdhm->bdhn", prob, vh)
    message = jnp.einsum("oi,bin->bon", Wm, xh.reshape(B, F, N0)) + bm[None, :, None]
    cat = jnp.concatenate([desc0, message], axis=1)
    delta = jnp.einsum("oi,bin->bon", Wmlp, cat)
    return delta + desc0


# ----------------------------- main -----------------------------
if __name__ == "__main__":
    key = jax.random.PRNGKey(0)
    k0, k1, kp = jax.random.split(key, 3)

    B, F, N0, N1, H = 2, 128, 128, 128, 4   # feature_dim=128, 4 heads (head_dim=32)
    desc0 = jax.random.normal(k0, (B, F, N0), jnp.float32)
    desc1 = jax.random.normal(k1, (B, F, N1), jnp.float32)
    params = init_params(kp, F)
    prepped = prepare_params(params, num_heads=H)   # weight permute/fold done once

    out = jax.block_until_ready(
        attentional_gnn_forward(desc0, desc1, prepped, num_heads=H, tile_n=128))
    assert out.shape == (B, F, N0), out.shape
    assert bool(jnp.all(jnp.isfinite(out)))

    ref = jax.block_until_ready(reference_forward(desc0, desc1, params, num_heads=H))
    np.testing.assert_allclose(np.asarray(out), np.asarray(ref), rtol=3e-2, atol=3e-2)

    print("KERNEL_OK")
</pallas_src>

<mosaic_0001>
module attributes {stable_mosaic.version = 11 : i64} {
  func.func @_attn_gnn_kernel(%arg0: i32, %arg1: i32, %arg2: memref<1x128x128xf32, #tpu.memory_space<vmem>>, %arg3: memref<1x128x128xf32, #tpu.memory_space<vmem>>, %arg4: memref<128x128xf32, #tpu.memory_space<vmem>>, %arg5: memref<128x1xf32, #tpu.memory_space<vmem>>, %arg6: memref<256x128xf32, #tpu.memory_space<vmem>>, %arg7: memref<256x1xf32, #tpu.memory_space<vmem>>, %arg8: memref<128x128xf32, #tpu.memory_space<vmem>>, %arg9: memref<128x1xf32, #tpu.memory_space<vmem>>, %arg10: memref<128x128xf32, #tpu.memory_space<vmem>>, %arg11: memref<128x128xf32, #tpu.memory_space<vmem>>, %arg12: memref<1x128x128xf32, #tpu.memory_space<vmem>>, %arg13: memref<256x128xf32, #tpu.memory_space<vmem>>, %arg14: memref<128x128xf32, #tpu.memory_space<vmem>>) attributes {dimension_semantics = [#tpu.dimension_semantics<parallel>, #tpu.dimension_semantics<arbitrary>], iteration_bounds = array<i64: 2, 1>, scalar_prefetch = 0 : i64, scratch_operands = 2 : i64, tpu.core_type = #tpu.core_type<tc>, window_params = [{transform_indices = @transform_0, window_bounds = array<i64: 1, 128, 128>}, {transform_indices = @transform_1, window_bounds = array<i64: 1, 128, 128>}, {pipeline_mode = #tpu.pipeline_mode<synchronous>, transform_indices = @transform_2, window_bounds = array<i64: 128, 128>}, {pipeline_mode = #tpu.pipeline_mode<synchronous>, transform_indices = @transform_3, window_bounds = array<i64: 128, 1>}, {pipeline_mode = #tpu.pipeline_mode<synchronous>, transform_indices = @transform_4, window_bounds = array<i64: 256, 128>}, {pipeline_mode = #tpu.pipeline_mode<synchronous>, transform_indices = @transform_5, window_bounds = array<i64: 256, 1>}, {pipeline_mode = #tpu.pipeline_mode<synchronous>, transform_indices = @transform_6, window_bounds = array<i64: 128, 128>}, {pipeline_mode = #tpu.pipeline_mode<synchronous>, transform_indices = @transform_7, window_bounds = array<i64: 128, 1>}, {pipeline_mode = #tpu.pipeline_mode<synchronous>, transform_indices = @transform_8, window_bounds = array<i64: 128, 128>}, {pipeline_mode = #tpu.pipeline_mode<synchronous>, transform_indices = @transform_9, window_bounds = array<i64: 128, 128>}, {transform_indices = @transform_10, window_bounds = array<i64: 1, 128, 128>}]} {
    %c0 = arith.constant 0 : index
    %c0_0 = arith.constant 0 : index
    %c0_1 = arith.constant 0 : index
    %0 = vector.load %arg2[%c0, %c0_0, %c0_1] : memref<1x128x128xf32, #tpu.memory_space<vmem>>, vector<1x128x128xf32>
    %1 = vector.shape_cast %0 : vector<1x128x128xf32> to vector<128x128xf32>
    %c0_i32 = arith.constant 0 : i32
    %2 = arith.cmpi eq, %arg1, %c0_i32 : i32
    %3 = arith.extui %2 : i1 to i32
    %c0_i32_2 = arith.constant 0 : i32
    %4 = arith.cmpi ne, %3, %c0_i32_2 : i32
    scf.if %4 {
      %c0_57 = arith.constant 0 : index
      %c0_58 = arith.constant 0 : index
      %c0_59 = arith.constant 0 : index
      %85 = vector.load %arg3[%c0_57, %c0_58, %c0_59] : memref<1x128x128xf32, #tpu.memory_space<vmem>>, vector<1x128x128xf32>
      %86 = vector.shape_cast %85 : vector<1x128x128xf32> to vector<128x128xf32>
      %c0_60 = arith.constant 0 : index
      %c0_61 = arith.constant 0 : index
      %87 = vector.load %arg6[%c0_60, %c0_61] : memref<256x128xf32, #tpu.memory_space<vmem>>, vector<256x128xf32>
      %cst_62 = arith.constant dense<0.000000e+00> : vector<256x128xf32>
      %88 = tpu.matmul %87, %86, %cst_62 {dimension_numbers = #tpu.dot_dimension_numbers<[1], [0], [0], [1], [0, 0, 1, 1], [], []>} : vector<256x128xf32>, vector<128x128xf32>, vector<256x128xf32> -> vector<256x128xf32>
      %c0_63 = arith.constant 0 : index
      %c0_64 = arith.constant 0 : index
      %89 = vector.load %arg7[%c0_63, %c0_64] : memref<256x1xf32, #tpu.memory_space<vmem>>, vector<256x1xf32>
      %90 = vector.broadcast %89 : vector<256x1xf32> to vector<256x128xf32>
      %91 = arith.addf %88, %90 : vector<256x128xf32>
      %c0_65 = arith.constant 0 : index
      %c0_66 = arith.constant 0 : index
      %92 = vector.load %arg13[%c0_65, %c0_66] : memref<256x128xf32, #tpu.memory_space<vmem>>, vector<256x128xf32>
      tpu.vector_store %arg13[%c0_65, %c0_66], %91 {strides = array<i32>} : memref<256x128xf32, #tpu.memory_space<vmem>>, vector<256x128xf32>,
    } else {
    }
    %c0_3 = arith.constant 0 : index
    %c0_4 = arith.constant 0 : index
    %5 = vector.load %arg4[%c0_3, %c0_4] : memref<128x128xf32, #tpu.memory_space<vmem>>, vector<128x128xf32>
    %cst = arith.constant dense<0.000000e+00> : vector<128x128xf32>
    %6 = tpu.matmul %5, %1, %cst {dimension_numbers = #tpu.dot_dimension_numbers<[1], [0], [0], [1], [0, 0, 1, 1], [], []>} : vector<128x128xf32>, vector<128x128xf32>, vector<128x128xf32> -> vector<128x128xf32>
    %c0_5 = arith.constant 0 : index
    %c0_6 = arith.constant 0 : index
    %7 = vector.load %arg5[%c0_5, %c0_6] : memref<128x1xf32, #tpu.memory_space<vmem>>, vector<128x1xf32>
    %8 = vector.broadcast %7 : vector<128x1xf32> to vector<128x128xf32>
    %9 = arith.addf %6, %8 : vector<128x128xf32>
    %cst_7 = arith.constant 1.000000e+00 : f32
    %10 = vector.broadcast %cst_7 : f32 to vector<1x128xf32>
    %11 = vector.extract_strided_slice %9 {offsets = [0, 0], sizes = [32, 128], strides = [1, 1]} : vector<128x128xf32> to vector<32x128xf32>
    %c0_8 = arith.constant 0 : index
    %c0_9 = arith.constant 0 : index
    %12 = vector.load %arg13[%c0_8, %c0_9] : memref<256x128xf32, #tpu.memory_space<vmem>>, vector<32x128xf32>
    %c128 = arith.constant 128 : index
    %c0_10 = arith.constant 0 : index
    %13 = vector.load %arg13[%c128, %c0_10] : memref<256x128xf32, #tpu.memory_space<vmem>>, vector<32x128xf32>
    %cst_11 = arith.constant dense<0.000000e+00> : vector<128x128xf32>
    %14 = tpu.matmul %11, %12, %cst_11 {dimension_numbers = #tpu.dot_dimension_numbers<[0], [0], [1], [1], [0, 1, 1, 1], [], []>} : vector<32x128xf32>, vector<32x128xf32>, vector<128x128xf32> -> vector<128x128xf32>
    %cst_12 = arith.constant dense<0xFF800000> : vector<128xf32>
    %15 = vector.multi_reduction <maximumf>, %14, %cst_12 [1] : vector<128x128xf32> to vector<128xf32>
    %16 = vector.shape_cast %15 : vector<128xf32> to vector<128x1xf32>
    %17 = vector.broadcast %16 : vector<128x1xf32> to vector<128x128xf32>
    %18 = arith.subf %14, %17 : vector<128x128xf32>
    %19 = math.exp %18 : vector<128x128xf32>
    %cst_13 = arith.constant dense<0.000000e+00> : vector<1x128xf32>
    %20 = tpu.matmul %10, %19, %cst_13 {dimension_numbers = #tpu.dot_dimension_numbers<[1], [1], [0], [0], [0, 0, 1, 0], [], []>} : vector<1x128xf32>, vector<128x128xf32>, vector<1x128xf32> -> vector<1x128xf32>
    %21 = tpu.reciprocal %20 {approx = true} : vector<1x128xf32> -> vector<1x128xf32>
    %cst_14 = arith.constant dense<0.000000e+00> : vector<32x128xf32>
    %22 = tpu.matmul %13, %19, %cst_14 {dimension_numbers = #tpu.dot_dimension_numbers<[1], [1], [0], [0], [0, 0, 1, 0], [], []>} : vector<32x128xf32>, vector<128x128xf32>, vector<32x128xf32> -> vector<32x128xf32>
    %23 = vector.broadcast %21 : vector<1x128xf32> to vector<32x128xf32>
    %24 = arith.mulf %22, %23 : vector<32x128xf32>
    %c0_15 = arith.constant 0 : index
    %c0_16 = arith.constant 0 : index
    %25 = vector.load %arg14[%c0_15, %c0_16] : memref<128x128xf32, #tpu.memory_space<vmem>>, vector<32x128xf32>
    tpu.vector_store %arg14[%c0_15, %c0_16], %24 {strides = array<i32>} : memref<128x128xf32, #tpu.memory_space<vmem>>, vector<32x128xf32>,
    %26 = vector.extract_strided_slice %9 {offsets = [32, 0], sizes = [32, 128], strides = [1, 1]} : vector<128x128xf32> to vector<32x128xf32>
    %c32 = arith.constant 32 : index
    %c0_17 = arith.constant 0 : index
    %27 = vector.load %arg13[%c32, %c0_17] : memref<256x128xf32, #tpu.memory_space<vmem>>, vector<32x128xf32>
    %c160 = arith.constant 160 : index
    %c0_18 = arith.constant 0 : index
    %28 = vector.load %arg13[%c160, %c0_18] : memref<256x128xf32, #tpu.memory_space<vmem>>, vector<32x128xf32>
    %cst_19 = arith.constant dense<0.000000e+00> : vector<128x128xf32>
    %29 = tpu.matmul %26, %27, %cst_19 {dimension_numbers = #tpu.dot_dimension_numbers<[0], [0], [1], [1], [0, 1, 1, 1], [], []>} : vector<32x128xf32>, vector<32x128xf32>, vector<128x128xf32> -> vector<128x128xf32>
    %cst_20 = arith.constant dense<0xFF800000> : vector<128xf32>
    %30 = vector.multi_reduction <maximumf>, %29, %cst_20 [1] : vector<128x128xf32> to vector<128xf32>
    %31 = vector.shape_cast %30 : vector<128xf32> to vector<128x1xf32>
    %32 = vector.broadcast %31 : vector<128x1xf32> to vector<128x128xf32>
    %33 = arith.subf %29, %32 : vector<128x128xf32>
    %34 = math.exp %33 : vector<128x128xf32>
    %cst_21 = arith.constant dense<0.000000e+00> : vector<1x128xf32>
    %35 = tpu.matmul %10, %34, %cst_21 {dimension_numbers = #tpu.dot_dimension_numbers<[1], [1], [0], [0], [0, 0, 1, 0], [], []>} : vector<1x128xf32>, vector<128x128xf32>, vector<1x128xf32> -> vector<1x128xf32>
    %36 = tpu.reciprocal %35 {approx = true} : vector<1x128xf32> -> vector<1x128xf32>
    %cst_22 = arith.constant dense<0.000000e+00> : vector<32x128xf32>
    %37 = tpu.matmul %28, %34, %cst_22 {dimension_numbers = #tpu.dot_dimension_numbers<[1], [1], [0], [0], [0, 0, 1, 0], [], []>} : vector<32x128xf32>, vector<128x128xf32>, vector<32x128xf32> -> vector<32x128xf32>
    %38 = vector.broadcast %36 : vector<1x128xf32> to vector<32x128xf32>
    %39 = arith.mulf %37, %38 : vector<32x128xf32>
    %c32_23 = arith.constant 32 : index
    %c0_24 = arith.constant 0 : index
    %40 = vector.load %arg14[%c32_23, %c0_24] : memref<128x128xf32, #tpu.memory_space<vmem>>, vector<32x128xf32>
    tpu.vector_store %arg14[%c32_23, %c0_24], %39 {strides = array<i32>} : memref<128x128xf32, #tpu.memory_space<vmem>>, vector<32x128xf32>,
    %41 = vector.extract_strided_slice %9 {offsets = [64, 0], sizes = [32, 128], strides = [1, 1]} : vector<128x128xf32> to vector<32x128xf32>
    %c64 = arith.constant 64 : index
    %c0_25 = arith.constant 0 : index
    %42 = vector.load %arg13[%c64, %c0_25] : memref<256x128xf32, #tpu.memory_space<vmem>>, vector<32x128xf32>
    %c192 = arith.constant 192 : index
    %c0_26 = arith.constant 0 : index
    %43 = vector.load %arg13[%c192, %c0_26] : memref<256x128xf32, #tpu.memory_space<vmem>>, vector<32x128xf32>
    %cst_27 = arith.constant dense<0.000000e+00> : vector<128x128xf32>
    %44 = tpu.matmul %41, %42, %cst_27 {dimension_numbers = #tpu.dot_dimension_numbers<[0], [0], [1], [1], [0, 1, 1, 1], [], []>} : vector<32x128xf32>, vector<32x128xf32>, vector<128x128xf32> -> vector<128x128xf32>
    %cst_28 = arith.constant dense<0xFF800000> : vector<128xf32>
    %45 = vector.multi_reduction <maximumf>, %44, %cst_28 [1] : vector<128x128xf32> to vector<128xf32>
    %46 = vector.shape_cast %45 : vector<128xf32> to vector<128x1xf32>
    %47 = vector.broadcast %46 : vector<128x1xf32> to vector<128x128xf32>
    %48 = arith.subf %44, %47 : vector<128x128xf32>
    %49 = math.exp %48 : vector<128x128xf32>
    %cst_29 = arith.constant dense<0.000000e+00> : vector<1x128xf32>
    %50 = tpu.matmul %10, %49, %cst_29 {dimension_numbers = #tpu.dot_dimension_numbers<[1], [1], [0], [0], [0, 0, 1, 0], [], []>} : vector<1x128xf32>, vector<128x128xf32>, vector<1x128xf32> -> vector<1x128xf32>
    %51 = tpu.reciprocal %50 {approx = true} : vector<1x128xf32> -> vector<1x128xf32>
    %cst_30 = arith.constant dense<0.000000e+00> : vector<32x128xf32>
    %52 = tpu.matmul %43, %49, %cst_30 {dimension_numbers = #tpu.dot_dimension_numbers<[1], [1], [0], [0], [0, 0, 1, 0], [], []>} : vector<32x128xf32>, vector<128x128xf32>, vector<32x128xf32> -> vector<32x128xf32>
    %53 = vector.broadcast %51 : vector<1x128xf32> to vector<32x128xf32>
    %54 = arith.mulf %52, %53 : vector<32x128xf32>
    %c64_31 = arith.constant 64 : index
    %c0_32 = arith.constant 0 : index
    %55 = vector.load %arg14[%c64_31, %c0_32] : memref<128x128xf32, #tpu.memory_space<vmem>>, vector<32x128xf32>
    tpu.vector_store %arg14[%c64_31, %c0_32], %54 {strides = array<i32>} : memref<128x128xf32, #tpu.memory_space<vmem>>, vector<32x128xf32>,
    %56 = vector.extract_strided_slice %9 {offsets = [96, 0], sizes = [32, 128], strides = [1, 1]} : vector<128x128xf32> to vector<32x128xf32>
    %c96 = arith.constant 96 : index
    %c0_33 = arith.constant 0 : index
    %57 = vector.load %arg13[%c96, %c0_33] : memref<256x128xf32, #tpu.memory_space<vmem>>, vector<32x128xf32>
    %c224 = arith.constant 224 : index
    %c0_34 = arith.constant 0 : index
    %58 = vector.load %arg13[%c224, %c0_34] : memref<256x128xf32, #tpu.memory_space<vmem>>, vector<32x128xf32>
    %cst_35 = arith.constant dense<0.000000e+00> : vector<128x128xf32>
    %59 = tpu.matmul %56, %57, %cst_35 {dimension_numbers = #tpu.dot_dimension_numbers<[0], [0], [1], [1], [0, 1, 1, 1], [], []>} : vector<32x128xf32>, vector<32x128xf32>, vector<128x128xf32> -> vector<128x128xf32>
    %cst_36 = arith.constant dense<0xFF800000> : vector<128xf32>
    %60 = vector.multi_reduction <maximumf>, %59, %cst_36 [1] : vector<128x128xf32> to vector<128xf32>
    %61 = vector.shape_cast %60 : vector<128xf32> to vector<128x1xf32>
    %62 = vector.broadcast %61 : vector<128x1xf32> to vector<128x128xf32>
    %63 = arith.subf %59, %62 : vector<128x128xf32>
    %64 = math.exp %63 : vector<128x128xf32>
    %cst_37 = arith.constant dense<0.000000e+00> : vector<1x128xf32>
    %65 = tpu.matmul %10, %64, %cst_37 {dimension_numbers = #tpu.dot_dimension_numbers<[1], [1], [0], [0], [0, 0, 1, 0], [], []>} : vector<1x128xf32>, vector<128x128xf32>, vector<1x128xf32> -> vector<1x128xf32>
    %66 = tpu.reciprocal %65 {approx = true} : vector<1x128xf32> -> vector<1x128xf32>
    %cst_38 = arith.constant dense<0.000000e+00> : vector<32x128xf32>
    %67 = tpu.matmul %58, %64, %cst_38 {dimension_numbers = #tpu.dot_dimension_numbers<[1], [1], [0], [0], [0, 0, 1, 0], [], []>} : vector<32x128xf32>, vector<128x128xf32>, vector<32x128xf32> -> vector<32x128xf32>
    %68 = vector.broadcast %66 : vector<1x128xf32> to vector<32x128xf32>
    %69 = arith.mulf %67, %68 : vector<32x128xf32>
    %c96_39 = arith.constant 96 : index
    %c0_40 = arith.constant 0 : index
    %70 = vector.load %arg14[%c96_39, %c0_40] : memref<128x128xf32, #tpu.memory_space<vmem>>, vector<32x128xf32>
    tpu.vector_store %arg14[%c96_39, %c0_40], %69 {strides = array<i32>} : memref<128x128xf32, #tpu.memory_space<vmem>>, vector<32x128xf32>,
    %c0_41 = arith.constant 0 : index
    %c0_42 = arith.constant 0 : index
    %71 = vector.load %arg8[%c0_41, %c0_42] : memref<128x128xf32, #tpu.memory_space<vmem>>, vector<128x128xf32>
    %c0_43 = arith.constant 0 : index
    %c0_44 = arith.constant 0 : index
    %72 = vector.load %arg14[%c0_43, %c0_44] : memref<128x128xf32, #tpu.memory_space<vmem>>, vector<128x128xf32>
    %cst_45 = arith.constant dense<0.000000e+00> : vector<128x128xf32>
    %73 = tpu.matmul %71, %72, %cst_45 {dimension_numbers = #tpu.dot_dimension_numbers<[1], [0], [0], [1], [0, 0, 1, 1], [], []>} : vector<128x128xf32>, vector<128x128xf32>, vector<128x128xf32> -> vector<128x128xf32>
    %c0_46 = arith.constant 0 : index
    %c0_47 = arith.constant 0 : index
    %74 = vector.load %arg9[%c0_46, %c0_47] : memref<128x1xf32, #tpu.memory_space<vmem>>, vector<128x1xf32>
    %75 = vector.broadcast %74 : vector<128x1xf32> to vector<128x128xf32>
    %76 = arith.addf %73, %75 : vector<128x128xf32>
    %c0_48 = arith.constant 0 : index
    %c0_49 = arith.constant 0 : index
    %77 = vector.load %arg10[%c0_48, %c0_49] : memref<128x128xf32, #tpu.memory_space<vmem>>, vector<128x128xf32>
    %cst_50 = arith.constant dense<0.000000e+00> : vector<128x128xf32>
    %78 = tpu.matmul %77, %1, %cst_50 {dimension_numbers = #tpu.dot_dimension_numbers<[1], [0], [0], [1], [0, 0, 1, 1], [], []>} : vector<128x128xf32>, vector<128x128xf32>, vector<128x128xf32> -> vector<128x128xf32>
    %c0_51 = arith.constant 0 : index
    %c0_52 = arith.constant 0 : index
    %79 = vector.load %arg11[%c0_51, %c0_52] : memref<128x128xf32, #tpu.memory_space<vmem>>, vector<128x128xf32>
    %cst_53 = arith.constant dense<0.000000e+00> : vector<128x128xf32>
    %80 = tpu.matmul %79, %76, %cst_53 {dimension_numbers = #tpu.dot_dimension_numbers<[1], [0], [0], [1], [0, 0, 1, 1], [], []>} : vector<128x128xf32>, vector<128x128xf32>, vector<128x128xf32> -> vector<128x128xf32>
    %81 = arith.addf %78, %80 : vector<128x128xf32>
    %82 = arith.addf %81, %1 : vector<128x128xf32>
    %83 = vector.shape_cast %82 : vector<128x128xf32> to vector<1x128x128xf32>
    %c0_54 = arith.constant 0 : index
    %c0_55 = arith.constant 0 : index
    %c0_56 = arith.constant 0 : index
    %84 = vector.load %arg12[%c0_54, %c0_55, %c0_56] : memref<1x128x128xf32, #tpu.memory_space<vmem>>, vector<1x128x128xf32>
    tpu.vector_store %arg12[%c0_54, %c0_55, %c0_56], %83 {strides = array<i32>} : memref<1x128x128xf32, #tpu.memory_space<vmem>>, vector<1x128x128xf32>,
    return
  }
  func.func @transform_0(%arg0: i32, %arg1: i32) -> (i32, i32, i32) {
    %c0_i32 = arith.constant 0 : i32
    %c0_i32_0 = arith.constant 0 : i32
    return %arg0, %c0_i32, %arg1 : i32, i32, i32
  }
  func.func @transform_1(%arg0: i32, %arg1: i32) -> (i32, i32, i32) {
    %c0_i32 = arith.constant 0 : i32
    %c0_i32_0 = arith.constant 0 : i32
    %c0_i32_1 = arith.constant 0 : i32
    return %arg0, %c0_i32, %c0_i32_0 : i32, i32, i32
  }
  func.func @transform_2(%arg0: i32, %arg1: i32) -> (i32, i32) {
    %c0_i32 = arith.constant 0 : i32
    %c0_i32_0 = arith.constant 0 : i32
    %c0_i32_1 = arith.constant 0 : i32
    return %c0_i32, %c0_i32_0 : i32, i32
  }
  func.func @transform_3(%arg0: i32, %arg1: i32) -> (i32, i32) {
    %c0_i32 = arith.constant 0 : i32
    %c0_i32_0 = arith.constant 0 : i32
    %c0_i32_1 = arith.constant 0 : i32
    return %c0_i32, %c0_i32_0 : i32, i32
  }
  func.func @transform_4(%arg0: i32, %arg1: i32) -> (i32, i32) {
    %c0_i32 = arith.constant 0 : i32
    %c0_i32_0 = arith.constant 0 : i32
    %c0_i32_1 = arith.constant 0 : i32
    return %c0_i32, %c0_i32_0 : i32, i32
  }
  func.func @transform_5(%arg0: i32, %arg1: i32) -> (i32, i32) {
    %c0_i32 = arith.constant 0 : i32
    %c0_i32_0 = arith.constant 0 : i32
    %c0_i32_1 = arith.constant 0 : i32
    return %c0_i32, %c0_i32_0 : i32, i32
  }
  func.func @transform_6(%arg0: i32, %arg1: i32) -> (i32, i32) {
    %c0_i32 = arith.constant 0 : i32
    %c0_i32_0 = arith.constant 0 : i32
    %c0_i32_1 = arith.constant 0 : i32
    return %c0_i32, %c0_i32_0 : i32, i32
  }
  func.func @transform_7(%arg0: i32, %arg1: i32) -> (i32, i32) {
    %c0_i32 = arith.constant 0 : i32
    %c0_i32_0 = arith.constant 0 : i32
    %c0_i32_1 = arith.constant 0 : i32
    return %c0_i32, %c0_i32_0 : i32, i32
  }
  func.func @transform_8(%arg0: i32, %arg1: i32) -> (i32, i32) {
    %c0_i32 = arith.constant 0 : i32
    %c0_i32_0 = arith.constant 0 : i32
    %c0_i32_1 = arith.constant 0 : i32
    return %c0_i32, %c0_i32_0 : i32, i32
  }
  func.func @transform_9(%arg0: i32, %arg1: i32) -> (i32, i32) {
    %c0_i32 = arith.constant 0 : i32
    %c0_i32_0 = arith.constant 0 : i32
    %c0_i32_1 = arith.constant 0 : i32
    return %c0_i32, %c0_i32_0 : i32, i32
  }
  func.func @transform_10(%arg0: i32, %arg1: i32) -> (i32, i32, i32) {
    %c0_i32 = arith.constant 0 : i32
    %c0_i32_0 = arith.constant 0 : i32
    return %arg0, %c0_i32, %arg1 : i32, i32, i32
  }
}

</mosaic_0001>

<llo_original>
// kernel: attentional_gnn_forward.1
$region0: #{attentional_gnn_forward.1}
  #allocation0 [shape = 'u32[]', space=smem, size = 0x4, offset = 0x4, fixed_abs, tag = 'smem constant byte address 0x4 - core index']
  #allocation1 [shape = 'u32[144,128]{1,0:T(1,128)}', space=vmem, size = 0x12000, scoped, tag = 'internal scratch']
  #allocation2 [shape = 'f32[256,128]{1,0:T(8,128)}', space=vmem, size = 0x20000, scoped, tag = 'scratch operand']
  #allocation3 [shape = 'f32[128,128]{1,0:T(8,128)}', space=vmem, size = 0x10000, scoped, tag = 'scratch operand']
  %s0 = inlined_call_operand.vmem [shape: f32[2,128,128], index: 0, kind: input, shape index: {}]
  %s1 = inlined_call_operand.vmem [shape: f32[2,128,128], index: 1, kind: input, shape index: {}]
  %s2 = inlined_call_operand.hbm [shape: f32[128,128], index: 2, kind: input, shape index: {}]
  %s3 = inlined_call_operand.vmem [shape: f32[128,1], index: 3, kind: input, shape index: {}]
  %s4 = inlined_call_operand.hbm [shape: f32[256,128], index: 4, kind: input, shape index: {}]
  %s5 = inlined_call_operand.vmem [shape: f32[256,1], index: 5, kind: input, shape index: {}]
  %s6 = inlined_call_operand.hbm [shape: f32[128,128], index: 6, kind: input, shape index: {}]
  %s7 = inlined_call_operand.vmem [shape: f32[128,1], index: 7, kind: input, shape index: {}]
  %s8 = inlined_call_operand.hbm [shape: f32[128,128], index: 8, kind: input, shape index: {}]
  %s9 = inlined_call_operand.hbm [shape: f32[128,128], index: 9, kind: input, shape index: {}]
  %s10 = inlined_call_operand.hbm [shape: f32[2,128,128], index: 10, kind: output, shape index: {}]
  %s11 = sld [smem:[#allocation0]]
  $region97: #{attentional_gnn_forward.1} parent=0
    _
  %s13 = ssub.s32 1, %s11
  %s14 = scalar_select 0, %s13, %s11
  $region1: #{attentional_gnn_forward.1} parent=0
    #allocation4 [shape = 'u8[65536]{0}', space=vmem, size = 0x10000, scoped, tag = 'input window, operand 2, single buffered']
    #allocation5 [shape = 's32[2]{0}', space=sflag, size = 0x8, scoped, tag = 'scoped memory for attentional_gnn_forward.1']
    #allocation6 [shape = 's32[2]{0}', space=sflag, size = 0x8, scoped, tag = 'scoped memory for attentional_gnn_forward.1']
    #allocation7 [shape = 'u8[131072]{0}', space=vmem, size = 0x20000, scoped, tag = 'input window, operand 4, single buffered']
    #allocation8 [shape = 's32[1]{0}', space=sflag, size = 0x4, scoped, tag = 'scoped memory for attentional_gnn_forward.1']
    #allocation9 [shape = 'u8[65536]{0}', space=vmem, size = 0x10000, scoped, tag = 'input window, operand 6, single buffered']
    #allocation10 [shape = 'u8[65536]{0}', space=vmem, size = 0x10000, scoped, tag = 'input window, operand 8, single buffered']
    #allocation11 [shape = 's32[1]{0}', space=sflag, size = 0x4, scoped, tag = 'scoped memory for attentional_gnn_forward.1']
    #allocation12 [shape = 'u8[65536]{0}', space=vmem, size = 0x10000, scoped, tag = 'input window, operand 9, single buffered']
    #allocation13 [shape = 'u8[131072]{0}', space=vmem, size = 0x20000, scoped, tag = 'output window, operand 0']
    %15 = vsyncpa [#allocation5], 0
    %16 = vsyncpa [#allocation8], 0
    %17 = vsyncpa [#allocation11], 0
    %18 = vsyncpa [#allocation6], 0
    %s19 = scalar_lea.sflag [#allocation6], 1
    %20 = vsyncpa %s19, 0
    loop: start=0, step=1, limit=4
    $region2: #{attentional_gnn_forward.1} parent=1 // loop_pre_header
      _
    $region3: #{attentional_gnn_forward.1} parent=1 // loop_header
      %s22 = sphi 0, %s26
      %p23 = scmp.ge.s32.totalorder %s22, 4
      %s29 = sphi 0, %s41
      %s30 = sphi 0, %s37
      %s31 = sphi 0, %s29
      %s32 = sphi 0, %s30
      %s33 = sphi 0, %s31
      %s34 = sphi 0, %s32
      %s46 = sphi 0, %s48
      %s49 = sphi 0, %s46
      %s50 = sphi 0, %s49
      %s66 = sphi 0, %s50
      %s72 = sphi 0, %s74
      %s75 = sphi 0, %s72
      %s76 = sphi 0, %s75
      %s92 = sphi 0, %s76
      %s96 = sphi 0, %s96
      %s98 = sphi 0, %s96
      %s99 = sphi 0, %s98
      %s113 = sphi 0, %s99
      %s117 = sphi 0, %s117
      %s119 = sphi 0, %s117
      %s120 = sphi 0, %s119
      %s134 = sphi 0, %s120
      %s138 = sphi 0, %s138
      %s140 = sphi 0, %s138
      %s141 = sphi 0, %s140
      %s155 = sphi 0, %s141
      %s159 = sphi 0, %s159
      %s161 = sphi 0, %s159
      %s162 = sphi 0, %s161
      %s176 = sphi 0, %s162
      %s180 = sphi 0, %s180
      %s182 = sphi 0, %s180
      %s183 = sphi 0, %s182
      %s197 = sphi 0, %s183
      %s201 = sphi 0, %s201
      %s203 = sphi 0, %s201
      %s204 = sphi 0, %s203
      %s218 = sphi 0, %s204
      %s222 = sphi 0, %s222
      %s224 = sphi 0, %s222
      %s225 = sphi 0, %s224
      %s239 = sphi 0, %s225
      %s243 = sphi 0, %s243
      %s245 = sphi 0, %s243
      %s246 = sphi 0, %s245
      %s260 = sphi 0, %s246
      %s268 = sphi 0, %s270
      %s271 = sphi 0, %s268
      %s272 = sphi 0, %s271
      %s288 = sphi 0, %s272
    $region4: #{attentional_gnn_forward.1} parent=1 // loop_header_branch
      %25 = sbr.rel (%p23) target = $region8
    $region5: #{attentional_gnn_forward.1} parent=1 // loop_body
      %s27 = ssub.s32 %s22, 1
      %s28 = ssub.s32 %s22, 2
      %s35 = sadd.s32 1, %s30
      %p36 = scmp.ge.s32.totalorder %s35, 1
      %s37 = scalar_select %p36, 0, %s35
      %s38 = sadd.s32 1, %s29
      %s39 = scalar_select %p36, %s38, %s29
      %p40 = scmp.ge.s32.totalorder %s39, 2
      %s41 = scalar_select %p40, 0, %s39
      %s42 = ssub.s32 %s29, %s41
      %s43 = ssub.s32 %s30, %s37
      %s44 = sor.u32 %s42, %s43
      %p45 = scmp.eq.s32.totalorder %s44, 0
      %s47 = sadd.s32 %s46, 1
      %s48 = scalar_select %p45, %s46, %s47
      %p51 = pneg %p45
      %p52 = scmp.eq.s32.totalorder %s22, 1
      %p53 = por %p51, %p52
      %p54 = scmp.ne.s32.totalorder %s46, %s49
      %p55 = scmp.eq.s32.totalorder %s22, 0
      %p56 = por %p54, %p55
      %p57 = scmp.ne.s32.totalorder %s46, %s49
      %p58 = scmp.eq.s32.totalorder %s27, 1
      %p59 = por %p57, %p58
      %p60 = scmp.ne.s32.totalorder %s49, %s50
      %p61 = scmp.eq.s32.totalorder %s27, 0
      %p62 = por %p60, %p61
      %p63 = scmp.ne.s32.totalorder %s49, %s50
      %p64 = scmp.eq.s32.totalorder %s28, 1
      %p65 = por %p63, %p64
      %p67 = scmp.ne.s32.totalorder %s50, %s66
      %p68 = scmp.eq.s32.totalorder %s28, 0
      %p69 = por %p67, %p68
      %s70 = ssub.s32 %s29, %s41
      %p71 = scmp.eq.s32.totalorder %s70, 0
      %s73 = sadd.s32 %s72, 1
      %s74 = scalar_select %p71, %s72, %s73
      %p77 = pneg %p71
      %p78 = scmp.eq.s32.totalorder %s22, 1
      %p79 = por %p77, %p78
      %p80 = scmp.ne.s32.totalorder %s72, %s75
      %p81 = scmp.eq.s32.totalorder %s22, 0
      %p82 = por %p80, %p81
      %p83 = scmp.ne.s32.totalorder %s72, %s75
      %p84 = scmp.eq.s32.totalorder %s27, 1
      %p85 = por %p83, %p84
      %p86 = scmp.ne.s32.totalorder %s75, %s76
      %p87 = scmp.eq.s32.totalorder %s27, 0
      %p88 = por %p86, %p87
      %p89 = scmp.ne.s32.totalorder %s75, %s76
      %p90 = scmp.eq.s32.totalorder %s28, 1
      %p91 = por %p89, %p90
      %p93 = scmp.ne.s32.totalorder %s76, %s92
      %p94 = scmp.eq.s32.totalorder %s28, 0
      %p95 = por %p93, %p94
      %s97 = sadd.s32 %s96, 1
      %p100 = scmp.eq.s32.totalorder %s22, 1
      %p101 = scmp.ne.s32.totalorder %s96, %s98
      %p102 = scmp.eq.s32.totalorder %s22, 0
      %p103 = por %p101, %p102
      %p104 = scmp.ne.s32.totalorder %s96, %s98
      %p105 = scmp.eq.s32.totalorder %s27, 1
      %p106 = por %p104, %p105
      %p107 = scmp.ne.s32.totalorder %s98, %s99
      %p108 = scmp.eq.s32.totalorder %s27, 0
      %p109 = por %p107, %p108
      %p110 = scmp.ne.s32.totalorder %s98, %s99
      %p111 = scmp.eq.s32.totalorder %s28, 1
      %p112 = por %p110, %p111
      %p114 = scmp.ne.s32.totalorder %s99, %s113
      %p115 = scmp.eq.s32.totalorder %s28, 0
      %p116 = por %p114, %p115
      %s118 = sadd.s32 %s117, 1
      %p121 = scmp.eq.s32.totalorder %s22, 1
      %p122 = scmp.ne.s32.totalorder %s117, %s119
      %p123 = scmp.eq.s32.totalorder %s22, 0
      %p124 = por %p122, %p123
      %p125 = scmp.ne.s32.totalorder %s117, %s119
      %p126 = scmp.eq.s32.totalorder %s27, 1
      %p127 = por %p125, %p126
      %p128 = scmp.ne.s32.totalorder %s119, %s120
      %p129 = scmp.eq.s32.totalorder %s27, 0
      %p130 = por %p128, %p129
      %p131 = scmp.ne.s32.totalorder %s119, %s120
      %p132 = scmp.eq.s32.totalorder %s28, 1
      %p133 = por %p131, %p132
      %p135 = scmp.ne.s32.totalorder %s120, %s134
      %p136 = scmp.eq.s32.totalorder %s28, 0
      %p137 = por %p135, %p136
      %s139 = sadd.s32 %s138, 1
      %p142 = scmp.eq.s32.totalorder %s22, 1
      %p143 = scmp.ne.s32.totalorder %s138, %s140
      %p144 = scmp.eq.s32.totalorder %s22, 0
      %p145 = por %p143, %p144
      %p146 = scmp.ne.s32.totalorder %s138, %s140
      %p147 = scmp.eq.s32.totalorder %s27, 1
      %p148 = por %p146, %p147
      %p149 = scmp.ne.s32.totalorder %s140, %s141
      %p150 = scmp.eq.s32.totalorder %s27, 0
      %p151 = por %p149, %p150
      %p152 = scmp.ne.s32.totalorder %s140, %s141
      %p153 = scmp.eq.s32.totalorder %s28, 1
      %p154 = por %p152, %p153
      %p156 = scmp.ne.s32.totalorder %s141, %s155
      %p157 = scmp.eq.s32.totalorder %s28, 0
      %p158 = por %p156, %p157
      %s160 = sadd.s32 %s159, 1
      %p163 = scmp.eq.s32.totalorder %s22, 1
      %p164 = scmp.ne.s32.totalorder %s159, %s161
      %p165 = scmp.eq.s32.totalorder %s22, 0
      %p166 = por %p164, %p165
      %p167 = scmp.ne.s32.totalorder %s159, %s161
      %p168 = scmp.eq.s32.totalorder %s27, 1
      %p169 = por %p167, %p168
      %p170 = scmp.ne.s32.totalorder %s161, %s162
      %p171 = scmp.eq.s32.totalorder %s27, 0
      %p172 = por %p170, %p171
      %p173 = scmp.ne.s32.totalorder %s161, %s162
      %p174 = scmp.eq.s32.totalorder %s28, 1
      %p175 = por %p173, %p174
      %p177 = scmp.ne.s32.totalorder %s162, %s176
      %p178 = scmp.eq.s32.totalorder %s28, 0
      %p179 = por %p177, %p178
      %s181 = sadd.s32 %s180, 1
      %p184 = scmp.eq.s32.totalorder %s22, 1
      %p185 = scmp.ne.s32.totalorder %s180, %s182
      %p186 = scmp.eq.s32.totalorder %s22, 0
      %p187 = por %p185, %p186
      %p188 = scmp.ne.s32.totalorder %s180, %s182
      %p189 = scmp.eq.s32.totalorder %s27, 1
      %p190 = por %p188, %p189
      %p191 = scmp.ne.s32.totalorder %s182, %s183
      %p192 = scmp.eq.s32.totalorder %s27, 0
      %p193 = por %p191, %p192
      %p194 = scmp.ne.s32.totalorder %s182, %s183
      %p195 = scmp.eq.s32.totalorder %s28, 1
      %p196 = por %p194, %p195
      %p198 = scmp.ne.s32.totalorder %s183, %s197
      %p199 = scmp.eq.s32.totalorder %s28, 0
      %p200 = por %p198, %p199
      %s202 = sadd.s32 %s201, 1
      %p205 = scmp.eq.s32.totalorder %s22, 1
      %p206 = scmp.ne.s32.totalorder %s201, %s203
      %p207 = scmp.eq.s32.totalorder %s22, 0
      %p208 = por %p206, %p207
      %p209 = scmp.ne.s32.totalorder %s201, %s203
      %p210 = scmp.eq.s32.totalorder %s27, 1
      %p211 = por %p209, %p210
      %p212 = scmp.ne.s32.totalorder %s203, %s204
      %p213 = scmp.eq.s32.totalorder %s27, 0
      %p214 = por %p212, %p213
      %p215 = scmp.ne.s32.totalorder %s203, %s204
      %p216 = scmp.eq.s32.totalorder %s28, 1
      %p217 = por %p215, %p216
      %p219 = scmp.ne.s32.totalorder %s204, %s218
      %p220 = scmp.eq.s32.totalorder %s28, 0
      %p221 = por %p219, %p220
      %s223 = sadd.s32 %s222, 1
      %p226 = scmp.eq.s32.totalorder %s22, 1
      %p227 = scmp.ne.s32.totalorder %s222, %s224
      %p228 = scmp.eq.s32.totalorder %s22, 0
      %p229 = por %p227, %p228
      %p230 = scmp.ne.s32.totalorder %s222, %s224
      %p231 = scmp.eq.s32.totalorder %s27, 1
      %p232 = por %p230, %p231
      %p233 = scmp.ne.s32.totalorder %s224, %s225
      %p234 = scmp.eq.s32.totalorder %s27, 0
      %p235 = por %p233, %p234
      %p236 = scmp.ne.s32.totalorder %s224, %s225
      %p237 = scmp.eq.s32.totalorder %s28, 1
      %p238 = por %p236, %p237
      %p240 = scmp.ne.s32.totalorder %s225, %s239
      %p241 = scmp.eq.s32.totalorder %s28, 0
      %p242 = por %p240, %p241
      %s244 = sadd.s32 %s243, 1
      %p247 = scmp.eq.s32.totalorder %s22, 1
      %p248 = scmp.ne.s32.totalorder %s243, %s245
      %p249 = scmp.eq.s32.totalorder %s22, 0
      %p250 = por %p248, %p249
      %p251 = scmp.ne.s32.totalorder %s243, %s245
      %p252 = scmp.eq.s32.totalorder %s27, 1
      %p253 = por %p251, %p252
      %p254 = scmp.ne.s32.totalorder %s245, %s246
      %p255 = scmp.eq.s32.totalorder %s27, 0
      %p256 = por %p254, %p255
      %p257 = scmp.ne.s32.totalorder %s245, %s246
      %p258 = scmp.eq.s32.totalorder %s28, 1
      %p259 = por %p257, %p258
      %p261 = scmp.ne.s32.totalorder %s246, %s260
      %p262 = scmp.eq.s32.totalorder %s28, 0
      %p263 = por %p261, %p262
      %s264 = ssub.s32 %s29, %s41
      %s265 = ssub.s32 %s30, %s37
      %s266 = sor.u32 %s264, %s265
      %p267 = scmp.eq.s32.totalorder %s266, 0
      %s269 = sadd.s32 %s268, 1
      %s270 = scalar_select %p267, %s268, %s269
      %p273 = pneg %p267
      %p274 = scmp.eq.s32.totalorder %s22, 1
      %p275 = por %p273, %p274
      %p276 = scmp.ne.s32.totalorder %s268, %s271
      %p277 = scmp.eq.s32.totalorder %s22, 0
      %p278 = por %p276, %p277
      %p279 = scmp.ne.s32.totalorder %s268, %s271
      %p280 = scmp.eq.s32.totalorder %s27, 1
      %p281 = por %p279, %p280
      %p282 = scmp.ne.s32.totalorder %s271, %s272
      %p283 = scmp.eq.s32.totalorder %s27, 0
      %p284 = por %p282, %p283
      %p285 = scmp.ne.s32.totalorder %s271, %s272
      %p286 = scmp.eq.s32.totalorder %s28, 1
      %p287 = por %p285, %p286
      %p289 = scmp.ne.s32.totalorder %s272, %s288
      %p290 = scmp.eq.s32.totalorder %s28, 0
      %p291 = por %p289, %p290
      %p292 = scmp.le.s32.totalorder 1, %s22
      %p293 = scmp.lt.s32.totalorder %s22, 3
      %p294 = pnand %p292, %p293
      %p295 = pneg %p294
      // Predicated region
      $region9: #{attentional_gnn_forward.1} parent=5 // pred_check
        _
      $region10: #{attentional_gnn_forward.1} parent=5 // pred_check_branch
        %297 = sbr.rel (%p294) target = $region12
      $region11: #{attentional_gnn_forward.1} parent=5 // pred_region
        %s298 = ssub.s32 %s22, 1
        // Predicated region
        $region13: #{attentional_gnn_forward.1} parent=11 // pred_check
          %p299 = pneg %p109
        $region14: #{attentional_gnn_forward.1} parent=11 // pred_check_branch
          %301 = sbr.rel (%p299) target = $region16
        $region15: #{attentional_gnn_forward.1} parent=11 // pred_region
          %s303 = ssub.s32 2048, 2048
          %304 = vsyncadd [#allocation5], %s303
          %s305 = sshll.u32 [#allocation4], 4
          %s306 = int_to_ptr.vmem [resolvable:$true] %s305
          %311 = dma.hbm_to_vmem [thread:$0]  %s2, 2048, %s306, [#allocation5], 128, 128, 8
        $region16: #{attentional_gnn_forward.1} parent=11 // pred_fallthru
          _
        // Predicated region
        $region17: #{attentional_gnn_forward.1} parent=11 // pred_check
          %p312 = pneg %p130
        $region18: #{attentional_gnn_forward.1} parent=11 // pred_check_branch
          %314 = sbr.rel (%p312) target = $region20
        $region19: #{attentional_gnn_forward.1} parent=11 // pred_region
          _
        $region20: #{attentional_gnn_forward.1} parent=11 // pred_fallthru
          _
        // Predicated region
        $region21: #{attentional_gnn_forward.1} parent=11 // pred_check
          %p315 = pneg %p151
        $region22: #{attentional_gnn_forward.1} parent=11 // pred_check_branch
          %317 = sbr.rel (%p315) target = $region24
        $region23: #{attentional_gnn_forward.1} parent=11 // pred_region
          %s319 = ssub.s32 4096, 4096
          %320 = vsyncadd [#allocation8], %s319
          %s321 = sshll.u32 [#allocation7], 4
          %s322 = int_to_ptr.vmem [resolvable:$true] %s321
          %327 = dma.hbm_to_vmem [thread:$0]  %s4, 4096, %s322, [#allocation8], 128, 128, 8
        $region24: #{attentional_gnn_forward.1} parent=11 // pred_fallthru
          _
        // Predicated region
        $region25: #{attentional_gnn_forward.1} parent=11 // pred_check
          %p328 = pneg %p172
        $region26: #{attentional_gnn_forward.1} parent=11 // pred_check_branch
          %330 = sbr.rel (%p328) target = $region28
        $region27: #{attentional_gnn_forward.1} parent=11 // pred_region
          _
        $region28: #{attentional_gnn_forward.1} parent=11 // pred_fallthru
          _
        // Predicated region
        $region29: #{attentional_gnn_forward.1} parent=11 // pred_check
          %p331 = pneg %p193
        $region30: #{attentional_gnn_forward.1} parent=11 // pred_check_branch
          %333 = sbr.rel (%p331) target = $region32
        $region31: #{attentional_gnn_forward.1} parent=11 // pred_region
          %s335 = ssub.s32 2048, 2048
          %336 = vsyncadd [#allocation8], %s335
          %s337 = sshll.u32 [#allocation9], 4
          %s338 = int_to_ptr.vmem [resolvable:$true] %s337
          %343 = dma.hbm_to_vmem [thread:$0]  %s6, 2048, %s338, [#allocation8], 128, 128, 8
        $region32: #{attentional_gnn_forward.1} parent=11 // pred_fallthru
          _
        // Predicated region
        $region33: #{attentional_gnn_forward.1} parent=11 // pred_check
          %p344 = pneg %p214
        $region34: #{attentional_gnn_forward.1} parent=11 // pred_check_branch
          %346 = sbr.rel (%p344) target = $region36
        $region35: #{attentional_gnn_forward.1} parent=11 // pred_region
          _
        $region36: #{attentional_gnn_forward.1} parent=11 // pred_fallthru
          _
        // Predicated region
        $region37: #{attentional_gnn_forward.1} parent=11 // pred_check
          %p347 = pneg %p235
        $region38: #{attentional_gnn_forward.1} parent=11 // pred_check_branch
          %349 = sbr.rel (%p347) target = $region40
        $region39: #{attentional_gnn_forward.1} parent=11 // pred_region
          %s351 = ssub.s32 2048, 2048
          %352 = vsyncadd [#allocation11], %s351
          %s353 = sshll.u32 [#allocation10], 4
          %s354 = int_to_ptr.vmem [resolvable:$true] %s353
          %359 = dma.hbm_to_vmem [thread:$0]  %s8, 2048, %s354, [#allocation11], 128, 128, 8
        $region40: #{attentional_gnn_forward.1} parent=11 // pred_fallthru
          _
        // Predicated region
        $region41: #{attentional_gnn_forward.1} parent=11 // pred_check
          %p360 = pneg %p256
        $region42: #{attentional_gnn_forward.1} parent=11 // pred_check_branch
          %362 = sbr.rel (%p360) target = $region44
        $region43: #{attentional_gnn_forward.1} parent=11 // pred_region
          %s364 = ssub.s32 2048, 2048
          %365 = vsyncadd [#allocation11], %s364
          %s366 = sshll.u32 [#allocation12], 4
          %s367 = int_to_ptr.vmem [resolvable:$true] %s366
          %372 = dma.hbm_to_vmem [thread:$0]  %s9, 2048, %s367, [#allocation11], 128, 128, 8
        $region44: #{attentional_gnn_forward.1} parent=11 // pred_fallthru
          _
      $region12: #{attentional_gnn_forward.1} parent=5 // pred_fallthru
        _
      %p373 = scmp.lt.s32.totalorder %s22, 2
      // Predicated region
      $region45: #{attentional_gnn_forward.1} parent=5 // pred_check
        %p374 = pneg %p373
      $region46: #{attentional_gnn_forward.1} parent=5 // pred_check_branch
        %376 = sbr.rel (%p374) target = $region48
      $region47: #{attentional_gnn_forward.1} parent=5 // pred_region
        // Predicated region
        $region49: #{attentional_gnn_forward.1} parent=47 // pred_check
          %p377 = pneg %p56
        $region50: #{attentional_gnn_forward.1} parent=47 // pred_check_branch
          %379 = sbr.rel (%p377) target = $region52
        $region51: #{attentional_gnn_forward.1} parent=47 // pred_region
          %p380 = scmp.lt.s32.totalorder %s29, 1
          %s381 = scalar_select %p380, %s29, 1
          %p382 = scmp.lt.s32.totalorder %s30, 0
          %s383 = scalar_select %p382, %s30, 0
          %s384 = smul.addr %s381, 16
          %s385 = sadd.s32 %s383, %s384
          %s386 = smul.addr %s385, 8
          %s387 = scalar_lea.vmem %s0, %s386
        $region52: #{attentional_gnn_forward.1} parent=47 // pred_fallthru
          _
        // Predicated region
        $region53: #{attentional_gnn_forward.1} parent=47 // pred_check
          %p388 = pneg %p82
        $region54: #{attentional_gnn_forward.1} parent=47 // pred_check_branch
          %390 = sbr.rel (%p388) target = $region56
        $region55: #{attentional_gnn_forward.1} parent=47 // pred_region
          %p391 = scmp.lt.s32.totalorder %s29, 1
          %s392 = scalar_select %p391, %s29, 1
          %s393 = smul.addr %s392, 16
          %s394 = smul.addr %s393, 8
          %s395 = scalar_lea.vmem %s1, %s394
        $region56: #{attentional_gnn_forward.1} parent=47 // pred_fallthru
          _
      $region48: #{attentional_gnn_forward.1} parent=5 // pred_fallthru
        _
      %p396 = scmp.le.s32.totalorder 1, %s22
      %p397 = scmp.lt.s32.totalorder %s22, 3
      %p398 = pnand %p396, %p397
      %p399 = pneg %p398
      // Predicated region
      $region57: #{attentional_gnn_forward.1} parent=5 // pred_check
        _
      $region58: #{attentional_gnn_forward.1} parent=5 // pred_check_branch
        %401 = sbr.rel (%p398) target = $region60
      $region59: #{attentional_gnn_forward.1} parent=5 // pred_region
        %s402 = ssub.s32 %s22, 1
        // Predicated region
        $region61: #{attentional_gnn_forward.1} parent=59 // pred_check
          %p403 = pneg %p109
        $region62: #{attentional_gnn_forward.1} parent=59 // pred_check_branch
          %405 = sbr.rel (%p403) target = $region64
        $region63: #{attentional_gnn_forward.1} parent=59 // pred_region
          %406 = dma.done [#allocation5], 2048
        $region64: #{attentional_gnn_forward.1} parent=59 // pred_fallthru
          _
        // Predicated region
        $region65: #{attentional_gnn_forward.1} parent=59 // pred_check
          %p407 = pneg %p151
        $region66: #{attentional_gnn_forward.1} parent=59 // pred_check_branch
          %409 = sbr.rel (%p407) target = $region68
        $region67: #{attentional_gnn_forward.1} parent=59 // pred_region
          %410 = dma.done [#allocation8], 4096
        $region68: #{attentional_gnn_forward.1} parent=59 // pred_fallthru
          _
        // Predicated region
        $region69: #{attentional_gnn_forward.1} parent=59 // pred_check
          %p411 = pneg %p193
        $region70: #{attentional_gnn_forward.1} parent=59 // pred_check_branch
          %413 = sbr.rel (%p411) target = $region72
        $region71: #{attentional_gnn_forward.1} parent=59 // pred_region
          %414 = dma.done [#allocation8], 2048
        $region72: #{attentional_gnn_forward.1} parent=59 // pred_fallthru
          _
        // Predicated region
        $region73: #{attentional_gnn_forward.1} parent=59 // pred_check
          %p415 = pneg %p235
        $region74: #{attentional_gnn_forward.1} parent=59 // pred_check_branch
          %417 = sbr.rel (%p415) target = $region76
        $region75: #{attentional_gnn_forward.1} parent=59 // pred_region
          %418 = dma.done [#allocation11], 2048
        $region76: #{attentional_gnn_forward.1} parent=59 // pred_fallthru
          _
        // Predicated region
        $region77: #{attentional_gnn_forward.1} parent=59 // pred_check
          %p419 = pneg %p256
        $region78: #{attentional_gnn_forward.1} parent=59 // pred_check_branch
          %421 = sbr.rel (%p419) target = $region80
        $region79: #{attentional_gnn_forward.1} parent=59 // pred_region
          %422 = dma.done [#allocation11], 2048
        $region80: #{attentional_gnn_forward.1} parent=59 // pred_fallthru
          _
        %p423 = scmp.lt.s32.totalorder %s31, 1
        %s424 = scalar_select %p423, %s31, 1
        %p425 = scmp.lt.s32.totalorder %s32, 0
        %s426 = scalar_select %p425, %s32, 0
        %s427 = smul.addr %s424, 16
        %s428 = sadd.s32 %s426, %s427
        %s429 = smul.addr %s428, 8
        %s430 = scalar_lea.vmem %s0, %s429
        %p431 = pneg %p62
        %p432 = pneg %p59
        %p433 = scmp.lt.s32.totalorder %s31, 1
        %s434 = scalar_select %p433, %s31, 1
        %s435 = smul.addr %s434, 16
        %s436 = smul.addr %s435, 8
        %s437 = scalar_lea.vmem %s1, %s436
        %p438 = pneg %p88
        %p439 = pneg %p85
        %p440 = pneg %p109
        %p441 = pneg %p106
        %p442 = pneg %p130
        %p443 = pneg %p127
        %p444 = pneg %p151
        %p445 = pneg %p148
        %p446 = pneg %p172
        %p447 = pneg %p169
        %p448 = pneg %p193
        %p449 = pneg %p190
        %p450 = pneg %p214
        %p451 = pneg %p211
        %p452 = pneg %p235
        %p453 = pneg %p232
        %p454 = pneg %p256
        %p455 = pneg %p253
        %p456 = pneg %p284
        %p457 = pneg %p281
        %s458 = sand.u32 %s271, 1
        %s459 = scalar_lea.sflag [#allocation6], %s458
        %s460 = sand.u32 %s271, 1
        %s461 = smul.addr %s460, 128
        %s462 = scalar_lea.vmem [#allocation13], %s461
        %p463 = scmp.lt.s32.totalorder %s31, 1
        %s464 = scalar_select %p463, %s31, 1
        %p465 = scmp.lt.s32.totalorder %s32, 0
        %s466 = scalar_select %p465, %s32, 0
        %s467 = smul.addr %s464, 16
        %s468 = sadd.s32 %s466, %s467
        %s469 = smul.addr %s468, 8
        %s470 = scalar_lea.vmem %s0, %s469
        %p471 = scmp.lt.s32.totalorder %s31, 1
        %s472 = scalar_select %p471, %s31, 1
        %s473 = smul.addr %s472, 16
        %s474 = smul.addr %s473, 8
        %s475 = scalar_lea.vmem %s1, %s474
        %v476 = vld [vmem:[%s470] sm:$0xff]
        %v477 = vld [vmem:[%s470 + $0x8] sm:$0xff]
        %v478 = vld [vmem:[%s470 + $0x10] sm:$0xff]
        %v479 = vld [vmem:[%s470 + $0x18] sm:$0xff]
        %v480 = vld [vmem:[%s470 + $0x20] sm:$0xff]
        %v481 = vld [vmem:[%s470 + $0x28] sm:$0xff]
        %v482 = vld [vmem:[%s470 + $0x30] sm:$0xff]
        %v483 = vld [vmem:[%s470 + $0x38] sm:$0xff]
        %v484 = vld [vmem:[%s470 + $0x40] sm:$0xff]
        %v485 = vld [vmem:[%s470 + $0x48] sm:$0xff]
        %v486 = vld [vmem:[%s470 + $0x50] sm:$0xff]
        %v487 = vld [vmem:[%s470 + $0x58] sm:$0xff]
        %v488 = vld [vmem:[%s470 + $0x60] sm:$0xff]
        %v489 = vld [vmem:[%s470 + $0x68] sm:$0xff]
        %v490 = vld [vmem:[%s470 + $0x70] sm:$0xff]
        %v491 = vld [vmem:[%s470 + $0x78] sm:$0xff]
        %p492 = scmp.eq.s32.totalorder %s32, 0
        // Predicated region
        $region81: #{attentional_gnn_forward.1} parent=59 // pred_check
          %p493 = pneg %p492
        $region82: #{attentional_gnn_forward.1} parent=59 // pred_check_branch
          %495 = sbr.rel (%p493) target = $region84
        $region83: #{attentional_gnn_forward.1} parent=59 // pred_region
          %v496 = vld [vmem:[%s475] sm:$0xff]
          %v497 = vld [vmem:[%s475 + $0x8] sm:$0xff]
          %v498 = vld [vmem:[%s475 + $0x10] sm:$0xff]
          %v499 = vld [vmem:[%s475 + $0x18] sm:$0xff]
          %v500 = vld [vmem:[%s475 + $0x20] sm:$0xff]
          %v501 = vld [vmem:[%s475 + $0x28] sm:$0xff]
          %v502 = vld [vmem:[%s475 + $0x30] sm:$0xff]
          %v503 = vld [vmem:[%s475 + $0x38] sm:$0xff]
          %v504 = vld [vmem:[%s475 + $0x40] sm:$0xff]
          %v505 = vld [vmem:[%s475 + $0x48] sm:$0xff]
          %v506 = vld [vmem:[%s475 + $0x50] sm:$0xff]
          %v507 = vld [vmem:[%s475 + $0x58] sm:$0xff]
          %v508 = vld [vmem:[%s475 + $0x60] sm:$0xff]
          %v509 = vld [vmem:[%s475 + $0x68] sm:$0xff]
          %v510 = vld [vmem:[%s475 + $0x70] sm:$0xff]
          %v511 = vld [vmem:[%s475 + $0x78] sm:$0xff]
          %v512 = vld [vmem:[#allocation7] sm:$0xff]
          %v513 = vld [vmem:[#allocation7 + $0x8] sm:$0xff]
          %v514 = vld [vmem:[#allocation7 + $0x10] sm:$0xff]
          %v515 = vld [vmem:[#allocation7 + $0x18] sm:$0xff]
          %v516 = vld [vmem:[#allocation7 + $0x20] sm:$0xff]
          %v517 = vld [vmem:[#allocation7 + $0x28] sm:$0xff]
          %v518 = vld [vmem:[#allocation7 + $0x30] sm:$0xff]
          %v519 = vld [vmem:[#allocation7 + $0x38] sm:$0xff]
          %v520 = vld [vmem:[#allocation7 + $0x40] sm:$0xff]
          %v521 = vld [vmem:[#allocation7 + $0x48] sm:$0xff]
          %v522 = vld [vmem:[#allocation7 + $0x50] sm:$0xff]
          %v523 = vld [vmem:[#allocation7 + $0x58] sm:$0xff]
          %v524 = vld [vmem:[#allocation7 + $0x60] sm:$0xff]
          %v525 = vld [vmem:[#allocation7 + $0x68] sm:$0xff]
          %v526 = vld [vmem:[#allocation7 + $0x70] sm:$0xff]
          %v527 = vld [vmem:[#allocation7 + $0x78] sm:$0xff]
          %v528 = vld [vmem:[#allocation7 + $0x80] sm:$0xff]
          %v529 = vld [vmem:[#allocation7 + $0x88] sm:$0xff]
          %v530 = vld [vmem:[#allocation7 + $0x90] sm:$0xff]
          %v531 = vld [vmem:[#allocation7 + $0x98] sm:$0xff]
          %v532 = vld [vmem:[#allocation7 + $0xa0] sm:$0xff]
          %v533 = vld [vmem:[#allocation7 + $0xa8] sm:$0xff]
          %v534 = vld [vmem:[#allocation7 + $0xb0] sm:$0xff]
          %v535 = vld [vmem:[#allocation7 + $0xb8] sm:$0xff]
          %v536 = vld [vmem:[#allocation7 + $0xc0] sm:$0xff]
          %v537 = vld [vmem:[#allocation7 + $0xc8] sm:$0xff]
          %v538 = vld [vmem:[#allocation7 + $0xd0] sm:$0xff]
          %v539 = vld [vmem:[#allocation7 + $0xd8] sm:$0xff]
          %v540 = vld [vmem:[#allocation7 + $0xe0] sm:$0xff]
          %v541 = vld [vmem:[#allocation7 + $0xe8] sm:$0xff]
          %v542 = vld [vmem:[#allocation7 + $0xf0] sm:$0xff]
          %v543 = vld [vmem:[#allocation7 + $0xf8] sm:$0xff]
          %v544 = vld [vmem:[%s5] sm:$0xff]
          %v545 = vld [vmem:[%s5 + $0x8] sm:$0xff]
          %v546 = vld [vmem:[%s5 + $0x10] sm:$0xff]
          %v547 = vld [vmem:[%s5 + $0x18] sm:$0xff]
          %v548 = vld [vmem:[%s5 + $0x20] sm:$0xff]
          %v549 = vld [vmem:[%s5 + $0x28] sm:$0xff]
          %v550 = vld [vmem:[%s5 + $0x30] sm:$0xff]
          %v551 = vld [vmem:[%s5 + $0x38] sm:$0xff]
          %v552 = vld [vmem:[%s5 + $0x40] sm:$0xff]
          %v553 = vld [vmem:[%s5 + $0x48] sm:$0xff]
          %v554 = vld [vmem:[%s5 + $0x50] sm:$0xff]
          %v555 = vld [vmem:[%s5 + $0x58] sm:$0xff]
          %v556 = vld [vmem:[%s5 + $0x60] sm:$0xff]
          %v557 = vld [vmem:[%s5 + $0x68] sm:$0xff]
          %v558 = vld [vmem:[%s5 + $0x70] sm:$0xff]
          %v559 = vld [vmem:[%s5 + $0x78] sm:$0xff]
          %v560 = vld [vmem:[%s5 + $0x80] sm:$0xff]
          %v561 = vld [vmem:[%s5 + $0x88] sm:$0xff]
          %v562 = vld [vmem:[%s5 + $0x90] sm:$0xff]
          %v563 = vld [vmem:[%s5 + $0x98] sm:$0xff]
          %v564 = vld [vmem:[%s5 + $0xa0] sm:$0xff]
          %v565 = vld [vmem:[%s5 + $0xa8] sm:$0xff]
          %v566 = vld [vmem:[%s5 + $0xb0] sm:$0xff]
          %v567 = vld [vmem:[%s5 + $0xb8] sm:$0xff]
          %v568 = vld [vmem:[%s5 + $0xc0] sm:$0xff]
          %v569 = vld [vmem:[%s5 + $0xc8] sm:$0xff]
          %v570 = vld [vmem:[%s5 + $0xd0] sm:$0xff]
          %v571 = vld [vmem:[%s5 + $0xd8] sm:$0xff]
          %v572 = vld [vmem:[%s5 + $0xe0] sm:$0xff]
          %v573 = vld [vmem:[%s5 + $0xe8] sm:$0xff]
          %v574 = vld [vmem:[%s5 + $0xf0] sm:$0xff]
          %v575 = vld [vmem:[%s5 + $0xf8] sm:$0xff]
          %577 = vset.pattern.permute.xlu0 0
          %578 = vperm.xlu0 %577, %v544
          %v579 = vpop.permute.xlu0 %578
          %582 = vset.pattern.permute.xlu0 0
          %583 = vperm.xlu0 %582, %v545
          %v584 = vpop.permute.xlu0 %583
          %587 = vset.pattern.permute.xlu0 0
          %588 = vperm.xlu0 %587, %v546
          %v589 = vpop.permute.xlu0 %588
          %592 = vset.pattern.permute.xlu0 0
          %593 = vperm.xlu0 %592, %v547
          %v594 = vpop.permute.xlu0 %593
          %597 = vset.pattern.permute.xlu0 0
          %598 = vperm.xlu0 %597, %v548
          %v599 = vpop.permute.xlu0 %598
          %602 = vset.pattern.permute.xlu0 0
          %603 = vperm.xlu0 %602, %v549
          %v604 = vpop.permute.xlu0 %603
          %607 = vset.pattern.permute.xlu0 0
          %608 = vperm.xlu0 %607, %v550
          %v609 = vpop.permute.xlu0 %608
          %612 = vset.pattern.permute.xlu0 0
          %613 = vperm.xlu0 %612, %v551
          %v614 = vpop.permute.xlu0 %613
          %617 = vset.pattern.permute.xlu0 0
          %618 = vperm.xlu0 %617, %v552
          %v619 = vpop.permute.xlu0 %618
          %622 = vset.pattern.permute.xlu0 0
          %623 = vperm.xlu0 %622, %v553
          %v624 = vpop.permute.xlu0 %623
          %627 = vset.pattern.permute.xlu0 0
          %628 = vperm.xlu0 %627, %v554
          %v629 = vpop.permute.xlu0 %628
          %632 = vset.pattern.permute.xlu0 0
          %633 = vperm.xlu0 %632, %v555
          %v634 = vpop.permute.xlu0 %633
          %637 = vset.pattern.permute.xlu0 0
          %638 = vperm.xlu0 %637, %v556
          %v639 = vpop.permute.xlu0 %638
          %642 = vset.pattern.permute.xlu0 0
          %643 = vperm.xlu0 %642, %v557
          %v644 = vpop.permute.xlu0 %643
          %647 = vset.pattern.permute.xlu0 0
          %648 = vperm.xlu0 %647, %v558
          %v649 = vpop.permute.xlu0 %648
          %652 = vset.pattern.permute.xlu0 0
          %653 = vperm.xlu0 %652, %v559
          %v654 = vpop.permute.xlu0 %653
          %657 = vset.pattern.permute.xlu0 0
          %658 = vperm.xlu0 %657, %v560
          %v659 = vpop.permute.xlu0 %658
          %662 = vset.pattern.permute.xlu0 0
          %663 = vperm.xlu0 %662, %v561
          %v664 = vpop.permute.xlu0 %663
          %667 = vset.pattern.permute.xlu0 0
          %668 = vperm.xlu0 %667, %v562
          %v669 = vpop.permute.xlu0 %668
          %672 = vset.pattern.permute.xlu0 0
          %673 = vperm.xlu0 %672, %v563
          %v674 = vpop.permute.xlu0 %673
          %677 = vset.pattern.permute.xlu0 0
          %678 = vperm.xlu0 %677, %v564
          %v679 = vpop.permute.xlu0 %678
          %682 = vset.pattern.permute.xlu0 0
          %683 = vperm.xlu0 %682, %v565
          %v684 = vpop.permute.xlu0 %683
          %687 = vset.pattern.permute.xlu0 0
          %688 = vperm.xlu0 %687, %v566
          %v689 = vpop.permute.xlu0 %688
          %692 = vset.pattern.permute.xlu0 0
          %693 = vperm.xlu0 %692, %v567
          %v694 = vpop.permute.xlu0 %693
          %697 = vset.pattern.permute.xlu0 0
          %698 = vperm.xlu0 %697, %v568
          %v699 = vpop.permute.xlu0 %698
          %702 = vset.pattern.permute.xlu0 0
          %703 = vperm.xlu0 %702, %v569
          %v704 = vpop.permute.xlu0 %703
          %707 = vset.pattern.permute.xlu0 0
          %708 = vperm.xlu0 %707, %v570
          %v709 = vpop.permute.xlu0 %708
          %712 = vset.pattern.permute.xlu0 0
          %713 = vperm.xlu0 %712, %v571
          %v714 = vpop.permute.xlu0 %713
          %717 = vset.pattern.permute.xlu0 0
          %718 = vperm.xlu0 %717, %v572
          %v719 = vpop.permute.xlu0 %718
          %722 = vset.pattern.permute.xlu0 0
          %723 = vperm.xlu0 %722, %v573
          %v724 = vpop.permute.xlu0 %723
          %727 = vset.pattern.permute.xlu0 0
          %728 = vperm.xlu0 %727, %v574
          %v729 = vpop.permute.xlu0 %728
          %732 = vset.pattern.permute.xlu0 0
          %733 = vperm.xlu0 %732, %v575
          %v734 = vpop.permute.xlu0 %733
          %736 = vmatprep.subr.mxu0 0.0
          %737 = vmatpush1.msra.mxu0 %v496
          %738 = vmatprep.subr.mxu0 0.0
          %739 = vmatpush1.msra.mxu0 %v497
          %740 = vmatprep.subr.mxu0 0.0
          %741 = vmatpush1.msra.mxu0 %v498
          %742 = vmatprep.subr.mxu0 0.0
          %743 = vmatpush1.msra.mxu0 %v499
          %744 = vmatprep.subr.mxu0 0.0
          %745 = vmatpush1.msra.mxu0 %v500
          %746 = vmatprep.subr.mxu0 0.0
          %747 = vmatpush1.msra.mxu0 %v501
          %748 = vmatprep.subr.mxu0 0.0
          %749 = vmatpush1.msra.mxu0 %v502
          %750 = vmatprep.subr.mxu0 0.0
          %751 = vmatpush1.msra.mxu0 %v503
          %752 = vmatprep.subr.mxu0 0.0
          %753 = vmatpush1.msra.mxu0 %v504
          %754 = vmatprep.subr.mxu0 0.0
          %755 = vmatpush1.msra.mxu0 %v505
          %756 = vmatprep.subr.mxu0 0.0
          %757 = vmatpush1.msra.mxu0 %v506
          %758 = vmatprep.subr.mxu0 0.0
          %759 = vmatpush1.msra.mxu0 %v507
          %760 = vmatprep.subr.mxu0 0.0
          %761 = vmatpush1.msra.mxu0 %v508
          %762 = vmatprep.subr.mxu0 0.0
          %763 = vmatpush1.msra.mxu0 %v509
          %764 = vmatprep.subr.mxu0 0.0
          %765 = vmatpush1.msra.mxu0 %v510
          %766 = vmatprep.subr.mxu0 0.0
          %767 = vmatpush1.msra.mxu0 %v511
          %768 = vmatprep.subr.mxu0 0.0
          %769 = vmatpush1.msra.mxu0 0.0
          %770 = vmatprep.subr.mxu0 0.0
          %771 = vmatpush1.msra.mxu0 0.0
          %772 = vmatprep.subr.mxu0 0.0
          %773 = vmatpush1.msra.mxu0 0.0
          %774 = vmatprep.subr.mxu0 0.0
          %775 = vmatpush1.msra.mxu0 0.0
          %776 = vmatprep.subr.mxu0 0.0
          %777 = vmatpush1.msra.mxu0 0.0
          %778 = vmatprep.subr.mxu0 0.0
          %779 = vmatpush1.msra.mxu0 0.0
          %780 = vmatprep.subr.mxu0 0.0
          %781 = vmatpush1.msra.mxu0 0.0
          %782 = vmatprep.subr.mxu0 0.0
          %783 = vmatpush1.msra.mxu0 0.0
          %784 = vmatprep.subr.mxu0 0.0
          %785 = vmatpush1.msra.mxu0 0.0
          %786 = vmatprep.subr.mxu0 0.0
          %787 = vmatpush1.msra.mxu0 0.0
          %788 = vmatprep.subr.mxu0 0.0
          %789 = vmatpush1.msra.mxu0 0.0
          %790 = vmatprep.subr.mxu0 0.0
          %791 = vmatpush1.msra.mxu0 0.0
          %792 = vmatprep.subr.mxu0 0.0
          %793 = vmatpush1.msra.mxu0 0.0
          %794 = vmatprep.subr.mxu0 0.0
          %795 = vmatpush1.msra.mxu0 0.0
          %796 = vmatprep.subr.mxu0 0.0
          %797 = vmatpush1.msra.mxu0 0.0
          %798 = vmatprep.subr.mxu0 0.0
          %799 = vmatpush1.msra.mxu0 0.0
          %800 = vmatprep.mubr.f32.mxu0 0.0
          %801 = vmatmul.mubr.f32.gmra.mrb[0].mxu0 %v512
          %v802 = vpop.f32.mrb[0].mxu0
          %v803 = vadd.f32 %v579, %v802
          %v804 = vpop.f32.mrb[0].mxu0
          %805 = vmatprep.mubr.f32.mxu0 0.0
          %806 = vmatmul.mubr.f32.gmra.mrb[0].mxu0 %v513
          %v807 = vpop.f32.mrb[0].mxu0
          %v808 = vadd.f32 %v584, %v807
          %v809 = vpop.f32.mrb[0].mxu0
          %810 = vmatprep.mubr.f32.mxu0 0.0
          %811 = vmatmul.mubr.f32.gmra.mrb[0].mxu0 %v514
          %v812 = vpop.f32.mrb[0].mxu0
          %v813 = vadd.f32 %v589, %v812
          %v814 = vpop.f32.mrb[0].mxu0
          %815 = vmatprep.mubr.f32.mxu0 0.0
          %816 = vmatmul.mubr.f32.gmra.mrb[0].mxu0 %v515
          %v817 = vpop.f32.mrb[0].mxu0
          %v818 = vadd.f32 %v594, %v817
          %v819 = vpop.f32.mrb[0].mxu0
          %820 = vmatprep.mubr.f32.mxu0 0.0
          %821 = vmatmul.mubr.f32.gmra.mrb[0].mxu0 %v516
          %v822 = vpop.f32.mrb[0].mxu0
          %v823 = vadd.f32 %v599, %v822
          %v824 = vpop.f32.mrb[0].mxu0
          %825 = vmatprep.mubr.f32.mxu0 0.0
          %826 = vmatmul.mubr.f32.gmra.mrb[0].mxu0 %v517
          %v827 = vpop.f32.mrb[0].mxu0
          %v828 = vadd.f32 %v604, %v827
          %v829 = vpop.f32.mrb[0].mxu0
          %830 = vmatprep.mubr.f32.mxu0 0.0
          %831 = vmatmul.mubr.f32.gmra.mrb[0].mxu0 %v518
          %v832 = vpop.f32.mrb[0].mxu0
          %v833 = vadd.f32 %v609, %v832
          %v834 = vpop.f32.mrb[0].mxu0
          %835 = vmatprep.mubr.f32.mxu0 0.0
          %836 = vmatmul.mubr.f32.gmra.mrb[0].mxu0 %v519
          %v837 = vpop.f32.mrb[0].mxu0
          %v838 = vadd.f32 %v614, %v837
          %v839 = vpop.f32.mrb[0].mxu0
          %840 = vmatprep.mubr.f32.mxu0 0.0
          %841 = vmatmul.mubr.f32.gmra.mrb[0].mxu0 %v520
          %v842 = vpop.f32.mrb[0].mxu0
          %v843 = vadd.f32 %v619, %v842
          %v844 = vpop.f32.mrb[0].mxu0
          %845 = vmatprep.mubr.f32.mxu0 0.0
          %846 = vmatmul.mubr.f32.gmra.mrb[0].mxu0 %v521
          %v847 = vpop.f32.mrb[0].mxu0
          %v848 = vadd.f32 %v624, %v847
          %v849 = vpop.f32.mrb[0].mxu0
          %850 = vmatprep.mubr.f32.mxu0 0.0
          %851 = vmatmul.mubr.f32.gmra.mrb[0].mxu0 %v522
          %v852 = vpop.f32.mrb[0].mxu0
          %v853 = vadd.f32 %v629, %v852
          %v854 = vpop.f32.mrb[0].mxu0
          %855 = vmatprep.mubr.f32.mxu0 0.0
          %856 = vmatmul.mubr.f32.gmra.mrb[0].mxu0 %v523
          %v857 = vpop.f32.mrb[0].mxu0
          %v858 = vadd.f32 %v634, %v857
          %v859 = vpop.f32.mrb[0].mxu0
          %860 = vmatprep.mubr.f32.mxu0 0.0
          %861 = vmatmul.mubr.f32.gmra.mrb[0].mxu0 %v524
          %v862 = vpop.f32.mrb[0].mxu0
          %v863 = vadd.f32 %v639, %v862
          %v864 = vpop.f32.mrb[0].mxu0
          %865 = vmatprep.mubr.f32.mxu0 0.0
          %866 = vmatmul.mubr.f32.gmra.mrb[0].mxu0 %v525
          %v867 = vpop.f32.mrb[0].mxu0
          %v868 = vadd.f32 %v644, %v867
          %v869 = vpop.f32.mrb[0].mxu0
          %870 = vmatprep.mubr.f32.mxu0 0.0
          %871 = vmatmul.mubr.f32.gmra.mrb[0].mxu0 %v526
          %v872 = vpop.f32.mrb[0].mxu0
          %v873 = vadd.f32 %v649, %v872
          %v874 = vpop.f32.mrb[0].mxu0
          %875 = vmatprep.mubr.f32.mxu0 0.0
          %876 = vmatmul.mubr.f32.gmra.mrb[0].mxu0 %v527
          %v877 = vpop.f32.mrb[0].mxu0
          %v878 = vadd.f32 %v654, %v877
          %v879 = vpop.f32.mrb[0].mxu0
          %880 = vmatprep.mubr.f32.mxu0 0.0
          %881 = vmatmul.mubr.f32.gmra.mrb[0].mxu0 %v528
          %v882 = vpop.f32.mrb[0].mxu0
          %v883 = vadd.f32 %v659, %v882
          %v884 = vpop.f32.mrb[0].mxu0
          %885 = vmatprep.mubr.f32.mxu0 0.0
          %886 = vmatmul.mubr.f32.gmra.mrb[0].mxu0 %v529
          %v887 = vpop.f32.mrb[0].mxu0
          %v888 = vadd.f32 %v664, %v887
          %v889 = vpop.f32.mrb[0].mxu0
          %890 = vmatprep.mubr.f32.mxu0 0.0
          %891 = vmatmul.mubr.f32.gmra.mrb[0].mxu0 %v530
          %v892 = vpop.f32.mrb[0].mxu0
          %v893 = vadd.f32 %v669, %v892
          %v894 = vpop.f32.mrb[0].mxu0
          %895 = vmatprep.mubr.f32.mxu0 0.0
          %896 = vmatmul.mubr.f32.gmra.mrb[0].mxu0 %v531
          %v897 = vpop.f32.mrb[0].mxu0
          %v898 = vadd.f32 %v674, %v897
          %v899 = vpop.f32.mrb[0].mxu0
          %900 = vmatprep.mubr.f32.mxu0 0.0
          %901 = vmatmul.mubr.f32.gmra.mrb[0].mxu0 %v532
          %v902 = vpop.f32.mrb[0].mxu0
          %v903 = vadd.f32 %v679, %v902
          %v904 = vpop.f32.mrb[0].mxu0
          %905 = vmatprep.mubr.f32.mxu0 0.0
          %906 = vmatmul.mubr.f32.gmra.mrb[0].mxu0 %v533
          %v907 = vpop.f32.mrb[0].mxu0
          %v908 = vadd.f32 %v684, %v907
          %v909 = vpop.f32.mrb[0].mxu0
          %910 = vmatprep.mubr.f32.mxu0 0.0
          %911 = vmatmul.mubr.f32.gmra.mrb[0].mxu0 %v534
          %v912 = vpop.f32.mrb[0].mxu0
          %v913 = vadd.f32 %v689, %v912
          %v914 = vpop.f32.mrb[0].mxu0
          %915 = vmatprep.mubr.f32.mxu0 0.0
          %916 = vmatmul.mubr.f32.gmra.mrb[0].mxu0 %v535
          %v917 = vpop.f32.mrb[0].mxu0
          %v918 = vadd.f32 %v694, %v917
          %v919 = vpop.f32.mrb[0].mxu0
          %920 = vmatprep.mubr.f32.mxu0 0.0
          %921 = vmatmul.mubr.f32.gmra.mrb[0].mxu0 %v536
          %v922 = vpop.f32.mrb[0].mxu0
          %v923 = vadd.f32 %v699, %v922
          %v924 = vpop.f32.mrb[0].mxu0
          %925 = vmatprep.mubr.f32.mxu0 0.0
          %926 = vmatmul.mubr.f32.gmra.mrb[0].mxu0 %v537
          %v927 = vpop.f32.mrb[0].mxu0
          %v928 = vadd.f32 %v704, %v927
          %v929 = vpop.f32.mrb[0].mxu0
          %930 = vmatprep.mubr.f32.mxu0 0.0
          %931 = vmatmul.mubr.f32.gmra.mrb[0].mxu0 %v538
          %v932 = vpop.f32.mrb[0].mxu0
          %v933 = vadd.f32 %v709, %v932
          %v934 = vpop.f32.mrb[0].mxu0
          %935 = vmatprep.mubr.f32.mxu0 0.0
          %936 = vmatmul.mubr.f32.gmra.mrb[0].mxu0 %v539
          %v937 = vpop.f32.mrb[0].mxu0
          %v938 = vadd.f32 %v714, %v937
          %v939 = vpop.f32.mrb[0].mxu0
          %940 = vmatprep.mubr.f32.mxu0 0.0
          %941 = vmatmul.mubr.f32.gmra.mrb[0].mxu0 %v540
          %v942 = vpop.f32.mrb[0].mxu0
          %v943 = vadd.f32 %v719, %v942
          %v944 = vpop.f32.mrb[0].mxu0
          %945 = vmatprep.mubr.f32.mxu0 0.0
          %946 = vmatmul.mubr.f32.gmra.mrb[0].mxu0 %v541
          %v947 = vpop.f32.mrb[0].mxu0
          %v948 = vadd.f32 %v724, %v947
          %v949 = vpop.f32.mrb[0].mxu0
          %950 = vmatprep.mubr.f32.mxu0 0.0
          %951 = vmatmul.mubr.f32.gmra.mrb[0].mxu0 %v542
          %v952 = vpop.f32.mrb[0].mxu0
          %v953 = vadd.f32 %v729, %v952
          %v954 = vpop.f32.mrb[0].mxu0
          %955 = vmatprep.mubr.f32.mxu0 0.0
          %956 = vmatmul.mubr.f32.gmra.mrb[0].mxu0 %v543
          %v957 = vpop.f32.mrb[0].mxu0
          %v958 = vadd.f32 %v734, %v957
          %v959 = vpop.f32.mrb[0].mxu0
          %960 = vdwg.mxu0
          %961 = vst [vmem:[#allocation2] sm:$0xff] %v803
          %962 = vst [vmem:[#allocation2 + $0x8] sm:$0xff] %v808
          %963 = vst [vmem:[#allocation2 + $0x10] sm:$0xff] %v813
          %964 = vst [vmem:[#allocation2 + $0x18] sm:$0xff] %v818
          %965 = vst [vmem:[#allocation2 + $0x20] sm:$0xff] %v823
          %966 = vst [vmem:[#allocation2 + $0x28] sm:$0xff] %v828
          %967 = vst [vmem:[#allocation2 + $0x30] sm:$0xff] %v833
          %968 = vst [vmem:[#allocation2 + $0x38] sm:$0xff] %v838
          %969 = vst [vmem:[#allocation2 + $0x40] sm:$0xff] %v843
          %970 = vst [vmem:[#allocation2 + $0x48] sm:$0xff] %v848
          %971 = vst [vmem:[#allocation2 + $0x50] sm:$0xff] %v853
          %972 = vst [vmem:[#allocation2 + $0x58] sm:$0xff] %v858
          %973 = vst [vmem:[#allocation2 + $0x60] sm:$0xff] %v863
          %974 = vst [vmem:[#allocation2 + $0x68] sm:$0xff] %v868
          %975 = vst [vmem:[#allocation2 + $0x70] sm:$0xff] %v873
          %976 = vst [vmem:[#allocation2 + $0x78] sm:$0xff] %v878
          %977 = vst [vmem:[#allocation2 + $0x80] sm:$0xff] %v883
          %978 = vst [vmem:[#allocation2 + $0x88] sm:$0xff] %v888
          %979 = vst [vmem:[#allocation2 + $0x90] sm:$0xff] %v893
          %980 = vst [vmem:[#allocation2 + $0x98] sm:$0xff] %v898
          %981 = vst [vmem:[#allocation2 + $0xa0] sm:$0xff] %v903
          %982 = vst [vmem:[#allocation2 + $0xa8] sm:$0xff] %v908
          %983 = vst [vmem:[#allocation2 + $0xb0] sm:$0xff] %v913
          %984 = vst [vmem:[#allocation2 + $0xb8] sm:$0xff] %v918
          %985 = vst [vmem:[#allocation2 + $0xc0] sm:$0xff] %v923
          %986 = vst [vmem:[#allocation2 + $0xc8] sm:$0xff] %v928
          %987 = vst [vmem:[#allocation2 + $0xd0] sm:$0xff] %v933
          %988 = vst [vmem:[#allocation2 + $0xd8] sm:$0xff] %v938
          %989 = vst [vmem:[#allocation2 + $0xe0] sm:$0xff] %v943
          %990 = vst [vmem:[#allocation2 + $0xe8] sm:$0xff] %v948
          %991 = vst [vmem:[#allocation2 + $0xf0] sm:$0xff] %v953
          %992 = vst [vmem:[#allocation2 + $0xf8] sm:$0xff] %v958
        $region84: #{attentional_gnn_forward.1} parent=59 // pred_fallthru
          _
        %v993 = vld [vmem:[#allocation4] sm:$0xff]
        %v994 = vld [vmem:[#allocation4 + $0x8] sm:$0xff]
        %v995 = vld [vmem:[#allocation4 + $0x10] sm:$0xff]
        %v996 = vld [vmem:[#allocation4 + $0x18] sm:$0xff]
        %v997 = vld [vmem:[#allocation4 + $0x20] sm:$0xff]
        %v998 = vld [vmem:[#allocation4 + $0x28] sm:$0xff]
        %v999 = vld [vmem:[#allocation4 + $0x30] sm:$0xff]
        %v1000 = vld [vmem:[#allocation4 + $0x38] sm:$0xff]
        %v1001 = vld [vmem:[#allocation4 + $0x40] sm:$0xff]
        %v1002 = vld [vmem:[#allocation4 + $0x48] sm:$0xff]
        %v1003 = vld [vmem:[#allocation4 + $0x50] sm:$0xff]
        %v1004 = vld [vmem:[#allocation4 + $0x58] sm:$0xff]
        %v1005 = vld [vmem:[#allocation4 + $0x60] sm:$0xff]
        %v1006 = vld [vmem:[#allocation4 + $0x68] sm:$0xff]
        %v1007 = vld [vmem:[#allocation4 + $0x70] sm:$0xff]
        %v1008 = vld [vmem:[#allocation4 + $0x78] sm:$0xff]
        %v1009 = vld [vmem:[%s3] sm:$0xff]
        %v1010 = vld [vmem:[%s3 + $0x8] sm:$0xff]
        %v1011 = vld [vmem:[%s3 + $0x10] sm:$0xff]
        %v1012 = vld [vmem:[%s3 + $0x18] sm:$0xff]
        %v1013 = vld [vmem:[%s3 + $0x20] sm:$0xff]
        %v1014 = vld [vmem:[%s3 + $0x28] sm:$0xff]
        %v1015 = vld [vmem:[%s3 + $0x30] sm:$0xff]
        %v1016 = vld [vmem:[%s3 + $0x38] sm:$0xff]
        %v1017 = vld [vmem:[%s3 + $0x40] sm:$0xff]
        %v1018 = vld [vmem:[%s3 + $0x48] sm:$0xff]
        %v1019 = vld [vmem:[%s3 + $0x50] sm:$0xff]
        %v1020 = vld [vmem:[%s3 + $0x58] sm:$0xff]
        %v1021 = vld [vmem:[%s3 + $0x60] sm:$0xff]
        %v1022 = vld [vmem:[%s3 + $0x68] sm:$0xff]
        %v1023 = vld [vmem:[%s3 + $0x70] sm:$0xff]
        %v1024 = vld [vmem:[%s3 + $0x78] sm:$0xff]
        %1026 = vset.pattern.permute.xlu0 0
        %1027 = vperm.xlu0 %1026, %v1009
        %v1028 = vpop.permute.xlu0 %1027
        %1031 = vset.pattern.permute.xlu0 0
        %1032 = vperm.xlu0 %1031, %v1010
        %v1033 = vpop.permute.xlu0 %1032
        %1036 = vset.pattern.permute.xlu0 0
        %1037 = vperm.xlu0 %1036, %v1011
        %v1038 = vpop.permute.xlu0 %1037
        %1041 = vset.pattern.permute.xlu0 0
        %1042 = vperm.xlu0 %1041, %v1012
        %v1043 = vpop.permute.xlu0 %1042
        %1046 = vset.pattern.permute.xlu0 0
        %1047 = vperm.xlu0 %1046, %v1013
        %v1048 = vpop.permute.xlu0 %1047
        %1051 = vset.pattern.permute.xlu0 0
        %1052 = vperm.xlu0 %1051, %v1014
        %v1053 = vpop.permute.xlu0 %1052
        %1056 = vset.pattern.permute.xlu0 0
        %1057 = vperm.xlu0 %1056, %v1015
        %v1058 = vpop.permute.xlu0 %1057
        %1061 = vset.pattern.permute.xlu0 0
        %1062 = vperm.xlu0 %1061, %v1016
        %v1063 = vpop.permute.xlu0 %1062
        %1066 = vset.pattern.permute.xlu0 0
        %1067 = vperm.xlu0 %1066, %v1017
        %v1068 = vpop.permute.xlu0 %1067
        %1071 = vset.pattern.permute.xlu0 0
        %1072 = vperm.xlu0 %1071, %v1018
        %v1073 = vpop.permute.xlu0 %1072
        %1076 = vset.pattern.permute.xlu0 0
        %1077 = vperm.xlu0 %1076, %v1019
        %v1078 = vpop.permute.xlu0 %1077
        %1081 = vset.pattern.permute.xlu0 0
        %1082 = vperm.xlu0 %1081, %v1020
        %v1083 = vpop.permute.xlu0 %1082
        %1086 = vset.pattern.permute.xlu0 0
        %1087 = vperm.xlu0 %1086, %v1021
        %v1088 = vpop.permute.xlu0 %1087
        %1091 = vset.pattern.permute.xlu0 0
        %1092 = vperm.xlu0 %1091, %v1022
        %v1093 = vpop.permute.xlu0 %1092
        %1096 = vset.pattern.permute.xlu0 0
        %1097 = vperm.xlu0 %1096, %v1023
        %v1098 = vpop.permute.xlu0 %1097
        %1101 = vset.pattern.permute.xlu0 0
        %1102 = vperm.xlu0 %1101, %v1024
        %v1103 = vpop.permute.xlu0 %1102
        %1105 = vmatprep.subr.mxu0 0.0
        %1106 = vmatpush1.msra.mxu0 %v476
        %1107 = vmatprep.subr.mxu0 0.0
        %1108 = vmatpush1.msra.mxu0 %v477
        %1109 = vmatprep.subr.mxu0 0.0
        %1110 = vmatpush1.msra.mxu0 %v478
        %1111 = vmatprep.subr.mxu0 0.0
        %1112 = vmatpush1.msra.mxu0 %v479
        %1113 = vmatprep.subr.mxu0 0.0
        %1114 = vmatpush1.msra.mxu0 %v480
        %1115 = vmatprep.subr.mxu0 0.0
        %1116 = vmatpush1.msra.mxu0 %v481
        %1117 = vmatprep.subr.mxu0 0.0
        %1118 = vmatpush1.msra.mxu0 %v482
        %1119 = vmatprep.subr.mxu0 0.0
        %1120 = vmatpush1.msra.mxu0 %v483
        %1121 = vmatprep.subr.mxu0 0.0
        %1122 = vmatpush1.msra.mxu0 %v484
        %1123 = vmatprep.subr.mxu0 0.0
        %1124 = vmatpush1.msra.mxu0 %v485
        %1125 = vmatprep.subr.mxu0 0.0
        %1126 = vmatpush1.msra.mxu0 %v486
        %1127 = vmatprep.subr.mxu0 0.0
        %1128 = vmatpush1.msra.mxu0 %v487
        %1129 = vmatprep.subr.mxu0 0.0
        %1130 = vmatpush1.msra.mxu0 %v488
        %1131 = vmatprep.subr.mxu0 0.0
        %1132 = vmatpush1.msra.mxu0 %v489
        %1133 = vmatprep.subr.mxu0 0.0
        %1134 = vmatpush1.msra.mxu0 %v490
        %1135 = vmatprep.subr.mxu0 0.0
        %1136 = vmatpush1.msra.mxu0 %v491
        %1137 = vmatprep.subr.mxu0 0.0
        %1138 = vmatpush1.msra.mxu0 0.0
        %1139 = vmatprep.subr.mxu0 0.0
        %1140 = vmatpush1.msra.mxu0 0.0
        %1141 = vmatprep.subr.mxu0 0.0
        %1142 = vmatpush1.msra.mxu0 0.0
        %1143 = vmatprep.subr.mxu0 0.0
        %1144 = vmatpush1.msra.mxu0 0.0
        %1145 = vmatprep.subr.mxu0 0.0
        %1146 = vmatpush1.msra.mxu0 0.0
        %1147 = vmatprep.subr.mxu0 0.0
        %1148 = vmatpush1.msra.mxu0 0.0
        %1149 = vmatprep.subr.mxu0 0.0
        %1150 = vmatpush1.msra.mxu0 0.0
        %1151 = vmatprep.subr.mxu0 0.0
        %1152 = vmatpush1.msra.mxu0 0.0
        %1153 = vmatprep.subr.mxu0 0.0
        %1154 = vmatpush1.msra.mxu0 0.0
        %1155 = vmatprep.subr.mxu0 0.0
        %1156 = vmatpush1.msra.mxu0 0.0
        %1157 = vmatprep.subr.mxu0 0.0
        %1158 = vmatpush1.msra.mxu0 0.0
        %1159 = vmatprep.subr.mxu0 0.0
        %1160 = vmatpush1.msra.mxu0 0.0
        %1161 = vmatprep.subr.mxu0 0.0
        %1162 = vmatpush1.msra.mxu0 0.0
        %1163 = vmatprep.subr.mxu0 0.0
        %1164 = vmatpush1.msra.mxu0 0.0
        %1165 = vmatprep.subr.mxu0 0.0
        %1166 = vmatpush1.msra.mxu0 0.0
        %1167 = vmatprep.subr.mxu0 0.0
        %1168 = vmatpush1.msra.mxu0 0.0
        %1169 = vmatprep.mubr.f32.mxu0 0.0
        %1170 = vmatmul.mubr.f32.gmra.mrb[0].mxu0 %v993
        %v1171 = vpop.f32.mrb[0].mxu0
        %v1172 = vadd.f32 %v1028, %v1171
        %v1173 = vpop.f32.mrb[0].mxu0
        %1174 = vmatprep.mubr.f32.mxu0 0.0
        %1175 = vmatmul.mubr.f32.gmra.mrb[0].mxu0 %v994
        %v1176 = vpop.f32.mrb[0].mxu0
        %v1177 = vadd.f32 %v1033, %v1176
        %v1178 = vpop.f32.mrb[0].mxu0
        %1179 = vmatprep.mubr.f32.mxu0 0.0
        %1180 = vmatmul.mubr.f32.gmra.mrb[0].mxu0 %v995
        %v1181 = vpop.f32.mrb[0].mxu0
        %v1182 = vadd.f32 %v1038, %v1181
        %v1183 = vpop.f32.mrb[0].mxu0
        %1184 = vmatprep.mubr.f32.mxu0 0.0
        %1185 = vmatmul.mubr.f32.gmra.mrb[0].mxu0 %v996
        %v1186 = vpop.f32.mrb[0].mxu0
        %v1187 = vadd.f32 %v1043, %v1186
        %v1188 = vpop.f32.mrb[0].mxu0
        %1189 = vmatprep.mubr.f32.mxu0 0.0
        %1190 = vmatmul.mubr.f32.gmra.mrb[0].mxu0 %v997
        %v1191 = vpop.f32.mrb[0].mxu0
        %v1192 = vadd.f32 %v1048, %v1191
        %v1193 = vpop.f32.mrb[0].mxu0
        %1194 = vmatprep.mubr.f32.mxu0 0.0
        %1195 = vmatmul.mubr.f32.gmra.mrb[0].mxu0 %v998
        %v1196 = vpop.f32.mrb[0].mxu0
        %v1197 = vadd.f32 %v1053, %v1196
        %v1198 = vpop.f32.mrb[0].mxu0
        %1199 = vmatprep.mubr.f32.mxu0 0.0
        %1200 = vmatmul.mubr.f32.gmra.mrb[0].mxu0 %v999
        %v1201 = vpop.f32.mrb[0].mxu0
        %v1202 = vadd.f32 %v1058, %v1201
        %v1203 = vpop.f32.mrb[0].mxu0
        %1204 = vmatprep.mubr.f32.mxu0 0.0
        %1205 = vmatmul.mubr.f32.gmra.mrb[0].mxu0 %v1000
        %v1206 = vpop.f32.mrb[0].mxu0
        %v1207 = vadd.f32 %v1063, %v1206
        %v1208 = vpop.f32.mrb[0].mxu0
        %1209 = vmatprep.mubr.f32.mxu0 0.0
        %1210 = vmatmul.mubr.f32.gmra.mrb[0].mxu0 %v1001
        %v1211 = vpop.f32.mrb[0].mxu0
        %v1212 = vadd.f32 %v1068, %v1211
        %v1213 = vpop.f32.mrb[0].mxu0
        %1214 = vmatprep.mubr.f32.mxu0 0.0
        %1215 = vmatmul.mubr.f32.gmra.mrb[0].mxu0 %v1002
        %v1216 = vpop.f32.mrb[0].mxu0
        %v1217 = vadd.f32 %v1073, %v1216
        %v1218 = vpop.f32.mrb[0].mxu0
        %1219 = vmatprep.mubr.f32.mxu0 0.0
        %1220 = vmatmul.mubr.f32.gmra.mrb[0].mxu0 %v1003
        %v1221 = vpop.f32.mrb[0].mxu0
        %v1222 = vadd.f32 %v1078, %v1221
        %v1223 = vpop.f32.mrb[0].mxu0
        %1224 = vmatprep.mubr.f32.mxu0 0.0
        %1225 = vmatmul.mubr.f32.gmra.mrb[0].mxu0 %v1004
        %v1226 = vpop.f32.mrb[0].mxu0
        %v1227 = vadd.f32 %v1083, %v1226
        %v1228 = vpop.f32.mrb[0].mxu0
        %1229 = vmatprep.mubr.f32.mxu0 0.0
        %1230 = vmatmul.mubr.f32.gmra.mrb[0].mxu0 %v1005
        %v1231 = vpop.f32.mrb[0].mxu0
        %v1232 = vadd.f32 %v1088, %v1231
        %v1233 = vpop.f32.mrb[0].mxu0
        %1234 = vmatprep.mubr.f32.mxu0 0.0
        %1235 = vmatmul.mubr.f32.gmra.mrb[0].mxu0 %v1006
        %v1236 = vpop.f32.mrb[0].mxu0
        %v1237 = vadd.f32 %v1093, %v1236
        %v1238 = vpop.f32.mrb[0].mxu0
        %1239 = vmatprep.mubr.f32.mxu0 0.0
        %1240 = vmatmul.mubr.f32.gmra.mrb[0].mxu0 %v1007
        %v1241 = vpop.f32.mrb[0].mxu0
        %v1242 = vadd.f32 %v1098, %v1241
        %v1243 = vpop.f32.mrb[0].mxu0
        %1244 = vmatprep.mubr.f32.mxu0 0.0
        %1245 = vmatmul.mubr.f32.gmra.mrb[0].mxu0 %v1008
        %v1246 = vpop.f32.mrb[0].mxu0
        %v1247 = vadd.f32 %v1103, %v1246
        %v1248 = vpop.f32.mrb[0].mxu0
        %1249 = vdwg.mxu0
        %v1250 = vld [vmem:[#allocation2] sm:$0xff]
        %v1251 = vld [vmem:[#allocation2 + $0x8] sm:$0xff]
        %v1252 = vld [vmem:[#allocation2 + $0x10] sm:$0xff]
        %v1253 = vld [vmem:[#allocation2 + $0x18] sm:$0xff]
        %v1254 = vld [vmem:[#allocation2 + $0x80] sm:$0xff]
        %v1255 = vld [vmem:[#allocation2 + $0x88] sm:$0xff]
        %v1256 = vld [vmem:[#allocation2 + $0x90] sm:$0xff]
        %v1257 = vld [vmem:[#allocation2 + $0x98] sm:$0xff]
        %1258 = vxpose.xlu0.b32.start [1/16] %v1172, 128
        %1259 = vxpose.xlu0.b32.cont [2/16] %v1177, 128
        %1260 = vxpose.xlu0.b32.cont [3/16] %v1182, 128
        %1261 = vxpose.xlu0.b32.cont [4/16] %v1187, 128
        %1262 = vxpose.xlu0.b32.cont [5/16] 0.0, 128
        %1263 = vxpose.xlu0.b32.cont [6/16] 0.0, 128
        %1264 = vxpose.xlu0.b32.cont [7/16] 0.0, 128
        %1265 = vxpose.xlu0.b32.cont [8/16] 0.0, 128
        %1266 = vxpose.xlu0.b32.cont [9/16] 0.0, 128
        %1267 = vxpose.xlu0.b32.cont [10/16] 0.0, 128
        %1268 = vxpose.xlu0.b32.cont [11/16] 0.0, 128
        %1269 = vxpose.xlu0.b32.cont [12/16] 0.0, 128
        %1270 = vxpose.xlu0.b32.cont [13/16] 0.0, 128
        %1271 = vxpose.xlu0.b32.cont [14/16] 0.0, 128
        %1272 = vxpose.xlu0.b32.cont [15/16] 0.0, 128
        %1273 = vxpose.xlu0.b32.end [16/16] 0.0, 128
        %v1274 = vpop.trf.xlu0
        %v1275 = vpop.trf.xlu0
        %v1276 = vpop.trf.xlu0
        %v1277 = vpop.trf.xlu0
        %v1278 = vpop.trf.xlu0
        %v1279 = vpop.trf.xlu0
        %v1280 = vpop.trf.xlu0
        %v1281 = vpop.trf.xlu0
        %v1282 = vpop.trf.xlu0
        %v1283 = vpop.trf.xlu0
        %v1284 = vpop.trf.xlu0
        %v1285 = vpop.trf.xlu0
        %v1286 = vpop.trf.xlu0
        %v1287 = vpop.trf.xlu0
        %v1288 = vpop.trf.xlu0
        %v1289 = vpop.trf.xlu0
        %vm1290 = vcmask 261120
        %v1292 = vsel %vm1290, %v1274, 0
        %v1295 = vsel %vm1290, %v1275, 0
        %v1298 = vsel %vm1290, %v1276, 0
        %v1301 = vsel %vm1290, %v1277, 0
        %v1304 = vsel %vm1290, %v1278, 0
        %v1307 = vsel %vm1290, %v1279, 0
        %v1310 = vsel %vm1290, %v1280, 0
        %v1313 = vsel %vm1290, %v1281, 0
        %v1316 = vsel %vm1290, %v1282, 0
        %v1319 = vsel %vm1290, %v1283, 0
        %v1322 = vsel %vm1290, %v1284, 0
        %v1325 = vsel %vm1290, %v1285, 0
        %v1328 = vsel %vm1290, %v1286, 0
        %v1331 = vsel %vm1290, %v1287, 0
        %v1334 = vsel %vm1290, %v1288, 0
        %v1337 = vsel %vm1290, %v1289, 0
        %1339 = vmatprep.subr.mxu0 0.0
        %1340 = vmatpush1.msra.mxu0 %v1250
        %1341 = vmatprep.subr.mxu0 0.0
        %1342 = vmatpush1.msra.mxu0 %v1251
        %1343 = vmatprep.subr.mxu0 0.0
        %1344 = vmatpush1.msra.mxu0 %v1252
        %1345 = vmatprep.subr.mxu0 0.0
        %1346 = vmatpush1.msra.mxu0 %v1253
        %1347 = vmatprep.subr.mxu0 0.0
        %1348 = vmatpush1.msra.mxu0 0.0
        %1349 = vmatprep.subr.mxu0 0.0
        %1350 = vmatpush1.msra.mxu0 0.0
        %1351 = vmatprep.subr.mxu0 0.0
        %1352 = vmatpush1.msra.mxu0 0.0
        %1353 = vmatprep.subr.mxu0 0.0
        %1354 = vmatpush1.msra.mxu0 0.0
        %1355 = vmatprep.subr.mxu0 0.0
        %1356 = vmatpush1.msra.mxu0 0.0
        %1357 = vmatprep.subr.mxu0 0.0
        %1358 = vmatpush1.msra.mxu0 0.0
        %1359 = vmatprep.subr.mxu0 0.0
        %1360 = vmatpush1.msra.mxu0 0.0
        %1361 = vmatprep.subr.mxu0 0.0
        %1362 = vmatpush1.msra.mxu0 0.0
        %1363 = vmatprep.subr.mxu0 0.0
        %1364 = vmatpush1.msra.mxu0 0.0
        %1365 = vmatprep.subr.mxu0 0.0
        %1366 = vmatpush1.msra.mxu0 0.0
        %1367 = vmatprep.subr.mxu0 0.0
        %1368 = vmatpush1.msra.mxu0 0.0
        %1369 = vmatprep.subr.mxu0 0.0
        %1370 = vmatpush1.msra.mxu0 0.0
        %1371 = vmatprep.subr.mxu0 0.0
        %1372 = vmatpush1.msra.mxu0 0.0
        %1373 = vmatprep.subr.mxu0 0.0
        %1374 = vmatpush1.msra.mxu0 0.0
        %1375 = vmatprep.subr.mxu0 0.0
        %1376 = vmatpush1.msra.mxu0 0.0
        %1377 = vmatprep.subr.mxu0 0.0
        %1378 = vmatpush1.msra.mxu0 0.0
        %1379 = vmatprep.subr.mxu0 0.0
        %1380 = vmatpush1.msra.mxu0 0.0
        %1381 = vmatprep.subr.mxu0 0.0
        %1382 = vmatpush1.msra.mxu0 0.0
        %1383 = vmatprep.subr.mxu0 0.0
        %1384 = vmatpush1.msra.mxu0 0.0
        %1385 = vmatprep.subr.mxu0 0.0
        %1386 = vmatpush1.msra.mxu0 0.0
        %1387 = vmatprep.subr.mxu0 0.0
        %1388 = vmatpush1.msra.mxu0 0.0
        %1389 = vmatprep.subr.mxu0 0.0
        %1390 = vmatpush1.msra.mxu0 0.0
        %1391 = vmatprep.subr.mxu0 0.0
        %1392 = vmatpush1.msra.mxu0 0.0
        %1393 = vmatprep.subr.mxu0 0.0
        %1394 = vmatpush1.msra.mxu0 0.0
        %1395 = vmatprep.subr.mxu0 0.0
        %1396 = vmatpush1.msra.mxu0 0.0
        %1397 = vmatprep.subr.mxu0 0.0
        %1398 = vmatpush1.msra.mxu0 0.0
        %1399 = vmatprep.subr.mxu0 0.0
        %1400 = vmatpush1.msra.mxu0 0.0
        %1401 = vmatprep.subr.mxu0 0.0
        %1402 = vmatpush1.msra.mxu0 0.0
        %1403 = vmatprep.mubr.f32.mxu0 0.0
        %1404 = vmatmul.mubr.f32.gmra.mrb[0].mxu0 %v1292
        %v1405 = vpop.f32.mrb[0].mxu0
        %v1406 = vadd.f32 0.0, %v1405
        %v1407 = vpop.f32.mrb[0].mxu0
        %1408 = vmatprep.mubr.f32.mxu0 0.0
        %1409 = vmatmul.mubr.f32.gmra.mrb[0].mxu0 %v1295
        %v1410 = vpop.f32.mrb[0].mxu0
        %v1411 = vadd.f32 0.0, %v1410
        %v1412 = vpop.f32.mrb[0].mxu0
        %1413 = vmatprep.mubr.f32.mxu0 0.0
        %1414 = vmatmul.mubr.f32.gmra.mrb[0].mxu0 %v1298
        %v1415 = vpop.f32.mrb[0].mxu0
        %v1416 = vadd.f32 0.0, %v1415
        %v1417 = vpop.f32.mrb[0].mxu0
        %1418 = vmatprep.mubr.f32.mxu0 0.0
        %1419 = vmatmul.mubr.f32.gmra.mrb[0].mxu0 %v1301
        %v1420 = vpop.f32.mrb[0].mxu0
        %v1421 = vadd.f32 0.0, %v1420
        %v1422 = vpop.f32.mrb[0].mxu0
        %1423 = vmatprep.mubr.f32.mxu0 0.0
        %1424 = vmatmul.mubr.f32.gmra.mrb[0].mxu0 %v1304
        %v1425 = vpop.f32.mrb[0].mxu0
        %v1426 = vadd.f32 0.0, %v1425
        %v1427 = vpop.f32.mrb[0].mxu0
        %1428 = vmatprep.mubr.f32.mxu0 0.0
        %1429 = vmatmul.mubr.f32.gmra.mrb[0].mxu0 %v1307
        %v1430 = vpop.f32.mrb[0].mxu0
        %v1431 = vadd.f32 0.0, %v1430
        %v1432 = vpop.f32.mrb[0].mxu0
        %1433 = vmatprep.mubr.f32.mxu0 0.0
        %1434 = vmatmul.mubr.f32.gmra.mrb[0].mxu0 %v1310
        %v1435 = vpop.f32.mrb[0].mxu0
        %v1436 = vadd.f32 0.0, %v1435
        %v1437 = vpop.f32.mrb[0].mxu0
        %1438 = vmatprep.mubr.f32.mxu0 0.0
        %1439 = vmatmul.mubr.f32.gmra.mrb[0].mxu0 %v1313
        %v1440 = vpop.f32.mrb[0].mxu0
        %v1441 = vadd.f32 0.0, %v1440
        %v1442 = vpop.f32.mrb[0].mxu0
        %1443 = vmatprep.mubr.f32.mxu0 0.0
        %1444 = vmatmul.mubr.f32.gmra.mrb[0].mxu0 %v1316
        %v1445 = vpop.f32.mrb[0].mxu0
        %v1446 = vadd.f32 0.0, %v1445
        %v1447 = vpop.f32.mrb[0].mxu0
        %1448 = vmatprep.mubr.f32.mxu0 0.0
        %1449 = vmatmul.mubr.f32.gmra.mrb[0].mxu0 %v1319
        %v1450 = vpop.f32.mrb[0].mxu0
        %v1451 = vadd.f32 0.0, %v1450
        %v1452 = vpop.f32.mrb[0].mxu0
        %1453 = vmatprep.mubr.f32.mxu0 0.0
        %1454 = vmatmul.mubr.f32.gmra.mrb[0].mxu0 %v1322
        %v1455 = vpop.f32.mrb[0].mxu0
        %v1456 = vadd.f32 0.0, %v1455
        %v1457 = vpop.f32.mrb[0].mxu0
        %1458 = vmatprep.mubr.f32.mxu0 0.0
        %1459 = vmatmul.mubr.f32.gmra.mrb[0].mxu0 %v1325
        %v1460 = vpop.f32.mrb[0].mxu0
        %v1461 = vadd.f32 0.0, %v1460
        %v1462 = vpop.f32.mrb[0].mxu0
        %1463 = vmatprep.mubr.f32.mxu0 0.0
        %1464 = vmatmul.mubr.f32.gmra.mrb[0].mxu0 %v1328
        %v1465 = vpop.f32.mrb[0].mxu0
        %v1466 = vadd.f32 0.0, %v1465
        %v1467 = vpop.f32.mrb[0].mxu0
        %1468 = vmatprep.mubr.f32.mxu0 0.0
        %1469 = vmatmul.mubr.f32.gmra.mrb[0].mxu0 %v1331
        %v1470 = vpop.f32.mrb[0].mxu0
        %v1471 = vadd.f32 0.0, %v1470
        %v1472 = vpop.f32.mrb[0].mxu0
        %1473 = vmatprep.mubr.f32.mxu0 0.0
        %1474 = vmatmul.mubr.f32.gmra.mrb[0].mxu0 %v1334
        %v1475 = vpop.f32.mrb[0].mxu0
        %v1476 = vadd.f32 0.0, %v1475
        %v1477 = vpop.f32.mrb[0].mxu0
        %1478 = vmatprep.mubr.f32.mxu0 0.0
        %1479 = vmatmul.mubr.f32.gmra.mrb[0].mxu0 %v1337
        %v1480 = vpop.f32.mrb[0].mxu0
        %v1481 = vadd.f32 0.0, %v1480
        %v1482 = vpop.f32.mrb[0].mxu0
        %1483 = vdwg.mxu0
        %1484 = vmax.xlane.f32.xlu0 %v1406
        %v1485 = vpop.xlane.xlu0 %1484
        %1486 = vmax.xlane.f32.xlu0 %v1411
        %v1487 = vpop.xlane.xlu0 %1486
        %1488 = vmax.xlane.f32.xlu0 %v1416
        %v1489 = vpop.xlane.xlu0 %1488
        %1490 = vmax.xlane.f32.xlu0 %v1421
        %v1491 = vpop.xlane.xlu0 %1490
        %1492 = vmax.xlane.f32.xlu0 %v1426
        %v1493 = vpop.xlane.xlu0 %1492
        %1494 = vmax.xlane.f32.xlu0 %v1431
        %v1495 = vpop.xlane.xlu0 %1494
        %1496 = vmax.xlane.f32.xlu0 %v1436
        %v1497 = vpop.xlane.xlu0 %1496
        %1498 = vmax.xlane.f32.xlu0 %v1441
        %v1499 = vpop.xlane.xlu0 %1498
        %1500 = vmax.xlane.f32.xlu0 %v1446
        %v1501 = vpop.xlane.xlu0 %1500
        %1502 = vmax.xlane.f32.xlu0 %v1451
        %v1503 = vpop.xlane.xlu0 %1502
        %1504 = vmax.xlane.f32.xlu0 %v1456
        %v1505 = vpop.xlane.xlu0 %1504
        %1506 = vmax.xlane.f32.xlu0 %v1461
        %v1507 = vpop.xlane.xlu0 %1506
        %1508 = vmax.xlane.f32.xlu0 %v1466
        %v1509 = vpop.xlane.xlu0 %1508
        %1510 = vmax.xlane.f32.xlu0 %v1471
        %v1511 = vpop.xlane.xlu0 %1510
        %1512 = vmax.xlane.f32.xlu0 %v1476
        %v1513 = vpop.xlane.xlu0 %1512
        %1514 = vmax.xlane.f32.xlu0 %v1481
        %v1515 = vpop.xlane.xlu0 %1514
        %v1516 = vsub.f32 %v1406, %v1485
        %v1517 = vsub.f32 %v1411, %v1487
        %v1518 = vsub.f32 %v1416, %v1489
        %v1519 = vsub.f32 %v1421, %v1491
        %v1520 = vsub.f32 %v1426, %v1493
        %v1521 = vsub.f32 %v1431, %v1495
        %v1522 = vsub.f32 %v1436, %v1497
        %v1523 = vsub.f32 %v1441, %v1499
        %v1524 = vsub.f32 %v1446, %v1501
        %v1525 = vsub.f32 %v1451, %v1503
        %v1526 = vsub.f32 %v1456, %v1505
        %v1527 = vsub.f32 %v1461, %v1507
        %v1528 = vsub.f32 %v1466, %v1509
        %v1529 = vsub.f32 %v1471, %v1511
        %v1530 = vsub.f32 %v1476, %v1513
        %v1531 = vsub.f32 %v1481, %v1515
        %v1532 = vmul.f32 %v1516, 1.442695
        %v1533 = vpow.pop %v1532
        %v1534 = vmul.f32 %v1517, 1.442695
        %v1535 = vpow.pop %v1534
        %v1536 = vmul.f32 %v1518, 1.442695
        %v1537 = vpow.pop %v1536
        %v1538 = vmul.f32 %v1519, 1.442695
        %v1539 = vpow.pop %v1538
        %v1540 = vmul.f32 %v1520, 1.442695
        %v1541 = vpow.pop %v1540
        %v1542 = vmul.f32 %v1521, 1.442695
        %v1543 = vpow.pop %v1542
        %v1544 = vmul.f32 %v1522, 1.442695
        %v1545 = vpow.pop %v1544
        %v1546 = vmul.f32 %v1523, 1.442695
        %v1547 = vpow.pop %v1546
        %v1548 = vmul.f32 %v1524, 1.442695
        %v1549 = vpow.pop %v1548
        %v1550 = vmul.f32 %v1525, 1.442695
        %v1551 = vpow.pop %v1550
        %v1552 = vmul.f32 %v1526, 1.442695
        %v1553 = vpow.pop %v1552
        %v1554 = vmul.f32 %v1527, 1.442695
        %v1555 = vpow.pop %v1554
        %v1556 = vmul.f32 %v1528, 1.442695
        %v1557 = vpow.pop %v1556
        %v1558 = vmul.f32 %v1529, 1.442695
        %v1559 = vpow.pop %v1558
        %v1560 = vmul.f32 %v1530, 1.442695
        %v1561 = vpow.pop %v1560
        %v1562 = vmul.f32 %v1531, 1.442695
        %v1563 = vpow.pop %v1562
        %1564 = vmatprep.subr.mxu0 0.0
        %1565 = vmatpush1.xpose.msra.mxu0 %v1533
        %1566 = vmatprep.subr.mxu0 0.0
        %1567 = vmatpush1.xpose.msra.mxu0 %v1535
        %1568 = vmatprep.subr.mxu0 0.0
        %1569 = vmatpush1.xpose.msra.mxu0 %v1537
        %1570 = vmatprep.subr.mxu0 0.0
        %1571 = vmatpush1.xpose.msra.mxu0 %v1539
        %1572 = vmatprep.subr.mxu0 0.0
        %1573 = vmatpush1.xpose.msra.mxu0 %v1541
        %1574 = vmatprep.subr.mxu0 0.0
        %1575 = vmatpush1.xpose.msra.mxu0 %v1543
        %1576 = vmatprep.subr.mxu0 0.0
        %1577 = vmatpush1.xpose.msra.mxu0 %v1545
        %1578 = vmatprep.subr.mxu0 0.0
        %1579 = vmatpush1.xpose.msra.mxu0 %v1547
        %1580 = vmatprep.subr.mxu0 0.0
        %1581 = vmatpush1.xpose.msra.mxu0 %v1549
        %1582 = vmatprep.subr.mxu0 0.0
        %1583 = vmatpush1.xpose.msra.mxu0 %v1551
        %1584 = vmatprep.subr.mxu0 0.0
        %1585 = vmatpush1.xpose.msra.mxu0 %v1553
        %1586 = vmatprep.subr.mxu0 0.0
        %1587 = vmatpush1.xpose.msra.mxu0 %v1555
        %1588 = vmatprep.subr.mxu0 0.0
        %1589 = vmatpush1.xpose.msra.mxu0 %v1557
        %1590 = vmatprep.subr.mxu0 0.0
        %1591 = vmatpush1.xpose.msra.mxu0 %v1559
        %1592 = vmatprep.subr.mxu0 0.0
        %1593 = vmatpush1.xpose.msra.mxu0 %v1561
        %1594 = vmatprep.subr.mxu0 0.0
        %1595 = vmatpush1.xpose.msra.mxu0 %v1563
        %1596 = vmatprep.subr.mxu0 0.0
        %1597 = vmatpush1.xpose.msra.mxu0 0.0
        %1598 = vmatprep.subr.mxu0 0.0
        %1599 = vmatpush1.xpose.msra.mxu0 0.0
        %1600 = vmatprep.subr.mxu0 0.0
        %1601 = vmatpush1.xpose.msra.mxu0 0.0
        %1602 = vmatprep.subr.mxu0 0.0
        %1603 = vmatpush1.xpose.msra.mxu0 0.0
        %1604 = vmatprep.subr.mxu0 0.0
        %1605 = vmatpush1.xpose.msra.mxu0 0.0
        %1606 = vmatprep.subr.mxu0 0.0
        %1607 = vmatpush1.xpose.msra.mxu0 0.0
        %1608 = vmatprep.subr.mxu0 0.0
        %1609 = vmatpush1.xpose.msra.mxu0 0.0
        %1610 = vmatprep.subr.mxu0 0.0
        %1611 = vmatpush1.xpose.msra.mxu0 0.0
        %1612 = vmatprep.subr.mxu0 0.0
        %1613 = vmatpush1.xpose.msra.mxu0 0.0
        %1614 = vmatprep.subr.mxu0 0.0
        %1615 = vmatpush1.xpose.msra.mxu0 0.0
        %1616 = vmatprep.subr.mxu0 0.0
        %1617 = vmatpush1.xpose.msra.mxu0 0.0
        %1618 = vmatprep.subr.mxu0 0.0
        %1619 = vmatpush1.xpose.msra.mxu0 0.0
        %1620 = vmatprep.subr.mxu0 0.0
        %1621 = vmatpush1.xpose.msra.mxu0 0.0
        %1622 = vmatprep.subr.mxu0 0.0
        %1623 = vmatpush1.xpose.msra.mxu0 0.0
        %1624 = vmatprep.subr.mxu0 0.0
        %1625 = vmatpush1.xpose.msra.mxu0 0.0
        %1626 = vmatprep.subr.mxu0 0.0
        %1627 = vmatpush1.xpose.msra.mxu0 0.0
        %1628 = vmatprep.mubr.f32.mxu0 0.0
        %1629 = vmatmul.mubr.f32.gmra.mrb[0].mxu0 1.0
        %v1630 = vpop.f32.mrb[0].mxu0
        %v1631 = vadd.f32 0.0, %v1630
        %v1632 = vpop.f32.mrb[0].mxu0
        %1633 = vdwg.mxu0
        %v1634 = vrcp.pop %v1631
        %1635 = vmatprep.subr.mxu0 0.0
        %1636 = vmatpush1.xpose.msra.mxu0 %v1533
        %1637 = vmatprep.subr.mxu0 0.0
        %1638 = vmatpush1.xpose.msra.mxu0 %v1535
        %1639 = vmatprep.subr.mxu0 0.0
        %1640 = vmatpush1.xpose.msra.mxu0 %v1537
        %1641 = vmatprep.subr.mxu0 0.0
        %1642 = vmatpush1.xpose.msra.mxu0 %v1539
        %1643 = vmatprep.subr.mxu0 0.0
        %1644 = vmatpush1.xpose.msra.mxu0 %v1541
        %1645 = vmatprep.subr.mxu0 0.0
        %1646 = vmatpush1.xpose.msra.mxu0 %v1543
        %1647 = vmatprep.subr.mxu0 0.0
        %1648 = vmatpush1.xpose.msra.mxu0 %v1545
        %1649 = vmatprep.subr.mxu0 0.0
        %1650 = vmatpush1.xpose.msra.mxu0 %v1547
        %1651 = vmatprep.subr.mxu0 0.0
        %1652 = vmatpush1.xpose.msra.mxu0 %v1549
        %1653 = vmatprep.subr.mxu0 0.0
        %1654 = vmatpush1.xpose.msra.mxu0 %v1551
        %1655 = vmatprep.subr.mxu0 0.0
        %1656 = vmatpush1.xpose.msra.mxu0 %v1553
        %1657 = vmatprep.subr.mxu0 0.0
        %1658 = vmatpush1.xpose.msra.mxu0 %v1555
        %1659 = vmatprep.subr.mxu0 0.0
        %1660 = vmatpush1.xpose.msra.mxu0 %v1557
        %1661 = vmatprep.subr.mxu0 0.0
        %1662 = vmatpush1.xpose.msra.mxu0 %v1559
        %1663 = vmatprep.subr.mxu0 0.0
        %1664 = vmatpush1.xpose.msra.mxu0 %v1561
        %1665 = vmatprep.subr.mxu0 0.0
        %1666 = vmatpush1.xpose.msra.mxu0 %v1563
        %1667 = vmatprep.subr.mxu0 0.0
        %1668 = vmatpush1.xpose.msra.mxu0 0.0
        %1669 = vmatprep.subr.mxu0 0.0
        %1670 = vmatpush1.xpose.msra.mxu0 0.0
        %1671 = vmatprep.subr.mxu0 0.0
        %1672 = vmatpush1.xpose.msra.mxu0 0.0
        %1673 = vmatprep.subr.mxu0 0.0
        %1674 = vmatpush1.xpose.msra.mxu0 0.0
        %1675 = vmatprep.subr.mxu0 0.0
        %1676 = vmatpush1.xpose.msra.mxu0 0.0
        %1677 = vmatprep.subr.mxu0 0.0
        %1678 = vmatpush1.xpose.msra.mxu0 0.0
        %1679 = vmatprep.subr.mxu0 0.0
        %1680 = vmatpush1.xpose.msra.mxu0 0.0
        %1681 = vmatprep.subr.mxu0 0.0
        %1682 = vmatpush1.xpose.msra.mxu0 0.0
        %1683 = vmatprep.subr.mxu0 0.0
        %1684 = vmatpush1.xpose.msra.mxu0 0.0
        %1685 = vmatprep.subr.mxu0 0.0
        %1686 = vmatpush1.xpose.msra.mxu0 0.0
        %1687 = vmatprep.subr.mxu0 0.0
        %1688 = vmatpush1.xpose.msra.mxu0 0.0
        %1689 = vmatprep.subr.mxu0 0.0
        %1690 = vmatpush1.xpose.msra.mxu0 0.0
        %1691 = vmatprep.subr.mxu0 0.0
        %1692 = vmatpush1.xpose.msra.mxu0 0.0
        %1693 = vmatprep.subr.mxu0 0.0
        %1694 = vmatpush1.xpose.msra.mxu0 0.0
        %1695 = vmatprep.subr.mxu0 0.0
        %1696 = vmatpush1.xpose.msra.mxu0 0.0
        %1697 = vmatprep.subr.mxu0 0.0
        %1698 = vmatpush1.xpose.msra.mxu0 0.0
        %1699 = vmatprep.mubr.f32.mxu0 0.0
        %1700 = vmatmul.mubr.f32.gmra.mrb[0].mxu0 %v1254
        %v1701 = vpop.f32.mrb[0].mxu0
        %v1702 = vadd.f32 0.0, %v1701
        %v1703 = vpop.f32.mrb[0].mxu0
        %1704 = vmatprep.mubr.f32.mxu0 0.0
        %1705 = vmatmul.mubr.f32.gmra.mrb[0].mxu0 %v1255
        %v1706 = vpop.f32.mrb[0].mxu0
        %v1707 = vadd.f32 0.0, %v1706
        %v1708 = vpop.f32.mrb[0].mxu0
        %1709 = vmatprep.mubr.f32.mxu0 0.0
        %1710 = vmatmul.mubr.f32.gmra.mrb[0].mxu0 %v1256
        %v1711 = vpop.f32.mrb[0].mxu0
        %v1712 = vadd.f32 0.0, %v1711
        %v1713 = vpop.f32.mrb[0].mxu0
        %1714 = vmatprep.mubr.f32.mxu0 0.0
        %1715 = vmatmul.mubr.f32.gmra.mrb[0].mxu0 %v1257
        %v1716 = vpop.f32.mrb[0].mxu0
        %v1717 = vadd.f32 0.0, %v1716
        %v1718 = vpop.f32.mrb[0].mxu0
        %1719 = vdwg.mxu0
        %v1720 = vlaneseq
        %v1721 = vshrl.u32 %v1720, 7
        %v1722 = vsub.s32 0, %v1721
        %v1723 = vrot.slane %v1634, %v1722
        %v1724 = vmul.f32 %v1702, %v1723
        %v1725 = vmul.f32 %v1707, %v1723
        %v1726 = vmul.f32 %v1712, %v1723
        %v1727 = vmul.f32 %v1717, %v1723
        %1728 = vst [vmem:[#allocation3] sm:$0xff] %v1724
        %1729 = vst [vmem:[#allocation3 + $0x8] sm:$0xff] %v1725
        %1730 = vst [vmem:[#allocation3 + $0x10] sm:$0xff] %v1726
        %1731 = vst [vmem:[#allocation3 + $0x18] sm:$0xff] %v1727
        %v1732 = vld [vmem:[#allocation2 + $0x20] sm:$0xff]
        %v1733 = vld [vmem:[#allocation2 + $0x28] sm:$0xff]
        %v1734 = vld [vmem:[#allocation2 + $0x30] sm:$0xff]
        %v1735 = vld [vmem:[#allocation2 + $0x38] sm:$0xff]
        %v1736 = vld [vmem:[#allocation2 + $0xa0] sm:$0xff]
        %v1737 = vld [vmem:[#allocation2 + $0xa8] sm:$0xff]
        %v1738 = vld [vmem:[#allocation2 + $0xb0] sm:$0xff]
        %v1739 = vld [vmem:[#allocation2 + $0xb8] sm:$0xff]
        %1740 = vxpose.xlu0.b32.start [1/16] %v1192, 128
        %1741 = vxpose.xlu0.b32.cont [2/16] %v1197, 128
        %1742 = vxpose.xlu0.b32.cont [3/16] %v1202, 128
        %1743 = vxpose.xlu0.b32.cont [4/16] %v1207, 128
        %1744 = vxpose.xlu0.b32.cont [5/16] 0.0, 128
        %1745 = vxpose.xlu0.b32.cont [6/16] 0.0, 128
        %1746 = vxpose.xlu0.b32.cont [7/16] 0.0, 128
        %1747 = vxpose.xlu0.b32.cont [8/16] 0.0, 128
        %1748 = vxpose.xlu0.b32.cont [9/16] 0.0, 128
        %1749 = vxpose.xlu0.b32.cont [10/16] 0.0, 128
        %1750 = vxpose.xlu0.b32.cont [11/16] 0.0, 128
        %1751 = vxpose.xlu0.b32.cont [12/16] 0.0, 128
        %1752 = vxpose.xlu0.b32.cont [13/16] 0.0, 128
        %1753 = vxpose.xlu0.b32.cont [14/16] 0.0, 128
        %1754 = vxpose.xlu0.b32.cont [15/16] 0.0, 128
        %1755 = vxpose.xlu0.b32.end [16/16] 0.0, 128
        %v1756 = vpop.trf.xlu0
        %v1757 = vpop.trf.xlu0
        %v1758 = vpop.trf.xlu0
        %v1759 = vpop.trf.xlu0
        %v1760 = vpop.trf.xlu0
        %v1761 = vpop.trf.xlu0
        %v1762 = vpop.trf.xlu0
        %v1763 = vpop.trf.xlu0
        %v1764 = vpop.trf.xlu0
        %v1765 = vpop.trf.xlu0
        %v1766 = vpop.trf.xlu0
        %v1767 = vpop.trf.xlu0
        %v1768 = vpop.trf.xlu0
        %v1769 = vpop.trf.xlu0
        %v1770 = vpop.trf.xlu0
        %v1771 = vpop.trf.xlu0
        %v1773 = vsel %vm1290, %v1756, 0
        %v1776 = vsel %vm1290, %v1757, 0
        %v1779 = vsel %vm1290, %v1758, 0
        %v1782 = vsel %vm1290, %v1759, 0
        %v1785 = vsel %vm1290, %v1760, 0
        %v1788 = vsel %vm1290, %v1761, 0
        %v1791 = vsel %vm1290, %v1762, 0
        %v1794 = vsel %vm1290, %v1763, 0
        %v1797 = vsel %vm1290, %v1764, 0
        %v1800 = vsel %vm1290, %v1765, 0
        %v1803 = vsel %vm1290, %v1766, 0
        %v1806 = vsel %vm1290, %v1767, 0
        %v1809 = vsel %vm1290, %v1768, 0
        %v1812 = vsel %vm1290, %v1769, 0
        %v1815 = vsel %vm1290, %v1770, 0
        %v1818 = vsel %vm1290, %v1771, 0
        %1820 = vmatprep.subr.mxu0 0.0
        %1821 = vmatpush1.msra.mxu0 %v1732
        %1822 = vmatprep.subr.mxu0 0.0
        %1823 = vmatpush1.msra.mxu0 %v1733
        %1824 = vmatprep.subr.mxu0 0.0
        %1825 = vmatpush1.msra.mxu0 %v1734
        %1826 = vmatprep.subr.mxu0 0.0
        %1827 = vmatpush1.msra.mxu0 %v1735
        %1828 = vmatprep.subr.mxu0 0.0
        %1829 = vmatpush1.msra.mxu0 0.0
        %1830 = vmatprep.subr.mxu0 0.0
        %1831 = vmatpush1.msra.mxu0 0.0
        %1832 = vmatprep.subr.mxu0 0.0
        %1833 = vmatpush1.msra.mxu0 0.0
        %1834 = vmatprep.subr.mxu0 0.0
        %1835 = vmatpush1.msra.mxu0 0.0
        %1836 = vmatprep.subr.mxu0 0.0
        %1837 = vmatpush1.msra.mxu0 0.0
        %1838 = vmatprep.subr.mxu0 0.0
        %1839 = vmatpush1.msra.mxu0 0.0
        %1840 = vmatprep.subr.mxu0 0.0
        %1841 = vmatpush1.msra.mxu0 0.0
        %1842 = vmatprep.subr.mxu0 0.0
        %1843 = vmatpush1.msra.mxu0 0.0
        %1844 = vmatprep.subr.mxu0 0.0
        %1845 = vmatpush1.msra.mxu0 0.0
        %1846 = vmatprep.subr.mxu0 0.0
        %1847 = vmatpush1.msra.mxu0 0.0
        %1848 = vmatprep.subr.mxu0 0.0
        %1849 = vmatpush1.msra.mxu0 0.0
        %1850 = vmatprep.subr.mxu0 0.0
        %1851 = vmatpush1.msra.mxu0 0.0
        %1852 = vmatprep.subr.mxu0 0.0
        %1853 = vmatpush1.msra.mxu0 0.0
        %1854 = vmatprep.subr.mxu0 0.0
        %1855 = vmatpush1.msra.mxu0 0.0
        %1856 = vmatprep.subr.mxu0 0.0
        %1857 = vmatpush1.msra.mxu0 0.0
        %1858 = vmatprep.subr.mxu0 0.0
        %1859 = vmatpush1.msra.mxu0 0.0
        %1860 = vmatprep.subr.mxu0 0.0
        %1861 = vmatpush1.msra.mxu0 0.0
        %1862 = vmatprep.subr.mxu0 0.0
        %1863 = vmatpush1.msra.mxu0 0.0
        %1864 = vmatprep.subr.mxu0 0.0
        %1865 = vmatpush1.msra.mxu0 0.0
        %1866 = vmatprep.subr.mxu0 0.0
        %1867 = vmatpush1.msra.mxu0 0.0
        %1868 = vmatprep.subr.mxu0 0.0
        %1869 = vmatpush1.msra.mxu0 0.0
        %1870 = vmatprep.subr.mxu0 0.0
        %1871 = vmatpush1.msra.mxu0 0.0
        %1872 = vmatprep.subr.mxu0 0.0
        %1873 = vmatpush1.msra.mxu0 0.0
        %1874 = vmatprep.subr.mxu0 0.0
        %1875 = vmatpush1.msra.mxu0 0.0
        %1876 = vmatprep.subr.mxu0 0.0
        %1877 = vmatpush1.msra.mxu0 0.0
        %1878 = vmatprep.subr.mxu0 0.0
        %1879 = vmatpush1.msra.mxu0 0.0
        %1880 = vmatprep.subr.mxu0 0.0
        %1881 = vmatpush1.msra.mxu0 0.0
        %1882 = vmatprep.subr.mxu0 0.0
        %1883 = vmatpush1.msra.mxu0 0.0
        %1884 = vmatprep.mubr.f32.mxu0 0.0
        %1885 = vmatmul.mubr.f32.gmra.mrb[0].mxu0 %v1773
        %v1886 = vpop.f32.mrb[0].mxu0
        %v1887 = vadd.f32 0.0, %v1886
        %v1888 = vpop.f32.mrb[0].mxu0
        %1889 = vmatprep.mubr.f32.mxu0 0.0
        %1890 = vmatmul.mubr.f32.gmra.mrb[0].mxu0 %v1776
        %v1891 = vpop.f32.mrb[0].mxu0
        %v1892 = vadd.f32 0.0, %v1891
        %v1893 = vpop.f32.mrb[0].mxu0
        %1894 = vmatprep.mubr.f32.mxu0 0.0
        %1895 = vmatmul.mubr.f32.gmra.mrb[0].mxu0 %v1779
        %v1896 = vpop.f32.mrb[0].mxu0
        %v1897 = vadd.f32 0.0, %v1896
        %v1898 = vpop.f32.mrb[0].mxu0
        %1899 = vmatprep.mubr.f32.mxu0 0.0
        %1900 = vmatmul.mubr.f32.gmra.mrb[0].mxu0 %v1782
        %v1901 = vpop.f32.mrb[0].mxu0
        %v1902 = vadd.f32 0.0, %v1901
        %v1903 = vpop.f32.mrb[0].mxu0
        %1904 = vmatprep.mubr.f32.mxu0 0.0
        %1905 = vmatmul.mubr.f32.gmra.mrb[0].mxu0 %v1785
        %v1906 = vpop.f32.mrb[0].mxu0
        %v1907 = vadd.f32 0.0, %v1906
        %v1908 = vpop.f32.mrb[0].mxu0
        %1909 = vmatprep.mubr.f32.mxu0 0.0
        %1910 = vmatmul.mubr.f32.gmra.mrb[0].mxu0 %v1788
        %v1911 = vpop.f32.mrb[0].mxu0
        %v1912 = vadd.f32 0.0, %v1911
        %v1913 = vpop.f32.mrb[0].mxu0
        %1914 = vmatprep.mubr.f32.mxu0 0.0
        %1915 = vmatmul.mubr.f32.gmra.mrb[0].mxu0 %v1791
        %v1916 = vpop.f32.mrb[0].mxu0
        %v1917 = vadd.f32 0.0, %v1916
        %v1918 = vpop.f32.mrb[0].mxu0
        %1919 = vmatprep.mubr.f32.mxu0 0.0
        %1920 = vmatmul.mubr.f32.gmra.mrb[0].mxu0 %v1794
        %v1921 = vpop.f32.mrb[0].mxu0
        %v1922 = vadd.f32 0.0, %v1921
        %v1923 = vpop.f32.mrb[0].mxu0
        %1924 = vmatprep.mubr.f32.mxu0 0.0
        %1925 = vmatmul.mubr.f32.gmra.mrb[0].mxu0 %v1797
        %v1926 = vpop.f32.mrb[0].mxu0
        %v1927 = vadd.f32 0.0, %v1926
        %v1928 = vpop.f32.mrb[0].mxu0
        %1929 = vmatprep.mubr.f32.mxu0 0.0
        %1930 = vmatmul.mubr.f32.gmra.mrb[0].mxu0 %v1800
        %v1931 = vpop.f32.mrb[0].mxu0
        %v1932 = vadd.f32 0.0, %v1931
        %v1933 = vpop.f32.mrb[0].mxu0
        %1934 = vmatprep.mubr.f32.mxu0 0.0
        %1935 = vmatmul.mubr.f32.gmra.mrb[0].mxu0 %v1803
        %v1936 = vpop.f32.mrb[0].mxu0
        %v1937 = vadd.f32 0.0, %v1936
        %v1938 = vpop.f32.mrb[0].mxu0
        %1939 = vmatprep.mubr.f32.mxu0 0.0
        %1940 = vmatmul.mubr.f32.gmra.mrb[0].mxu0 %v1806
        %v1941 = vpop.f32.mrb[0].mxu0
        %v1942 = vadd.f32 0.0, %v1941
        %v1943 = vpop.f32.mrb[0].mxu0
        %1944 = vmatprep.mubr.f32.mxu0 0.0
        %1945 = vmatmul.mubr.f32.gmra.mrb[0].mxu0 %v1809
        %v1946 = vpop.f32.mrb[0].mxu0
        %v1947 = vadd.f32 0.0, %v1946
        %v1948 = vpop.f32.mrb[0].mxu0
        %1949 = vmatprep.mubr.f32.mxu0 0.0
        %1950 = vmatmul.mubr.f32.gmra.mrb[0].mxu0 %v1812
        %v1951 = vpop.f32.mrb[0].mxu0
        %v1952 = vadd.f32 0.0, %v1951
        %v1953 = vpop.f32.mrb[0].mxu0
        %1954 = vmatprep.mubr.f32.mxu0 0.0
        %1955 = vmatmul.mubr.f32.gmra.mrb[0].mxu0 %v1815
        %v1956 = vpop.f32.mrb[0].mxu0
        %v1957 = vadd.f32 0.0, %v1956
        %v1958 = vpop.f32.mrb[0].mxu0
        %1959 = vmatprep.mubr.f32.mxu0 0.0
        %1960 = vmatmul.mubr.f32.gmra.mrb[0].mxu0 %v1818
        %v1961 = vpop.f32.mrb[0].mxu0
        %v1962 = vadd.f32 0.0, %v1961
        %v1963 = vpop.f32.mrb[0].mxu0
        %1964 = vdwg.mxu0
        %1965 = vmax.xlane.f32.xlu0 %v1887
        %v1966 = vpop.xlane.xlu0 %1965
        %1967 = vmax.xlane.f32.xlu0 %v1892
        %v1968 = vpop.xlane.xlu0 %1967
        %1969 = vmax.xlane.f32.xlu0 %v1897
        %v1970 = vpop.xlane.xlu0 %1969
        %1971 = vmax.xlane.f32.xlu0 %v1902
        %v1972 = vpop.xlane.xlu0 %1971
        %1973 = vmax.xlane.f32.xlu0 %v1907
        %v1974 = vpop.xlane.xlu0 %1973
        %1975 = vmax.xlane.f32.xlu0 %v1912
        %v1976 = vpop.xlane.xlu0 %1975
        %1977 = vmax.xlane.f32.xlu0 %v1917
        %v1978 = vpop.xlane.xlu0 %1977
        %1979 = vmax.xlane.f32.xlu0 %v1922
        %v1980 = vpop.xlane.xlu0 %1979
        %1981 = vmax.xlane.f32.xlu0 %v1927
        %v1982 = vpop.xlane.xlu0 %1981
        %1983 = vmax.xlane.f32.xlu0 %v1932
        %v1984 = vpop.xlane.xlu0 %1983
        %1985 = vmax.xlane.f32.xlu0 %v1937
        %v1986 = vpop.xlane.xlu0 %1985
        %1987 = vmax.xlane.f32.xlu0 %v1942
        %v1988 = vpop.xlane.xlu0 %1987
        %1989 = vmax.xlane.f32.xlu0 %v1947
        %v1990 = vpop.xlane.xlu0 %1989
        %1991 = vmax.xlane.f32.xlu0 %v1952
        %v1992 = vpop.xlane.xlu0 %1991
        %1993 = vmax.xlane.f32.xlu0 %v1957
        %v1994 = vpop.xlane.xlu0 %1993
        %1995 = vmax.xlane.f32.xlu0 %v1962
        %v1996 = vpop.xlane.xlu0 %1995
        %v1997 = vsub.f32 %v1887, %v1966
        %v1998 = vsub.f32 %v1892, %v1968
        %v1999 = vsub.f32 %v1897, %v1970
        %v2000 = vsub.f32 %v1902, %v1972
        %v2001 = vsub.f32 %v1907, %v1974
        %v2002 = vsub.f32 %v1912, %v1976
        %v2003 = vsub.f32 %v1917, %v1978
        %v2004 = vsub.f32 %v1922, %v1980
        %v2005 = vsub.f32 %v1927, %v1982
        %v2006 = vsub.f32 %v1932, %v1984
        %v2007 = vsub.f32 %v1937, %v1986
        %v2008 = vsub.f32 %v1942, %v1988
        %v2009 = vsub.f32 %v1947, %v1990
        %v2010 = vsub.f32 %v1952, %v1992
        %v2011 = vsub.f32 %v1957, %v1994
        %v2012 = vsub.f32 %v1962, %v1996
        %v2013 = vmul.f32 %v1997, 1.442695
        %v2014 = vpow.pop %v2013
        %v2015 = vmul.f32 %v1998, 1.442695
        %v2016 = vpow.pop %v2015
        %v2017 = vmul.f32 %v1999, 1.442695
        %v2018 = vpow.pop %v2017
        %v2019 = vmul.f32 %v2000, 1.442695
        %v2020 = vpow.pop %v2019
        %v2021 = vmul.f32 %v2001, 1.442695
        %v2022 = vpow.pop %v2021
        %v2023 = vmul.f32 %v2002, 1.442695
        %v2024 = vpow.pop %v2023
        %v2025 = vmul.f32 %v2003, 1.442695
        %v2026 = vpow.pop %v2025
        %v2027 = vmul.f32 %v2004, 1.442695
        %v2028 = vpow.pop %v2027
        %v2029 = vmul.f32 %v2005, 1.442695
        %v2030 = vpow.pop %v2029
        %v2031 = vmul.f32 %v2006, 1.442695
        %v2032 = vpow.pop %v2031
        %v2033 = vmul.f32 %v2007, 1.442695
        %v2034 = vpow.pop %v2033
        %v2035 = vmul.f32 %v2008, 1.442695
        %v2036 = vpow.pop %v2035
        %v2037 = vmul.f32 %v2009, 1.442695
        %v2038 = vpow.pop %v2037
        %v2039 = vmul.f32 %v2010, 1.442695
        %v2040 = vpow.pop %v2039
        %v2041 = vmul.f32 %v2011, 1.442695
        %v2042 = vpow.pop %v2041
        %v2043 = vmul.f32 %v2012, 1.442695
        %v2044 = vpow.pop %v2043
        %2045 = vmatprep.subr.mxu0 0.0
        %2046 = vmatpush1.xpose.msra.mxu0 %v2014
        %2047 = vmatprep.subr.mxu0 0.0
        %2048 = vmatpush1.xpose.msra.mxu0 %v2016
        %2049 = vmatprep.subr.mxu0 0.0
        %2050 = vmatpush1.xpose.msra.mxu0 %v2018
        %2051 = vmatprep.subr.mxu0 0.0
        %2052 = vmatpush1.xpose.msra.mxu0 %v2020
        %2053 = vmatprep.subr.mxu0 0.0
        %2054 = vmatpush1.xpose.msra.mxu0 %v2022
        %2055 = vmatprep.subr.mxu0 0.0
        %2056 = vmatpush1.xpose.msra.mxu0 %v2024
        %2057 = vmatprep.subr.mxu0 0.0
        %2058 = vmatpush1.xpose.msra.mxu0 %v2026
        %2059 = vmatprep.subr.mxu0 0.0
        %2060 = vmatpush1.xpose.msra.mxu0 %v2028
        %2061 = vmatprep.subr.mxu0 0.0
        %2062 = vmatpush1.xpose.msra.mxu0 %v2030
        %2063 = vmatprep.subr.mxu0 0.0
        %2064 = vmatpush1.xpose.msra.mxu0 %v2032
        %2065 = vmatprep.subr.mxu0 0.0
        %2066 = vmatpush1.xpose.msra.mxu0 %v2034
        %2067 = vmatprep.subr.mxu0 0.0
        %2068 = vmatpush1.xpose.msra.mxu0 %v2036
        %2069 = vmatprep.subr.mxu0 0.0
        %2070 = vmatpush1.xpose.msra.mxu0 %v2038
        %2071 = vmatprep.subr.mxu0 0.0
        %2072 = vmatpush1.xpose.msra.mxu0 %v2040
        %2073 = vmatprep.subr.mxu0 0.0
        %2074 = vmatpush1.xpose.msra.mxu0 %v2042
        %2075 = vmatprep.subr.mxu0 0.0
        %2076 = vmatpush1.xpose.msra.mxu0 %v2044
        %2077 = vmatprep.subr.mxu0 0.0
        %2078 = vmatpush1.xpose.msra.mxu0 0.0
        %2079 = vmatprep.subr.mxu0 0.0
        %2080 = vmatpush1.xpose.msra.mxu0 0.0
        %2081 = vmatprep.subr.mxu0 0.0
        %2082 = vmatpush1.xpose.msra.mxu0 0.0
        %2083 = vmatprep.subr.mxu0 0.0
        %2084 = vmatpush1.xpose.msra.mxu0 0.0
        %2085 = vmatprep.subr.mxu0 0.0
        %2086 = vmatpush1.xpose.msra.mxu0 0.0
        %2087 = vmatprep.subr.mxu0 0.0
        %2088 = vmatpush1.xpose.msra.mxu0 0.0
        %2089 = vmatprep.subr.mxu0 0.0
        %2090 = vmatpush1.xpose.msra.mxu0 0.0
        %2091 = vmatprep.subr.mxu0 0.0
        %2092 = vmatpush1.xpose.msra.mxu0 0.0
        %2093 = vmatprep.subr.mxu0 0.0
        %2094 = vmatpush1.xpose.msra.mxu0 0.0
        %2095 = vmatprep.subr.mxu0 0.0
        %2096 = vmatpush1.xpose.msra.mxu0 0.0
        %2097 = vmatprep.subr.mxu0 0.0
        %2098 = vmatpush1.xpose.msra.mxu0 0.0
        %2099 = vmatprep.subr.mxu0 0.0
        %2100 = vmatpush1.xpose.msra.mxu0 0.0
        %2101 = vmatprep.subr.mxu0 0.0
        %2102 = vmatpush1.xpose.msra.mxu0 0.0
        %2103 = vmatprep.subr.mxu0 0.0
        %2104 = vmatpush1.xpose.msra.mxu0 0.0
        %2105 = vmatprep.subr.mxu0 0.0
        %2106 = vmatpush1.xpose.msra.mxu0 0.0
        %2107 = vmatprep.subr.mxu0 0.0
        %2108 = vmatpush1.xpose.msra.mxu0 0.0
        %2109 = vmatprep.mubr.f32.mxu0 0.0
        %2110 = vmatmul.mubr.f32.gmra.mrb[0].mxu0 1.0
        %v2111 = vpop.f32.mrb[0].mxu0
        %v2112 = vadd.f32 0.0, %v2111
        %v2113 = vpop.f32.mrb[0].mxu0
        %2114 = vdwg.mxu0
        %v2115 = vrcp.pop %v2112
        %2116 = vmatprep.subr.mxu0 0.0
        %2117 = vmatpush1.xpose.msra.mxu0 %v2014
        %2118 = vmatprep.subr.mxu0 0.0
        %2119 = vmatpush1.xpose.msra.mxu0 %v2016
        %2120 = vmatprep.subr.mxu0 0.0
        %2121 = vmatpush1.xpose.msra.mxu0 %v2018
        %2122 = vmatprep.subr.mxu0 0.0
        %2123 = vmatpush1.xpose.msra.mxu0 %v2020
        %2124 = vmatprep.subr.mxu0 0.0
        %2125 = vmatpush1.xpose.msra.mxu0 %v2022
        %2126 = vmatprep.subr.mxu0 0.0
        %2127 = vmatpush1.xpose.msra.mxu0 %v2024
        %2128 = vmatprep.subr.mxu0 0.0
        %2129 = vmatpush1.xpose.msra.mxu0 %v2026
        %2130 = vmatprep.subr.mxu0 0.0
        %2131 = vmatpush1.xpose.msra.mxu0 %v2028
        %2132 = vmatprep.subr.mxu0 0.0
        %2133 = vmatpush1.xpose.msra.mxu0 %v2030
        %2134 = vmatprep.subr.mxu0 0.0
        %2135 = vmatpush1.xpose.msra.mxu0 %v2032
        %2136 = vmatprep.subr.mxu0 0.0
        %2137 = vmatpush1.xpose.msra.mxu0 %v2034
        %2138 = vmatprep.subr.mxu0 0.0
        %2139 = vmatpush1.xpose.msra.mxu0 %v2036
        %2140 = vmatprep.subr.mxu0 0.0
        %2141 = vmatpush1.xpose.msra.mxu0 %v2038
        %2142 = vmatprep.subr.mxu0 0.0
        %2143 = vmatpush1.xpose.msra.mxu0 %v2040
        %2144 = vmatprep.subr.mxu0 0.0
        %2145 = vmatpush1.xpose.msra.mxu0 %v2042
        %2146 = vmatprep.subr.mxu0 0.0
        %2147 = vmatpush1.xpose.msra.mxu0 %v2044
        %2148 = vmatprep.subr.mxu0 0.0
        %2149 = vmatpush1.xpose.msra.mxu0 0.0
        %2150 = vmatprep.subr.mxu0 0.0
        %2151 = vmatpush1.xpose.msra.mxu0 0.0
        %2152 = vmatprep.subr.mxu0 0.0
        %2153 = vmatpush1.xpose.msra.mxu0 0.0
        %2154 = vmatprep.subr.mxu0 0.0
        %2155 = vmatpush1.xpose.msra.mxu0 0.0
        %2156 = vmatprep.subr.mxu0 0.0
        %2157 = vmatpush1.xpose.msra.mxu0 0.0
        %2158 = vmatprep.subr.mxu0 0.0
        %2159 = vmatpush1.xpose.msra.mxu0 0.0
        %2160 = vmatprep.subr.mxu0 0.0
        %2161 = vmatpush1.xpose.msra.mxu0 0.0
        %2162 = vmatprep.subr.mxu0 0.0
        %2163 = vmatpush1.xpose.msra.mxu0 0.0
        %2164 = vmatprep.subr.mxu0 0.0
        %2165 = vmatpush1.xpose.msra.mxu0 0.0
        %2166 = vmatprep.subr.mxu0 0.0
        %2167 = vmatpush1.xpose.msra.mxu0 0.0
        %2168 = vmatprep.subr.mxu0 0.0
        %2169 = vmatpush1.xpose.msra.mxu0 0.0
        %2170 = vmatprep.subr.mxu0 0.0
        %2171 = vmatpush1.xpose.msra.mxu0 0.0
        %2172 = vmatprep.subr.mxu0 0.0
        %2173 = vmatpush1.xpose.msra.mxu0 0.0
        %2174 = vmatprep.subr.mxu0 0.0
        %2175 = vmatpush1.xpose.msra.mxu0 0.0
        %2176 = vmatprep.subr.mxu0 0.0
        %2177 = vmatpush1.xpose.msra.mxu0 0.0
        %2178 = vmatprep.subr.mxu0 0.0
        %2179 = vmatpush1.xpose.msra.mxu0 0.0
        %2180 = vmatprep.mubr.f32.mxu0 0.0
        %2181 = vmatmul.mubr.f32.gmra.mrb[0].mxu0 %v1736
        %v2182 = vpop.f32.mrb[0].mxu0
        %v2183 = vadd.f32 0.0, %v2182
        %v2184 = vpop.f32.mrb[0].mxu0
        %2185 = vmatprep.mubr.f32.mxu0 0.0
        %2186 = vmatmul.mubr.f32.gmra.mrb[0].mxu0 %v1737
        %v2187 = vpop.f32.mrb[0].mxu0
        %v2188 = vadd.f32 0.0, %v2187
        %v2189 = vpop.f32.mrb[0].mxu0
        %2190 = vmatprep.mubr.f32.mxu0 0.0
        %2191 = vmatmul.mubr.f32.gmra.mrb[0].mxu0 %v1738
        %v2192 = vpop.f32.mrb[0].mxu0
        %v2193 = vadd.f32 0.0, %v2192
        %v2194 = vpop.f32.mrb[0].mxu0
        %2195 = vmatprep.mubr.f32.mxu0 0.0
        %2196 = vmatmul.mubr.f32.gmra.mrb[0].mxu0 %v1739
        %v2197 = vpop.f32.mrb[0].mxu0
        %v2198 = vadd.f32 0.0, %v2197
        %v2199 = vpop.f32.mrb[0].mxu0
        %2200 = vdwg.mxu0
        %v2201 = vlaneseq
        %v2202 = vshrl.u32 %v2201, 7
        %v2203 = vsub.s32 0, %v2202
        %v2204 = vrot.slane %v2115, %v2203
        %v2205 = vmul.f32 %v2183, %v2204
        %v2206 = vmul.f32 %v2188, %v2204
        %v2207 = vmul.f32 %v2193, %v2204
        %v2208 = vmul.f32 %v2198, %v2204
        %2209 = vst [vmem:[#allocation3 + $0x20] sm:$0xff] %v2205
        %2210 = vst [vmem:[#allocation3 + $0x28] sm:$0xff] %v2206
        %2211 = vst [vmem:[#allocation3 + $0x30] sm:$0xff] %v2207
        %2212 = vst [vmem:[#allocation3 + $0x38] sm:$0xff] %v2208
        %v2213 = vld [vmem:[#allocation2 + $0x40] sm:$0xff]
        %v2214 = vld [vmem:[#allocation2 + $0x48] sm:$0xff]
        %v2215 = vld [vmem:[#allocation2 + $0x50] sm:$0xff]
        %v2216 = vld [vmem:[#allocation2 + $0x58] sm:$0xff]
        %v2217 = vld [vmem:[#allocation2 + $0xc0] sm:$0xff]
        %v2218 = vld [vmem:[#allocation2 + $0xc8] sm:$0xff]
        %v2219 = vld [vmem:[#allocation2 + $0xd0] sm:$0xff]
        %v2220 = vld [vmem:[#allocation2 + $0xd8] sm:$0xff]
        %2221 = vxpose.xlu0.b32.start [1/16] %v1212, 128
        %2222 = vxpose.xlu0.b32.cont [2/16] %v1217, 128
        %2223 = vxpose.xlu0.b32.cont [3/16] %v1222, 128
        %2224 = vxpose.xlu0.b32.cont [4/16] %v1227, 128
        %2225 = vxpose.xlu0.b32.cont [5/16] 0.0, 128
        %2226 = vxpose.xlu0.b32.cont [6/16] 0.0, 128
        %2227 = vxpose.xlu0.b32.cont [7/16] 0.0, 128
        %2228 = vxpose.xlu0.b32.cont [8/16] 0.0, 128
        %2229 = vxpose.xlu0.b32.cont [9/16] 0.0, 128
        %2230 = vxpose.xlu0.b32.cont [10/16] 0.0, 128
        %2231 = vxpose.xlu0.b32.cont [11/16] 0.0, 128
        %2232 = vxpose.xlu0.b32.cont [12/16] 0.0, 128
        %2233 = vxpose.xlu0.b32.cont [13/16] 0.0, 128
        %2234 = vxpose.xlu0.b32.cont [14/16] 0.0, 128
        %2235 = vxpose.xlu0.b32.cont [15/16] 0.0, 128
        %2236 = vxpose.xlu0.b32.end [16/16] 0.0, 128
        %v2237 = vpop.trf.xlu0
        %v2238 = vpop.trf.xlu0
        %v2239 = vpop.trf.xlu0
        %v2240 = vpop.trf.xlu0
        %v2241 = vpop.trf.xlu0
        %v2242 = vpop.trf.xlu0
        %v2243 = vpop.trf.xlu0
        %v2244 = vpop.trf.xlu0
        %v2245 = vpop.trf.xlu0
        %v2246 = vpop.trf.xlu0
        %v2247 = vpop.trf.xlu0
        %v2248 = vpop.trf.xlu0
        %v2249 = vpop.trf.xlu0
        %v2250 = vpop.trf.xlu0
        %v2251 = vpop.trf.xlu0
        %v2252 = vpop.trf.xlu0
        %v2254 = vsel %vm1290, %v2237, 0
        %v2257 = vsel %vm1290, %v2238, 0
        %v2260 = vsel %vm1290, %v2239, 0
        %v2263 = vsel %vm1290, %v2240, 0
        %v2266 = vsel %vm1290, %v2241, 0
        %v2269 = vsel %vm1290, %v2242, 0
        %v2272 = vsel %vm1290, %v2243, 0
        %v2275 = vsel %vm1290, %v2244, 0
        %v2278 = vsel %vm1290, %v2245, 0
        %v2281 = vsel %vm1290, %v2246, 0
        %v2284 = vsel %vm1290, %v2247, 0
        %v2287 = vsel %vm1290, %v2248, 0
        %v2290 = vsel %vm1290, %v2249, 0
        %v2293 = vsel %vm1290, %v2250, 0
        %v2296 = vsel %vm1290, %v2251, 0
        %v2299 = vsel %vm1290, %v2252, 0
        %2301 = vmatprep.subr.mxu0 0.0
        %2302 = vmatpush1.msra.mxu0 %v2213
        %2303 = vmatprep.subr.mxu0 0.0
        %2304 = vmatpush1.msra.mxu0 %v2214
        %2305 = vmatprep.subr.mxu0 0.0
        %2306 = vmatpush1.msra.mxu0 %v2215
        %2307 = vmatprep.subr.mxu0 0.0
        %2308 = vmatpush1.msra.mxu0 %v2216
        %2309 = vmatprep.subr.mxu0 0.0
        %2310 = vmatpush1.msra.mxu0 0.0
        %2311 = vmatprep.subr.mxu0 0.0
        %2312 = vmatpush1.msra.mxu0 0.0
        %2313 = vmatprep.subr.mxu0 0.0
        %2314 = vmatpush1.msra.mxu0 0.0
        %2315 = vmatprep.subr.mxu0 0.0
        %2316 = vmatpush1.msra.mxu0 0.0
        %2317 = vmatprep.subr.mxu0 0.0
        %2318 = vmatpush1.msra.mxu0 0.0
        %2319 = vmatprep.subr.mxu0 0.0
        %2320 = vmatpush1.msra.mxu0 0.0
        %2321 = vmatprep.subr.mxu0 0.0
        %2322 = vmatpush1.msra.mxu0 0.0
        %2323 = vmatprep.subr.mxu0 0.0
        %2324 = vmatpush1.msra.mxu0 0.0
        %2325 = vmatprep.subr.mxu0 0.0
        %2326 = vmatpush1.msra.mxu0 0.0
        %2327 = vmatprep.subr.mxu0 0.0
        %2328 = vmatpush1.msra.mxu0 0.0
        %2329 = vmatprep.subr.mxu0 0.0
        %2330 = vmatpush1.msra.mxu0 0.0
        %2331 = vmatprep.subr.mxu0 0.0
        %2332 = vmatpush1.msra.mxu0 0.0
        %2333 = vmatprep.subr.mxu0 0.0
        %2334 = vmatpush1.msra.mxu0 0.0
        %2335 = vmatprep.subr.mxu0 0.0
        %2336 = vmatpush1.msra.mxu0 0.0
        %2337 = vmatprep.subr.mxu0 0.0
        %2338 = vmatpush1.msra.mxu0 0.0
        %2339 = vmatprep.subr.mxu0 0.0
        %2340 = vmatpush1.msra.mxu0 0.0
        %2341 = vmatprep.subr.mxu0 0.0
        %2342 = vmatpush1.msra.mxu0 0.0
        %2343 = vmatprep.subr.mxu0 0.0
        %2344 = vmatpush1.msra.mxu0 0.0
        %2345 = vmatprep.subr.mxu0 0.0
        %2346 = vmatpush1.msra.mxu0 0.0
        %2347 = vmatprep.subr.mxu0 0.0
        %2348 = vmatpush1.msra.mxu0 0.0
        %2349 = vmatprep.subr.mxu0 0.0
        %2350 = vmatpush1.msra.mxu0 0.0
        %2351 = vmatprep.subr.mxu0 0.0
        %2352 = vmatpush1.msra.mxu0 0.0
        %2353 = vmatprep.subr.mxu0 0.0
        %2354 = vmatpush1.msra.mxu0 0.0
        %2355 = vmatprep.subr.mxu0 0.0
        %2356 = vmatpush1.msra.mxu0 0.0
        %2357 = vmatprep.subr.mxu0 0.0
        %2358 = vmatpush1.msra.mxu0 0.0
        %2359 = vmatprep.subr.mxu0 0.0
        %2360 = vmatpush1.msra.mxu0 0.0
        %2361 = vmatprep.subr.mxu0 0.0
        %2362 = vmatpush1.msra.mxu0 0.0
        %2363 = vmatprep.subr.mxu0 0.0
        %2364 = vmatpush1.msra.mxu0 0.0
        %2365 = vmatprep.mubr.f32.mxu0 0.0
        %2366 = vmatmul.mubr.f32.gmra.mrb[0].mxu0 %v2254
        %v2367 = vpop.f32.mrb[0].mxu0
        %v2368 = vadd.f32 0.0, %v2367
        %v2369 = vpop.f32.mrb[0].mxu0
        %2370 = vmatprep.mubr.f32.mxu0 0.0
        %2371 = vmatmul.mubr.f32.gmra.mrb[0].mxu0 %v2257
        %v2372 = vpop.f32.mrb[0].mxu0
        %v2373 = vadd.f32 0.0, %v2372
        %v2374 = vpop.f32.mrb[0].mxu0
        %2375 = vmatprep.mubr.f32.mxu0 0.0
        %2376 = vmatmul.mubr.f32.gmra.mrb[0].mxu0 %v2260
        %v2377 = vpop.f32.mrb[0].mxu0
        %v2378 = vadd.f32 0.0, %v2377
        %v2379 = vpop.f32.mrb[0].mxu0
        %2380 = vmatprep.mubr.f32.mxu0 0.0
        %2381 = vmatmul.mubr.f32.gmra.mrb[0].mxu0 %v2263
        %v2382 = vpop.f32.mrb[0].mxu0
        %v2383 = vadd.f32 0.0, %v2382
        %v2384 = vpop.f32.mrb[0].mxu0
        %2385 = vmatprep.mubr.f32.mxu0 0.0
        %2386 = vmatmul.mubr.f32.gmra.mrb[0].mxu0 %v2266
        %v2387 = vpop.f32.mrb[0].mxu0
        %v2388 = vadd.f32 0.0, %v2387
        %v2389 = vpop.f32.mrb[0].mxu0
        %2390 = vmatprep.mubr.f32.mxu0 0.0
        %2391 = vmatmul.mubr.f32.gmra.mrb[0].mxu0 %v2269
        %v2392 = vpop.f32.mrb[0].mxu0
        %v2393 = vadd.f32 0.0, %v2392
        %v2394 = vpop.f32.mrb[0].mxu0
        %2395 = vmatprep.mubr.f32.mxu0 0.0
        %2396 = vmatmul.mubr.f32.gmra.mrb[0].mxu0 %v2272
        %v2397 = vpop.f32.mrb[0].mxu0
        %v2398 = vadd.f32 0.0, %v2397
        %v2399 = vpop.f32.mrb[0].mxu0
        %2400 = vmatprep.mubr.f32.mxu0 0.0
        %2401 = vmatmul.mubr.f32.gmra.mrb[0].mxu0 %v2275
        %v2402 = vpop.f32.mrb[0].mxu0
        %v2403 = vadd.f32 0.0, %v2402
        %v2404 = vpop.f32.mrb[0].mxu0
        %2405 = vmatprep.mubr.f32.mxu0 0.0
        %2406 = vmatmul.mubr.f32.gmra.mrb[0].mxu0 %v2278
        %v2407 = vpop.f32.mrb[0].mxu0
        %v2408 = vadd.f32 0.0, %v2407
        %v2409 = vpop.f32.mrb[0].mxu0
        %2410 = vmatprep.mubr.f32.mxu0 0.0
        %2411 = vmatmul.mubr.f32.gmra.mrb[0].mxu0 %v2281
        %v2412 = vpop.f32.mrb[0].mxu0
        %v2413 = vadd.f32 0.0, %v2412
        %v2414 = vpop.f32.mrb[0].mxu0
        %2415 = vmatprep.mubr.f32.mxu0 0.0
        %2416 = vmatmul.mubr.f32.gmra.mrb[0].mxu0 %v2284
        %v2417 = vpop.f32.mrb[0].mxu0
        %v2418 = vadd.f32 0.0, %v2417
        %v2419 = vpop.f32.mrb[0].mxu0
        %2420 = vmatprep.mubr.f32.mxu0 0.0
        %2421 = vmatmul.mubr.f32.gmra.mrb[0].mxu0 %v2287
        %v2422 = vpop.f32.mrb[0].mxu0
        %v2423 = vadd.f32 0.0, %v2422
        %v2424 = vpop.f32.mrb[0].mxu0
        %2425 = vmatprep.mubr.f32.mxu0 0.0
        %2426 = vmatmul.mubr.f32.gmra.mrb[0].mxu0 %v2290
        %v2427 = vpop.f32.mrb[0].mxu0
        %v2428 = vadd.f32 0.0, %v2427
        %v2429 = vpop.f32.mrb[0].mxu0
        %2430 = vmatprep.mubr.f32.mxu0 0.0
        %2431 = vmatmul.mubr.f32.gmra.mrb[0].mxu0 %v2293
        %v2432 = vpop.f32.mrb[0].mxu0
        %v2433 = vadd.f32 0.0, %v2432
        %v2434 = vpop.f32.mrb[0].mxu0
        %2435 = vmatprep.mubr.f32.mxu0 0.0
        %2436 = vmatmul.mubr.f32.gmra.mrb[0].mxu0 %v2296
        %v2437 = vpop.f32.mrb[0].mxu0
        %v2438 = vadd.f32 0.0, %v2437
        %v2439 = vpop.f32.mrb[0].mxu0
        %2440 = vmatprep.mubr.f32.mxu0 0.0
        %2441 = vmatmul.mubr.f32.gmra.mrb[0].mxu0 %v2299
        %v2442 = vpop.f32.mrb[0].mxu0
        %v2443 = vadd.f32 0.0, %v2442
        %v2444 = vpop.f32.mrb[0].mxu0
        %2445 = vdwg.mxu0
        %2446 = vmax.xlane.f32.xlu0 %v2368
        %v2447 = vpop.xlane.xlu0 %2446
        %2448 = vmax.xlane.f32.xlu0 %v2373
        %v2449 = vpop.xlane.xlu0 %2448
        %2450 = vmax.xlane.f32.xlu0 %v2378
        %v2451 = vpop.xlane.xlu0 %2450
        %2452 = vmax.xlane.f32.xlu0 %v2383
        %v2453 = vpop.xlane.xlu0 %2452
        %2454 = vmax.xlane.f32.xlu0 %v2388
        %v2455 = vpop.xlane.xlu0 %2454
        %2456 = vmax.xlane.f32.xlu0 %v2393
        %v2457 = vpop.xlane.xlu0 %2456
        %2458 = vmax.xlane.f32.xlu0 %v2398
        %v2459 = vpop.xlane.xlu0 %2458
        %2460 = vmax.xlane.f32.xlu0 %v2403
        %v2461 = vpop.xlane.xlu0 %2460
        %2462 = vmax.xlane.f32.xlu0 %v2408
        %v2463 = vpop.xlane.xlu0 %2462
        %2464 = vmax.xlane.f32.xlu0 %v2413
        %v2465 = vpop.xlane.xlu0 %2464
        %2466 = vmax.xlane.f32.xlu0 %v2418
        %v2467 = vpop.xlane.xlu0 %2466
        %2468 = vmax.xlane.f32.xlu0 %v2423
        %v2469 = vpop.xlane.xlu0 %2468
        %2470 = vmax.xlane.f32.xlu0 %v2428
        %v2471 = vpop.xlane.xlu0 %2470
        %2472 = vmax.xlane.f32.xlu0 %v2433
        %v2473 = vpop.xlane.xlu0 %2472
        %2474 = vmax.xlane.f32.xlu0 %v2438
        %v2475 = vpop.xlane.xlu0 %2474
        %2476 = vmax.xlane.f32.xlu0 %v2443
        %v2477 = vpop.xlane.xlu0 %2476
        %v2478 = vsub.f32 %v2368, %v2447
        %v2479 = vsub.f32 %v2373, %v2449
        %v2480 = vsub.f32 %v2378, %v2451
        %v2481 = vsub.f32 %v2383, %v2453
        %v2482 = vsub.f32 %v2388, %v2455
        %v2483 = vsub.f32 %v2393, %v2457
        %v2484 = vsub.f32 %v2398, %v2459
        %v2485 = vsub.f32 %v2403, %v2461
        %v2486 = vsub.f32 %v2408, %v2463
        %v2487 = vsub.f32 %v2413, %v2465
        %v2488 = vsub.f32 %v2418, %v2467
        %v2489 = vsub.f32 %v2423, %v2469
        %v2490 = vsub.f32 %v2428, %v2471
        %v2491 = vsub.f32 %v2433, %v2473
        %v2492 = vsub.f32 %v2438, %v2475
        %v2493 = vsub.f32 %v2443, %v2477
        %v2494 = vmul.f32 %v2478, 1.442695
        %v2495 = vpow.pop %v2494
        %v2496 = vmul.f32 %v2479, 1.442695
        %v2497 = vpow.pop %v2496
        %v2498 = vmul.f32 %v2480, 1.442695
        %v2499 = vpow.pop %v2498
        %v2500 = vmul.f32 %v2481, 1.442695
        %v2501 = vpow.pop %v2500
        %v2502 = vmul.f32 %v2482, 1.442695
        %v2503 = vpow.pop %v2502
        %v2504 = vmul.f32 %v2483, 1.442695
        %v2505 = vpow.pop %v2504
        %v2506 = vmul.f32 %v2484, 1.442695
        %v2507 = vpow.pop %v2506
        %v2508 = vmul.f32 %v2485, 1.442695
        %v2509 = vpow.pop %v2508
        %v2510 = vmul.f32 %v2486, 1.442695
        %v2511 = vpow.pop %v2510
        %v2512 = vmul.f32 %v2487, 1.442695
        %v2513 = vpow.pop %v2512
        %v2514 = vmul.f32 %v2488, 1.442695
        %v2515 = vpow.pop %v2514
        %v2516 = vmul.f32 %v2489, 1.442695
        %v2517 = vpow.pop %v2516
        %v2518 = vmul.f32 %v2490, 1.442695
        %v2519 = vpow.pop %v2518
        %v2520 = vmul.f32 %v2491, 1.442695
        %v2521 = vpow.pop %v2520
        %v2522 = vmul.f32 %v2492, 1.442695
        %v2523 = vpow.pop %v2522
        %v2524 = vmul.f32 %v2493, 1.442695
        %v2525 = vpow.pop %v2524
        %2526 = vmatprep.subr.mxu0 0.0
        %2527 = vmatpush1.xpose.msra.mxu0 %v2495
        %2528 = vmatprep.subr.mxu0 0.0
        %2529 = vmatpush1.xpose.msra.mxu0 %v2497
        %2530 = vmatprep.subr.mxu0 0.0
        %2531 = vmatpush1.xpose.msra.mxu0 %v2499
        %2532 = vmatprep.subr.mxu0 0.0
        %2533 = vmatpush1.xpose.msra.mxu0 %v2501
        %2534 = vmatprep.subr.mxu0 0.0
        %2535 = vmatpush1.xpose.msra.mxu0 %v2503
        %2536 = vmatprep.subr.mxu0 0.0
        %2537 = vmatpush1.xpose.msra.mxu0 %v2505
        %2538 = vmatprep.subr.mxu0 0.0
        %2539 = vmatpush1.xpose.msra.mxu0 %v2507
        %2540 = vmatprep.subr.mxu0 0.0
        %2541 = vmatpush1.xpose.msra.mxu0 %v2509
        %2542 = vmatprep.subr.mxu0 0.0
        %2543 = vmatpush1.xpose.msra.mxu0 %v2511
        %2544 = vmatprep.subr.mxu0 0.0
        %2545 = vmatpush1.xpose.msra.mxu0 %v2513
        %2546 = vmatprep.subr.mxu0 0.0
        %2547 = vmatpush1.xpose.msra.mxu0 %v2515
        %2548 = vmatprep.subr.mxu0 0.0
        %2549 = vmatpush1.xpose.msra.mxu0 %v2517
        %2550 = vmatprep.subr.mxu0 0.0
        %2551 = vmatpush1.xpose.msra.mxu0 %v2519
        %2552 = vmatprep.subr.mxu0 0.0
        %2553 = vmatpush1.xpose.msra.mxu0 %v2521
        %2554 = vmatprep.subr.mxu0 0.0
        %2555 = vmatpush1.xpose.msra.mxu0 %v2523
        %2556 = vmatprep.subr.mxu0 0.0
        %2557 = vmatpush1.xpose.msra.mxu0 %v2525
        %2558 = vmatprep.subr.mxu0 0.0
        %2559 = vmatpush1.xpose.msra.mxu0 0.0
        %2560 = vmatprep.subr.mxu0 0.0
        %2561 = vmatpush1.xpose.msra.mxu0 0.0
        %2562 = vmatprep.subr.mxu0 0.0
        %2563 = vmatpush1.xpose.msra.mxu0 0.0
        %2564 = vmatprep.subr.mxu0 0.0
        %2565 = vmatpush1.xpose.msra.mxu0 0.0
        %2566 = vmatprep.subr.mxu0 0.0
        %2567 = vmatpush1.xpose.msra.mxu0 0.0
        %2568 = vmatprep.subr.mxu0 0.0
        %2569 = vmatpush1.xpose.msra.mxu0 0.0
        %2570 = vmatprep.subr.mxu0 0.0
        %2571 = vmatpush1.xpose.msra.mxu0 0.0
        %2572 = vmatprep.subr.mxu0 0.0
        %2573 = vmatpush1.xpose.msra.mxu0 0.0
        %2574 = vmatprep.subr.mxu0 0.0
        %2575 = vmatpush1.xpose.msra.mxu0 0.0
        %2576 = vmatprep.subr.mxu0 0.0
        %2577 = vmatpush1.xpose.msra.mxu0 0.0
        %2578 = vmatprep.subr.mxu0 0.0
        %2579 = vmatpush1.xpose.msra.mxu0 0.0
        %2580 = vmatprep.subr.mxu0 0.0
        %2581 = vmatpush1.xpose.msra.mxu0 0.0
        %2582 = vmatprep.subr.mxu0 0.0
        %2583 = vmatpush1.xpose.msra.mxu0 0.0
        %2584 = vmatprep.subr.mxu0 0.0
        %2585 = vmatpush1.xpose.msra.mxu0 0.0
        %2586 = vmatprep.subr.mxu0 0.0
        %2587 = vmatpush1.xpose.msra.mxu0 0.0
        %2588 = vmatprep.subr.mxu0 0.0
        %2589 = vmatpush1.xpose.msra.mxu0 0.0
        %2590 = vmatprep.mubr.f32.mxu0 0.0
        %2591 = vmatmul.mubr.f32.gmra.mrb[0].mxu0 1.0
        %v2592 = vpop.f32.mrb[0].mxu0
        %v2593 = vadd.f32 0.0, %v2592
        %v2594 = vpop.f32.mrb[0].mxu0
        %2595 = vdwg.mxu0
        %v2596 = vrcp.pop %v2593
        %2597 = vmatprep.subr.mxu0 0.0
        %2598 = vmatpush1.xpose.msra.mxu0 %v2495
        %2599 = vmatprep.subr.mxu0 0.0
        %2600 = vmatpush1.xpose.msra.mxu0 %v2497
        %2601 = vmatprep.subr.mxu0 0.0
        %2602 = vmatpush1.xpose.msra.mxu0 %v2499
        %2603 = vmatprep.subr.mxu0 0.0
        %2604 = vmatpush1.xpose.msra.mxu0 %v2501
        %2605 = vmatprep.subr.mxu0 0.0
        %2606 = vmatpush1.xpose.msra.mxu0 %v2503
        %2607 = vmatprep.subr.mxu0 0.0
        %2608 = vmatpush1.xpose.msra.mxu0 %v2505
        %2609 = vmatprep.subr.mxu0 0.0
        %2610 = vmatpush1.xpose.msra.mxu0 %v2507
        %2611 = vmatprep.subr.mxu0 0.0
        %2612 = vmatpush1.xpose.msra.mxu0 %v2509
        %2613 = vmatprep.subr.mxu0 0.0
        %2614 = vmatpush1.xpose.msra.mxu0 %v2511
        %2615 = vmatprep.subr.mxu0 0.0
        %2616 = vmatpush1.xpose.msra.mxu0 %v2513
        %2617 = vmatprep.subr.mxu0 0.0
        %2618 = vmatpush1.xpose.msra.mxu0 %v2515
        %2619 = vmatprep.subr.mxu0 0.0
        %2620 = vmatpush1.xpose.msra.mxu0 %v2517
        %2621 = vmatprep.subr.mxu0 0.0
        %2622 = vmatpush1.xpose.msra.mxu0 %v2519
        %2623 = vmatprep.subr.mxu0 0.0
        %2624 = vmatpush1.xpose.msra.mxu0 %v2521
        %2625 = vmatprep.subr.mxu0 0.0
        %2626 = vmatpush1.xpose.msra.mxu0 %v2523
        %2627 = vmatprep.subr.mxu0 0.0
        %2628 = vmatpush1.xpose.msra.mxu0 %v2525
        %2629 = vmatprep.subr.mxu0 0.0
        %2630 = vmatpush1.xpose.msra.mxu0 0.0
        %2631 = vmatprep.subr.mxu0 0.0
        %2632 = vmatpush1.xpose.msra.mxu0 0.0
        %2633 = vmatprep.subr.mxu0 0.0
        %2634 = vmatpush1.xpose.msra.mxu0 0.0
        %2635 = vmatprep.subr.mxu0 0.0
        %2636 = vmatpush1.xpose.msra.mxu0 0.0
        %2637 = vmatprep.subr.mxu0 0.0
        %2638 = vmatpush1.xpose.msra.mxu0 0.0
        %2639 = vmatprep.subr.mxu0 0.0
        %2640 = vmatpush1.xpose.msra.mxu0 0.0
        %2641 = vmatprep.subr.mxu0 0.0
        %2642 = vmatpush1.xpose.msra.mxu0 0.0
        %2643 = vmatprep.subr.mxu0 0.0
        %2644 = vmatpush1.xpose.msra.mxu0 0.0
        %2645 = vmatprep.subr.mxu0 0.0
        %2646 = vmatpush1.xpose.msra.mxu0 0.0
        %2647 = vmatprep.subr.mxu0 0.0
        %2648 = vmatpush1.xpose.msra.mxu0 0.0
        %2649 = vmatprep.subr.mxu0 0.0
        %2650 = vmatpush1.xpose.msra.mxu0 0.0
        %2651 = vmatprep.subr.mxu0 0.0
        %2652 = vmatpush1.xpose.msra.mxu0 0.0
        %2653 = vmatprep.subr.mxu0 0.0
        %2654 = vmatpush1.xpose.msra.mxu0 0.0
        %2655 = vmatprep.subr.mxu0 0.0
        %2656 = vmatpush1.xpose.msra.mxu0 0.0
        %2657 = vmatprep.subr.mxu0 0.0
        %2658 = vmatpush1.xpose.msra.mxu0 0.0
        %2659 = vmatprep.subr.mxu0 0.0
        %2660 = vmatpush1.xpose.msra.mxu0 0.0
        %2661 = vmatprep.mubr.f32.mxu0 0.0
        %2662 = vmatmul.mubr.f32.gmra.mrb[0].mxu0 %v2217
        %v2663 = vpop.f32.mrb[0].mxu0
        %v2664 = vadd.f32 0.0, %v2663
        %v2665 = vpop.f32.mrb[0].mxu0
        %2666 = vmatprep.mubr.f32.mxu0 0.0
        %2667 = vmatmul.mubr.f32.gmra.mrb[0].mxu0 %v2218
        %v2668 = vpop.f32.mrb[0].mxu0
        %v2669 = vadd.f32 0.0, %v2668
        %v2670 = vpop.f32.mrb[0].mxu0
        %2671 = vmatprep.mubr.f32.mxu0 0.0
        %2672 = vmatmul.mubr.f32.gmra.mrb[0].mxu0 %v2219
        %v2673 = vpop.f32.mrb[0].mxu0
        %v2674 = vadd.f32 0.0, %v2673
        %v2675 = vpop.f32.mrb[0].mxu0
        %2676 = vmatprep.mubr.f32.mxu0 0.0
        %2677 = vmatmul.mubr.f32.gmra.mrb[0].mxu0 %v2220
        %v2678 = vpop.f32.mrb[0].mxu0
        %v2679 = vadd.f32 0.0, %v2678
        %v2680 = vpop.f32.mrb[0].mxu0
        %2681 = vdwg.mxu0
        %v2682 = vlaneseq
        %v2683 = vshrl.u32 %v2682, 7
        %v2684 = vsub.s32 0, %v2683
        %v2685 = vrot.slane %v2596, %v2684
        %v2686 = vmul.f32 %v2664, %v2685
        %v2687 = vmul.f32 %v2669, %v2685
        %v2688 = vmul.f32 %v2674, %v2685
        %v2689 = vmul.f32 %v2679, %v2685
        %2690 = vst [vmem:[#allocation3 + $0x40] sm:$0xff] %v2686
        %2691 = vst [vmem:[#allocation3 + $0x48] sm:$0xff] %v2687
        %2692 = vst [vmem:[#allocation3 + $0x50] sm:$0xff] %v2688
        %2693 = vst [vmem:[#allocation3 + $0x58] sm:$0xff] %v2689
        %v2694 = vld [vmem:[#allocation2 + $0x60] sm:$0xff]
        %v2695 = vld [vmem:[#allocation2 + $0x68] sm:$0xff]
        %v2696 = vld [vmem:[#allocation2 + $0x70] sm:$0xff]
        %v2697 = vld [vmem:[#allocation2 + $0x78] sm:$0xff]
        %v2698 = vld [vmem:[#allocation2 + $0xe0] sm:$0xff]
        %v2699 = vld [vmem:[#allocation2 + $0xe8] sm:$0xff]
        %v2700 = vld [vmem:[#allocation2 + $0xf0] sm:$0xff]
        %v2701 = vld [vmem:[#allocation2 + $0xf8] sm:$0xff]
        %2702 = vxpose.xlu0.b32.start [1/16] %v1232, 128
        %2703 = vxpose.xlu0.b32.cont [2/16] %v1237, 128
        %2704 = vxpose.xlu0.b32.cont [3/16] %v1242, 128
        %2705 = vxpose.xlu0.b32.cont [4/16] %v1247, 128
        %2706 = vxpose.xlu0.b32.cont [5/16] 0.0, 128
        %2707 = vxpose.xlu0.b32.cont [6/16] 0.0, 128
        %2708 = vxpose.xlu0.b32.cont [7/16] 0.0, 128
        %2709 = vxpose.xlu0.b32.cont [8/16] 0.0, 128
        %2710 = vxpose.xlu0.b32.cont [9/16] 0.0, 128
        %2711 = vxpose.xlu0.b32.cont [10/16] 0.0, 128
        %2712 = vxpose.xlu0.b32.cont [11/16] 0.0, 128
        %2713 = vxpose.xlu0.b32.cont [12/16] 0.0, 128
        %2714 = vxpose.xlu0.b32.cont [13/16] 0.0, 128
        %2715 = vxpose.xlu0.b32.cont [14/16] 0.0, 128
        %2716 = vxpose.xlu0.b32.cont [15/16] 0.0, 128
        %2717 = vxpose.xlu0.b32.end [16/16] 0.0, 128
        %v2718 = vpop.trf.xlu0
        %v2719 = vpop.trf.xlu0
        %v2720 = vpop.trf.xlu0
        %v2721 = vpop.trf.xlu0
        %v2722 = vpop.trf.xlu0
        %v2723 = vpop.trf.xlu0
        %v2724 = vpop.trf.xlu0
        %v2725 = vpop.trf.xlu0
        %v2726 = vpop.trf.xlu0
        %v2727 = vpop.trf.xlu0
        %v2728 = vpop.trf.xlu0
        %v2729 = vpop.trf.xlu0
        %v2730 = vpop.trf.xlu0
        %v2731 = vpop.trf.xlu0
        %v2732 = vpop.trf.xlu0
        %v2733 = vpop.trf.xlu0
        %v2735 = vsel %vm1290, %v2718, 0
        %v2738 = vsel %vm1290, %v2719, 0
        %v2741 = vsel %vm1290, %v2720, 0
        %v2744 = vsel %vm1290, %v2721, 0
        %v2747 = vsel %vm1290, %v2722, 0
        %v2750 = vsel %vm1290, %v2723, 0
        %v2753 = vsel %vm1290, %v2724, 0
        %v2756 = vsel %vm1290, %v2725, 0
        %v2759 = vsel %vm1290, %v2726, 0
        %v2762 = vsel %vm1290, %v2727, 0
        %v2765 = vsel %vm1290, %v2728, 0
        %v2768 = vsel %vm1290, %v2729, 0
        %v2771 = vsel %vm1290, %v2730, 0
        %v2774 = vsel %vm1290, %v2731, 0
        %v2777 = vsel %vm1290, %v2732, 0
        %v2780 = vsel %vm1290, %v2733, 0
        %2782 = vmatprep.subr.mxu0 0.0
        %2783 = vmatpush1.msra.mxu0 %v2694
        %2784 = vmatprep.subr.mxu0 0.0
        %2785 = vmatpush1.msra.mxu0 %v2695
        %2786 = vmatprep.subr.mxu0 0.0
        %2787 = vmatpush1.msra.mxu0 %v2696
        %2788 = vmatprep.subr.mxu0 0.0
        %2789 = vmatpush1.msra.mxu0 %v2697
        %2790 = vmatprep.subr.mxu0 0.0
        %2791 = vmatpush1.msra.mxu0 0.0
        %2792 = vmatprep.subr.mxu0 0.0
        %2793 = vmatpush1.msra.mxu0 0.0
        %2794 = vmatprep.subr.mxu0 0.0
        %2795 = vmatpush1.msra.mxu0 0.0
        %2796 = vmatprep.subr.mxu0 0.0
        %2797 = vmatpush1.msra.mxu0 0.0
        %2798 = vmatprep.subr.mxu0 0.0
        %2799 = vmatpush1.msra.mxu0 0.0
        %2800 = vmatprep.subr.mxu0 0.0
        %2801 = vmatpush1.msra.mxu0 0.0
        %2802 = vmatprep.subr.mxu0 0.0
        %2803 = vmatpush1.msra.mxu0 0.0
        %2804 = vmatprep.subr.mxu0 0.0
        %2805 = vmatpush1.msra.mxu0 0.0
        %2806 = vmatprep.subr.mxu0 0.0
        %2807 = vmatpush1.msra.mxu0 0.0
        %2808 = vmatprep.subr.mxu0 0.0
        %2809 = vmatpush1.msra.mxu0 0.0
        %2810 = vmatprep.subr.mxu0 0.0
        %2811 = vmatpush1.msra.mxu0 0.0
        %2812 = vmatprep.subr.mxu0 0.0
        %2813 = vmatpush1.msra.mxu0 0.0
        %2814 = vmatprep.subr.mxu0 0.0
        %2815 = vmatpush1.msra.mxu0 0.0
        %2816 = vmatprep.subr.mxu0 0.0
        %2817 = vmatpush1.msra.mxu0 0.0
        %2818 = vmatprep.subr.mxu0 0.0
        %2819 = vmatpush1.msra.mxu0 0.0
        %2820 = vmatprep.subr.mxu0 0.0
        %2821 = vmatpush1.msra.mxu0 0.0
        %2822 = vmatprep.subr.mxu0 0.0
        %2823 = vmatpush1.msra.mxu0 0.0
        %2824 = vmatprep.subr.mxu0 0.0
        %2825 = vmatpush1.msra.mxu0 0.0
        %2826 = vmatprep.subr.mxu0 0.0
        %2827 = vmatpush1.msra.mxu0 0.0
        %2828 = vmatprep.subr.mxu0 0.0
        %2829 = vmatpush1.msra.mxu0 0.0
        %2830 = vmatprep.subr.mxu0 0.0
        %2831 = vmatpush1.msra.mxu0 0.0
        %2832 = vmatprep.subr.mxu0 0.0
        %2833 = vmatpush1.msra.mxu0 0.0
        %2834 = vmatprep.subr.mxu0 0.0
        %2835 = vmatpush1.msra.mxu0 0.0
        %2836 = vmatprep.subr.mxu0 0.0
        %2837 = vmatpush1.msra.mxu0 0.0
        %2838 = vmatprep.subr.mxu0 0.0
        %2839 = vmatpush1.msra.mxu0 0.0
        %2840 = vmatprep.subr.mxu0 0.0
        %2841 = vmatpush1.msra.mxu0 0.0
        %2842 = vmatprep.subr.mxu0 0.0
        %2843 = vmatpush1.msra.mxu0 0.0
        %2844 = vmatprep.subr.mxu0 0.0
        %2845 = vmatpush1.msra.mxu0 0.0
        %2846 = vmatprep.mubr.f32.mxu0 0.0
        %2847 = vmatmul.mubr.f32.gmra.mrb[0].mxu0 %v2735
        %v2848 = vpop.f32.mrb[0].mxu0
        %v2849 = vadd.f32 0.0, %v2848
        %v2850 = vpop.f32.mrb[0].mxu0
        %2851 = vmatprep.mubr.f32.mxu0 0.0
        %2852 = vmatmul.mubr.f32.gmra.mrb[0].mxu0 %v2738
        %v2853 = vpop.f32.mrb[0].mxu0
        %v2854 = vadd.f32 0.0, %v2853
        %v2855 = vpop.f32.mrb[0].mxu0
        %2856 = vmatprep.mubr.f32.mxu0 0.0
        %2857 = vmatmul.mubr.f32.gmra.mrb[0].mxu0 %v2741
        %v2858 = vpop.f32.mrb[0].mxu0
        %v2859 = vadd.f32 0.0, %v2858
        %v2860 = vpop.f32.mrb[0].mxu0
        %2861 = vmatprep.mubr.f32.mxu0 0.0
        %2862 = vmatmul.mubr.f32.gmra.mrb[0].mxu0 %v2744
        %v2863 = vpop.f32.mrb[0].mxu0
        %v2864 = vadd.f32 0.0, %v2863
        %v2865 = vpop.f32.mrb[0].mxu0
        %2866 = vmatprep.mubr.f32.mxu0 0.0
        %2867 = vmatmul.mubr.f32.gmra.mrb[0].mxu0 %v2747
        %v2868 = vpop.f32.mrb[0].mxu0
        %v2869 = vadd.f32 0.0, %v2868
        %v2870 = vpop.f32.mrb[0].mxu0
        %2871 = vmatprep.mubr.f32.mxu0 0.0
        %2872 = vmatmul.mubr.f32.gmra.mrb[0].mxu0 %v2750
        %v2873 = vpop.f32.mrb[0].mxu0
        %v2874 = vadd.f32 0.0, %v2873
        %v2875 = vpop.f32.mrb[0].mxu0
        %2876 = vmatprep.mubr.f32.mxu0 0.0
        %2877 = vmatmul.mubr.f32.gmra.mrb[0].mxu0 %v2753
        %v2878 = vpop.f32.mrb[0].mxu0
        %v2879 = vadd.f32 0.0, %v2878
        %v2880 = vpop.f32.mrb[0].mxu0
        %2881 = vmatprep.mubr.f32.mxu0 0.0
        %2882 = vmatmul.mubr.f32.gmra.mrb[0].mxu0 %v2756
        %v2883 = vpop.f32.mrb[0].mxu0
        %v2884 = vadd.f32 0.0, %v2883
        %v2885 = vpop.f32.mrb[0].mxu0
        %2886 = vmatprep.mubr.f32.mxu0 0.0
        %2887 = vmatmul.mubr.f32.gmra.mrb[0].mxu0 %v2759
        %v2888 = vpop.f32.mrb[0].mxu0
        %v2889 = vadd.f32 0.0, %v2888
        %v2890 = vpop.f32.mrb[0].mxu0
        %2891 = vmatprep.mubr.f32.mxu0 0.0
        %2892 = vmatmul.mubr.f32.gmra.mrb[0].mxu0 %v2762
        %v2893 = vpop.f32.mrb[0].mxu0
        %v2894 = vadd.f32 0.0, %v2893
        %v2895 = vpop.f32.mrb[0].mxu0
        %2896 = vmatprep.mubr.f32.mxu0 0.0
        %2897 = vmatmul.mubr.f32.gmra.mrb[0].mxu0 %v2765
        %v2898 = vpop.f32.mrb[0].mxu0
        %v2899 = vadd.f32 0.0, %v2898
        %v2900 = vpop.f32.mrb[0].mxu0
        %2901 = vmatprep.mubr.f32.mxu0 0.0
        %2902 = vmatmul.mubr.f32.gmra.mrb[0].mxu0 %v2768
        %v2903 = vpop.f32.mrb[0].mxu0
        %v2904 = vadd.f32 0.0, %v2903
        %v2905 = vpop.f32.mrb[0].mxu0
        %2906 = vmatprep.mubr.f32.mxu0 0.0
        %2907 = vmatmul.mubr.f32.gmra.mrb[0].mxu0 %v2771
        %v2908 = vpop.f32.mrb[0].mxu0
        %v2909 = vadd.f32 0.0, %v2908
        %v2910 = vpop.f32.mrb[0].mxu0
        %2911 = vmatprep.mubr.f32.mxu0 0.0
        %2912 = vmatmul.mubr.f32.gmra.mrb[0].mxu0 %v2774
        %v2913 = vpop.f32.mrb[0].mxu0
        %v2914 = vadd.f32 0.0, %v2913
        %v2915 = vpop.f32.mrb[0].mxu0
        %2916 = vmatprep.mubr.f32.mxu0 0.0
        %2917 = vmatmul.mubr.f32.gmra.mrb[0].mxu0 %v2777
        %v2918 = vpop.f32.mrb[0].mxu0
        %v2919 = vadd.f32 0.0, %v2918
        %v2920 = vpop.f32.mrb[0].mxu0
        %2921 = vmatprep.mubr.f32.mxu0 0.0
        %2922 = vmatmul.mubr.f32.gmra.mrb[0].mxu0 %v2780
        %v2923 = vpop.f32.mrb[0].mxu0
        %v2924 = vadd.f32 0.0, %v2923
        %v2925 = vpop.f32.mrb[0].mxu0
        %2926 = vdwg.mxu0
        %2927 = vmax.xlane.f32.xlu0 %v2849
        %v2928 = vpop.xlane.xlu0 %2927
        %2929 = vmax.xlane.f32.xlu0 %v2854
        %v2930 = vpop.xlane.xlu0 %2929
        %2931 = vmax.xlane.f32.xlu0 %v2859
        %v2932 = vpop.xlane.xlu0 %2931
        %2933 = vmax.xlane.f32.xlu0 %v2864
        %v2934 = vpop.xlane.xlu0 %2933
        %2935 = vmax.xlane.f32.xlu0 %v2869
        %v2936 = vpop.xlane.xlu0 %2935
        %2937 = vmax.xlane.f32.xlu0 %v2874
        %v2938 = vpop.xlane.xlu0 %2937
        %2939 = vmax.xlane.f32.xlu0 %v2879
        %v2940 = vpop.xlane.xlu0 %2939
        %2941 = vmax.xlane.f32.xlu0 %v2884
        %v2942 = vpop.xlane.xlu0 %2941
        %2943 = vmax.xlane.f32.xlu0 %v2889
        %v2944 = vpop.xlane.xlu0 %2943
        %2945 = vmax.xlane.f32.xlu0 %v2894
        %v2946 = vpop.xlane.xlu0 %2945
        %2947 = vmax.xlane.f32.xlu0 %v2899
        %v2948 = vpop.xlane.xlu0 %2947
        %2949 = vmax.xlane.f32.xlu0 %v2904
        %v2950 = vpop.xlane.xlu0 %2949
        %2951 = vmax.xlane.f32.xlu0 %v2909
        %v2952 = vpop.xlane.xlu0 %2951
        %2953 = vmax.xlane.f32.xlu0 %v2914
        %v2954 = vpop.xlane.xlu0 %2953
        %2955 = vmax.xlane.f32.xlu0 %v2919
        %v2956 = vpop.xlane.xlu0 %2955
        %2957 = vmax.xlane.f32.xlu0 %v2924
        %v2958 = vpop.xlane.xlu0 %2957
        %v2959 = vsub.f32 %v2849, %v2928
        %v2960 = vsub.f32 %v2854, %v2930
        %v2961 = vsub.f32 %v2859, %v2932
        %v2962 = vsub.f32 %v2864, %v2934
        %v2963 = vsub.f32 %v2869, %v2936
        %v2964 = vsub.f32 %v2874, %v2938
        %v2965 = vsub.f32 %v2879, %v2940
        %v2966 = vsub.f32 %v2884, %v2942
        %v2967 = vsub.f32 %v2889, %v2944
        %v2968 = vsub.f32 %v2894, %v2946
        %v2969 = vsub.f32 %v2899, %v2948
        %v2970 = vsub.f32 %v2904, %v2950
        %v2971 = vsub.f32 %v2909, %v2952
        %v2972 = vsub.f32 %v2914, %v2954
        %v2973 = vsub.f32 %v2919, %v2956
        %v2974 = vsub.f32 %v2924, %v2958
        %v2975 = vmul.f32 %v2959, 1.442695
        %v2976 = vpow.pop %v2975
        %v2977 = vmul.f32 %v2960, 1.442695
        %v2978 = vpow.pop %v2977
        %v2979 = vmul.f32 %v2961, 1.442695
        %v2980 = vpow.pop %v2979
        %v2981 = vmul.f32 %v2962, 1.442695
        %v2982 = vpow.pop %v2981
        %v2983 = vmul.f32 %v2963, 1.442695
        %v2984 = vpow.pop %v2983
        %v2985 = vmul.f32 %v2964, 1.442695
        %v2986 = vpow.pop %v2985
        %v2987 = vmul.f32 %v2965, 1.442695
        %v2988 = vpow.pop %v2987
        %v2989 = vmul.f32 %v2966, 1.442695
        %v2990 = vpow.pop %v2989
        %v2991 = vmul.f32 %v2967, 1.442695
        %v2992 = vpow.pop %v2991
        %v2993 = vmul.f32 %v2968, 1.442695
        %v2994 = vpow.pop %v2993
        %v2995 = vmul.f32 %v2969, 1.442695
        %v2996 = vpow.pop %v2995
        %v2997 = vmul.f32 %v2970, 1.442695
        %v2998 = vpow.pop %v2997
        %v2999 = vmul.f32 %v2971, 1.442695
        %v3000 = vpow.pop %v2999
        %v3001 = vmul.f32 %v2972, 1.442695
        %v3002 = vpow.pop %v3001
        %v3003 = vmul.f32 %v2973, 1.442695
        %v3004 = vpow.pop %v3003
        %v3005 = vmul.f32 %v2974, 1.442695
        %v3006 = vpow.pop %v3005
        %3007 = vmatprep.subr.mxu0 0.0
        %3008 = vmatpush1.xpose.msra.mxu0 %v2976
        %3009 = vmatprep.subr.mxu0 0.0
        %3010 = vmatpush1.xpose.msra.mxu0 %v2978
        %3011 = vmatprep.subr.mxu0 0.0
        %3012 = vmatpush1.xpose.msra.mxu0 %v2980
        %3013 = vmatprep.subr.mxu0 0.0
        %3014 = vmatpush1.xpose.msra.mxu0 %v2982
        %3015 = vmatprep.subr.mxu0 0.0
        %3016 = vmatpush1.xpose.msra.mxu0 %v2984
        %3017 = vmatprep.subr.mxu0 0.0
        %3018 = vmatpush1.xpose.msra.mxu0 %v2986
        %3019 = vmatprep.subr.mxu0 0.0
        %3020 = vmatpush1.xpose.msra.mxu0 %v2988
        %3021 = vmatprep.subr.mxu0 0.0
        %3022 = vmatpush1.xpose.msra.mxu0 %v2990
        %3023 = vmatprep.subr.mxu0 0.0
        %3024 = vmatpush1.xpose.msra.mxu0 %v2992
        %3025 = vmatprep.subr.mxu0 0.0
        %3026 = vmatpush1.xpose.msra.mxu0 %v2994
        %3027 = vmatprep.subr.mxu0 0.0
        %3028 = vmatpush1.xpose.msra.mxu0 %v2996
        %3029 = vmatprep.subr.mxu0 0.0
        %3030 = vmatpush1.xpose.msra.mxu0 %v2998
        %3031 = vmatprep.subr.mxu0 0.0
        %3032 = vmatpush1.xpose.msra.mxu0 %v3000
        %3033 = vmatprep.subr.mxu0 0.0
        %3034 = vmatpush1.xpose.msra.mxu0 %v3002
        %3035 = vmatprep.subr.mxu0 0.0
        %3036 = vmatpush1.xpose.msra.mxu0 %v3004
        %3037 = vmatprep.subr.mxu0 0.0
        %3038 = vmatpush1.xpose.msra.mxu0 %v3006
        %3039 = vmatprep.subr.mxu0 0.0
        %3040 = vmatpush1.xpose.msra.mxu0 0.0
        %3041 = vmatprep.subr.mxu0 0.0
        %3042 = vmatpush1.xpose.msra.mxu0 0.0
        %3043 = vmatprep.subr.mxu0 0.0
        %3044 = vmatpush1.xpose.msra.mxu0 0.0
        %3045 = vmatprep.subr.mxu0 0.0
        %3046 = vmatpush1.xpose.msra.mxu0 0.0
        %3047 = vmatprep.subr.mxu0 0.0
        %3048 = vmatpush1.xpose.msra.mxu0 0.0
        %3049 = vmatprep.subr.mxu0 0.0
        %3050 = vmatpush1.xpose.msra.mxu0 0.0
        %3051 = vmatprep.subr.mxu0 0.0
        %3052 = vmatpush1.xpose.msra.mxu0 0.0
        %3053 = vmatprep.subr.mxu0 0.0
        %3054 = vmatpush1.xpose.msra.mxu0 0.0
        %3055 = vmatprep.subr.mxu0 0.0
        %3056 = vmatpush1.xpose.msra.mxu0 0.0
        %3057 = vmatprep.subr.mxu0 0.0
        %3058 = vmatpush1.xpose.msra.mxu0 0.0
        %3059 = vmatprep.subr.mxu0 0.0
        %3060 = vmatpush1.xpose.msra.mxu0 0.0
        %3061 = vmatprep.subr.mxu0 0.0
        %3062 = vmatpush1.xpose.msra.mxu0 0.0
        %3063 = vmatprep.subr.mxu0 0.0
        %3064 = vmatpush1.xpose.msra.mxu0 0.0
        %3065 = vmatprep.subr.mxu0 0.0
        %3066 = vmatpush1.xpose.msra.mxu0 0.0
        %3067 = vmatprep.subr.mxu0 0.0
        %3068 = vmatpush1.xpose.msra.mxu0 0.0
        %3069 = vmatprep.subr.mxu0 0.0
        %3070 = vmatpush1.xpose.msra.mxu0 0.0
        %3071 = vmatprep.mubr.f32.mxu0 0.0
        %3072 = vmatmul.mubr.f32.gmra.mrb[0].mxu0 1.0
        %v3073 = vpop.f32.mrb[0].mxu0
        %v3074 = vadd.f32 0.0, %v3073
        %v3075 = vpop.f32.mrb[0].mxu0
        %3076 = vdwg.mxu0
        %v3077 = vrcp.pop %v3074
        %3078 = vmatprep.subr.mxu0 0.0
        %3079 = vmatpush1.xpose.msra.mxu0 %v2976
        %3080 = vmatprep.subr.mxu0 0.0
        %3081 = vmatpush1.xpose.msra.mxu0 %v2978
        %3082 = vmatprep.subr.mxu0 0.0
        %3083 = vmatpush1.xpose.msra.mxu0 %v2980
        %3084 = vmatprep.subr.mxu0 0.0
        %3085 = vmatpush1.xpose.msra.mxu0 %v2982
        %3086 = vmatprep.subr.mxu0 0.0
        %3087 = vmatpush1.xpose.msra.mxu0 %v2984
        %3088 = vmatprep.subr.mxu0 0.0
        %3089 = vmatpush1.xpose.msra.mxu0 %v2986
        %3090 = vmatprep.subr.mxu0 0.0
        %3091 = vmatpush1.xpose.msra.mxu0 %v2988
        %3092 = vmatprep.subr.mxu0 0.0
        %3093 = vmatpush1.xpose.msra.mxu0 %v2990
        %3094 = vmatprep.subr.mxu0 0.0
        %3095 = vmatpush1.xpose.msra.mxu0 %v2992
        %3096 = vmatprep.subr.mxu0 0.0
        %3097 = vmatpush1.xpose.msra.mxu0 %v2994
        %3098 = vmatprep.subr.mxu0 0.0
        %3099 = vmatpush1.xpose.msra.mxu0 %v2996
        %3100 = vmatprep.subr.mxu0 0.0
        %3101 = vmatpush1.xpose.msra.mxu0 %v2998
        %3102 = vmatprep.subr.mxu0 0.0
        %3103 = vmatpush1.xpose.msra.mxu0 %v3000
        %3104 = vmatprep.subr.mxu0 0.0
        %3105 = vmatpush1.xpose.msra.mxu0 %v3002
        %3106 = vmatprep.subr.mxu0 0.0
        %3107 = vmatpush1.xpose.msra.mxu0 %v3004
        %3108 = vmatprep.subr.mxu0 0.0
        %3109 = vmatpush1.xpose.msra.mxu0 %v3006
        %3110 = vmatprep.subr.mxu0 0.0
        %3111 = vmatpush1.xpose.msra.mxu0 0.0
        %3112 = vmatprep.subr.mxu0 0.0
        %3113 = vmatpush1.xpose.msra.mxu0 0.0
        %3114 = vmatprep.subr.mxu0 0.0
        %3115 = vmatpush1.xpose.msra.mxu0 0.0
        %3116 = vmatprep.subr.mxu0 0.0
        %3117 = vmatpush1.xpose.msra.mxu0 0.0
        %3118 = vmatprep.subr.mxu0 0.0
        %3119 = vmatpush1.xpose.msra.mxu0 0.0
        %3120 = vmatprep.subr.mxu0 0.0
        %3121 = vmatpush1.xpose.msra.mxu0 0.0
        %3122 = vmatprep.subr.mxu0 0.0
        %3123 = vmatpush1.xpose.msra.mxu0 0.0
        %3124 = vmatprep.subr.mxu0 0.0
        %3125 = vmatpush1.xpose.msra.mxu0 0.0
        %3126 = vmatprep.subr.mxu0 0.0
        %3127 = vmatpush1.xpose.msra.mxu0 0.0
        %3128 = vmatprep.subr.mxu0 0.0
        %3129 = vmatpush1.xpose.msra.mxu0 0.0
        %3130 = vmatprep.subr.mxu0 0.0
        %3131 = vmatpush1.xpose.msra.mxu0 0.0
        %3132 = vmatprep.subr.mxu0 0.0
        %3133 = vmatpush1.xpose.msra.mxu0 0.0
        %3134 = vmatprep.subr.mxu0 0.0
        %3135 = vmatpush1.xpose.msra.mxu0 0.0
        %3136 = vmatprep.subr.mxu0 0.0
        %3137 = vmatpush1.xpose.msra.mxu0 0.0
        %3138 = vmatprep.subr.mxu0 0.0
        %3139 = vmatpush1.xpose.msra.mxu0 0.0
        %3140 = vmatprep.subr.mxu0 0.0
        %3141 = vmatpush1.xpose.msra.mxu0 0.0
        %3142 = vmatprep.mubr.f32.mxu0 0.0
        %3143 = vmatmul.mubr.f32.gmra.mrb[0].mxu0 %v2698
        %v3144 = vpop.f32.mrb[0].mxu0
        %v3145 = vadd.f32 0.0, %v3144
        %v3146 = vpop.f32.mrb[0].mxu0
        %3147 = vmatprep.mubr.f32.mxu0 0.0
        %3148 = vmatmul.mubr.f32.gmra.mrb[0].mxu0 %v2699
        %v3149 = vpop.f32.mrb[0].mxu0
        %v3150 = vadd.f32 0.0, %v3149
        %v3151 = vpop.f32.mrb[0].mxu0
        %3152 = vmatprep.mubr.f32.mxu0 0.0
        %3153 = vmatmul.mubr.f32.gmra.mrb[0].mxu0 %v2700
        %v3154 = vpop.f32.mrb[0].mxu0
        %v3155 = vadd.f32 0.0, %v3154
        %v3156 = vpop.f32.mrb[0].mxu0
        %3157 = vmatprep.mubr.f32.mxu0 0.0
        %3158 = vmatmul.mubr.f32.gmra.mrb[0].mxu0 %v2701
        %v3159 = vpop.f32.mrb[0].mxu0
        %v3160 = vadd.f32 0.0, %v3159
        %v3161 = vpop.f32.mrb[0].mxu0
        %3162 = vdwg.mxu0
        %v3163 = vlaneseq
        %v3164 = vshrl.u32 %v3163, 7
        %v3165 = vsub.s32 0, %v3164
        %v3166 = vrot.slane %v3077, %v3165
        %v3167 = vmul.f32 %v3145, %v3166
        %v3168 = vmul.f32 %v3150, %v3166
        %v3169 = vmul.f32 %v3155, %v3166
        %v3170 = vmul.f32 %v3160, %v3166
        %3171 = vst [vmem:[#allocation3 + $0x60] sm:$0xff] %v3167
        %3172 = vst [vmem:[#allocation3 + $0x68] sm:$0xff] %v3168
        %3173 = vst [vmem:[#allocation3 + $0x70] sm:$0xff] %v3169
        %3174 = vst [vmem:[#allocation3 + $0x78] sm:$0xff] %v3170
        %v3175 = vld [vmem:[#allocation9] sm:$0xff]
        %v3176 = vld [vmem:[#allocation9 + $0x8] sm:$0xff]
        %v3177 = vld [vmem:[#allocation9 + $0x10] sm:$0xff]
        %v3178 = vld [vmem:[#allocation9 + $0x18] sm:$0xff]
        %v3179 = vld [vmem:[#allocation9 + $0x20] sm:$0xff]
        %v3180 = vld [vmem:[#allocation9 + $0x28] sm:$0xff]
        %v3181 = vld [vmem:[#allocation9 + $0x30] sm:$0xff]
        %v3182 = vld [vmem:[#allocation9 + $0x38] sm:$0xff]
        %v3183 = vld [vmem:[#allocation9 + $0x40] sm:$0xff]
        %v3184 = vld [vmem:[#allocation9 + $0x48] sm:$0xff]
        %v3185 = vld [vmem:[#allocation9 + $0x50] sm:$0xff]
        %v3186 = vld [vmem:[#allocation9 + $0x58] sm:$0xff]
        %v3187 = vld [vmem:[#allocation9 + $0x60] sm:$0xff]
        %v3188 = vld [vmem:[#allocation9 + $0x68] sm:$0xff]
        %v3189 = vld [vmem:[#allocation9 + $0x70] sm:$0xff]
        %v3190 = vld [vmem:[#allocation9 + $0x78] sm:$0xff]
        %v3191 = vld [vmem:[#allocation3] sm:$0xff]
        %v3192 = vld [vmem:[#allocation3 + $0x8] sm:$0xff]
        %v3193 = vld [vmem:[#allocation3 + $0x10] sm:$0xff]
        %v3194 = vld [vmem:[#allocation3 + $0x18] sm:$0xff]
        %v3195 = vld [vmem:[#allocation3 + $0x20] sm:$0xff]
        %v3196 = vld [vmem:[#allocation3 + $0x28] sm:$0xff]
        %v3197 = vld [vmem:[#allocation3 + $0x30] sm:$0xff]
        %v3198 = vld [vmem:[#allocation3 + $0x38] sm:$0xff]
        %v3199 = vld [vmem:[#allocation3 + $0x40] sm:$0xff]
        %v3200 = vld [vmem:[#allocation3 + $0x48] sm:$0xff]
        %v3201 = vld [vmem:[#allocation3 + $0x50] sm:$0xff]
        %v3202 = vld [vmem:[#allocation3 + $0x58] sm:$0xff]
        %v3203 = vld [vmem:[#allocation3 + $0x60] sm:$0xff]
        %v3204 = vld [vmem:[#allocation3 + $0x68] sm:$0xff]
        %v3205 = vld [vmem:[#allocation3 + $0x70] sm:$0xff]
        %v3206 = vld [vmem:[#allocation3 + $0x78] sm:$0xff]
        %v3207 = vld [vmem:[%s7] sm:$0xff]
        %v3208 = vld [vmem:[%s7 + $0x8] sm:$0xff]
        %v3209 = vld [vmem:[%s7 + $0x10] sm:$0xff]
        %v3210 = vld [vmem:[%s7 + $0x18] sm:$0xff]
        %v3211 = vld [vmem:[%s7 + $0x20] sm:$0xff]
        %v3212 = vld [vmem:[%s7 + $0x28] sm:$0xff]
        %v3213 = vld [vmem:[%s7 + $0x30] sm:$0xff]
        %v3214 = vld [vmem:[%s7 + $0x38] sm:$0xff]
        %v3215 = vld [vmem:[%s7 + $0x40] sm:$0xff]
        %v3216 = vld [vmem:[%s7 + $0x48] sm:$0xff]
        %v3217 = vld [vmem:[%s7 + $0x50] sm:$0xff]
        %v3218 = vld [vmem:[%s7 + $0x58] sm:$0xff]
        %v3219 = vld [vmem:[%s7 + $0x60] sm:$0xff]
        %v3220 = vld [vmem:[%s7 + $0x68] sm:$0xff]
        %v3221 = vld [vmem:[%s7 + $0x70] sm:$0xff]
        %v3222 = vld [vmem:[%s7 + $0x78] sm:$0xff]
        %3224 = vset.pattern.permute.xlu0 0
        %3225 = vperm.xlu0 %3224, %v3207
        %v3226 = vpop.permute.xlu0 %3225
        %3229 = vset.pattern.permute.xlu0 0
        %3230 = vperm.xlu0 %3229, %v3208
        %v3231 = vpop.permute.xlu0 %3230
        %3234 = vset.pattern.permute.xlu0 0
        %3235 = vperm.xlu0 %3234, %v3209
        %v3236 = vpop.permute.xlu0 %3235
        %3239 = vset.pattern.permute.xlu0 0
        %3240 = vperm.xlu0 %3239, %v3210
        %v3241 = vpop.permute.xlu0 %3240
        %3244 = vset.pattern.permute.xlu0 0
        %3245 = vperm.xlu0 %3244, %v3211
        %v3246 = vpop.permute.xlu0 %3245
        %3249 = vset.pattern.permute.xlu0 0
        %3250 = vperm.xlu0 %3249, %v3212
        %v3251 = vpop.permute.xlu0 %3250
        %3254 = vset.pattern.permute.xlu0 0
        %3255 = vperm.xlu0 %3254, %v3213
        %v3256 = vpop.permute.xlu0 %3255
        %3259 = vset.pattern.permute.xlu0 0
        %3260 = vperm.xlu0 %3259, %v3214
        %v3261 = vpop.permute.xlu0 %3260
        %3264 = vset.pattern.permute.xlu0 0
        %3265 = vperm.xlu0 %3264, %v3215
        %v3266 = vpop.permute.xlu0 %3265
        %3269 = vset.pattern.permute.xlu0 0
        %3270 = vperm.xlu0 %3269, %v3216
        %v3271 = vpop.permute.xlu0 %3270
        %3274 = vset.pattern.permute.xlu0 0
        %3275 = vperm.xlu0 %3274, %v3217
        %v3276 = vpop.permute.xlu0 %3275
        %3279 = vset.pattern.permute.xlu0 0
        %3280 = vperm.xlu0 %3279, %v3218
        %v3281 = vpop.permute.xlu0 %3280
        %3284 = vset.pattern.permute.xlu0 0
        %3285 = vperm.xlu0 %3284, %v3219
        %v3286 = vpop.permute.xlu0 %3285
        %3289 = vset.pattern.permute.xlu0 0
        %3290 = vperm.xlu0 %3289, %v3220
        %v3291 = vpop.permute.xlu0 %3290
        %3294 = vset.pattern.permute.xlu0 0
        %3295 = vperm.xlu0 %3294, %v3221
        %v3296 = vpop.permute.xlu0 %3295
        %3299 = vset.pattern.permute.xlu0 0
        %3300 = vperm.xlu0 %3299, %v3222
        %v3301 = vpop.permute.xlu0 %3300
        %3303 = vmatprep.subr.mxu0 0.0
        %3304 = vmatpush1.msra.mxu0 %v3191
        %3305 = vmatprep.subr.mxu0 0.0
        %3306 = vmatpush1.msra.mxu0 %v3192
        %3307 = vmatprep.subr.mxu0 0.0
        %3308 = vmatpush1.msra.mxu0 %v3193
        %3309 = vmatprep.subr.mxu0 0.0
        %3310 = vmatpush1.msra.mxu0 %v3194
        %3311 = vmatprep.subr.mxu0 0.0
        %3312 = vmatpush1.msra.mxu0 %v3195
        %3313 = vmatprep.subr.mxu0 0.0
        %3314 = vmatpush1.msra.mxu0 %v3196
        %3315 = vmatprep.subr.mxu0 0.0
        %3316 = vmatpush1.msra.mxu0 %v3197
        %3317 = vmatprep.subr.mxu0 0.0
        %3318 = vmatpush1.msra.mxu0 %v3198
        %3319 = vmatprep.subr.mxu0 0.0
        %3320 = vmatpush1.msra.mxu0 %v3199
        %3321 = vmatprep.subr.mxu0 0.0
        %3322 = vmatpush1.msra.mxu0 %v3200
        %3323 = vmatprep.subr.mxu0 0.0
        %3324 = vmatpush1.msra.mxu0 %v3201
        %3325 = vmatprep.subr.mxu0 0.0
        %3326 = vmatpush1.msra.mxu0 %v3202
        %3327 = vmatprep.subr.mxu0 0.0
        %3328 = vmatpush1.msra.mxu0 %v3203
        %3329 = vmatprep.subr.mxu0 0.0
        %3330 = vmatpush1.msra.mxu0 %v3204
        %3331 = vmatprep.subr.mxu0 0.0
        %3332 = vmatpush1.msra.mxu0 %v3205
        %3333 = vmatprep.subr.mxu0 0.0
        %3334 = vmatpush1.msra.mxu0 %v3206
        %3335 = vmatprep.subr.mxu0 0.0
        %3336 = vmatpush1.msra.mxu0 0.0
        %3337 = vmatprep.subr.mxu0 0.0
        %3338 = vmatpush1.msra.mxu0 0.0
        %3339 = vmatprep.subr.mxu0 0.0
        %3340 = vmatpush1.msra.mxu0 0.0
        %3341 = vmatprep.subr.mxu0 0.0
        %3342 = vmatpush1.msra.mxu0 0.0
        %3343 = vmatprep.subr.mxu0 0.0
        %3344 = vmatpush1.msra.mxu0 0.0
        %3345 = vmatprep.subr.mxu0 0.0
        %3346 = vmatpush1.msra.mxu0 0.0
        %3347 = vmatprep.subr.mxu0 0.0
        %3348 = vmatpush1.msra.mxu0 0.0
        %3349 = vmatprep.subr.mxu0 0.0
        %3350 = vmatpush1.msra.mxu0 0.0
        %3351 = vmatprep.subr.mxu0 0.0
        %3352 = vmatpush1.msra.mxu0 0.0
        %3353 = vmatprep.subr.mxu0 0.0
        %3354 = vmatpush1.msra.mxu0 0.0
        %3355 = vmatprep.subr.mxu0 0.0
        %3356 = vmatpush1.msra.mxu0 0.0
        %3357 = vmatprep.subr.mxu0 0.0
        %3358 = vmatpush1.msra.mxu0 0.0
        %3359 = vmatprep.subr.mxu0 0.0
        %3360 = vmatpush1.msra.mxu0 0.0
        %3361 = vmatprep.subr.mxu0 0.0
        %3362 = vmatpush1.msra.mxu0 0.0
        %3363 = vmatprep.subr.mxu0 0.0
        %3364 = vmatpush1.msra.mxu0 0.0
        %3365 = vmatprep.subr.mxu0 0.0
        %3366 = vmatpush1.msra.mxu0 0.0
        %3367 = vmatprep.mubr.f32.mxu0 0.0
        %3368 = vmatmul.mubr.f32.gmra.mrb[0].mxu0 %v3175
        %v3369 = vpop.f32.mrb[0].mxu0
        %v3370 = vadd.f32 %v3226, %v3369
        %v3371 = vpop.f32.mrb[0].mxu0
        %3372 = vmatprep.mubr.f32.mxu0 0.0
        %3373 = vmatmul.mubr.f32.gmra.mrb[0].mxu0 %v3176
        %v3374 = vpop.f32.mrb[0].mxu0
        %v3375 = vadd.f32 %v3231, %v3374
        %v3376 = vpop.f32.mrb[0].mxu0
        %3377 = vmatprep.mubr.f32.mxu0 0.0
        %3378 = vmatmul.mubr.f32.gmra.mrb[0].mxu0 %v3177
        %v3379 = vpop.f32.mrb[0].mxu0
        %v3380 = vadd.f32 %v3236, %v3379
        %v3381 = vpop.f32.mrb[0].mxu0
        %3382 = vmatprep.mubr.f32.mxu0 0.0
        %3383 = vmatmul.mubr.f32.gmra.mrb[0].mxu0 %v3178
        %v3384 = vpop.f32.mrb[0].mxu0
        %v3385 = vadd.f32 %v3241, %v3384
        %v3386 = vpop.f32.mrb[0].mxu0
        %3387 = vmatprep.mubr.f32.mxu0 0.0
        %3388 = vmatmul.mubr.f32.gmra.mrb[0].mxu0 %v3179
        %v3389 = vpop.f32.mrb[0].mxu0
        %v3390 = vadd.f32 %v3246, %v3389
        %v3391 = vpop.f32.mrb[0].mxu0
        %3392 = vmatprep.mubr.f32.mxu0 0.0
        %3393 = vmatmul.mubr.f32.gmra.mrb[0].mxu0 %v3180
        %v3394 = vpop.f32.mrb[0].mxu0
        %v3395 = vadd.f32 %v3251, %v3394
        %v3396 = vpop.f32.mrb[0].mxu0
        %3397 = vmatprep.mubr.f32.mxu0 0.0
        %3398 = vmatmul.mubr.f32.gmra.mrb[0].mxu0 %v3181
        %v3399 = vpop.f32.mrb[0].mxu0
        %v3400 = vadd.f32 %v3256, %v3399
        %v3401 = vpop.f32.mrb[0].mxu0
        %3402 = vmatprep.mubr.f32.mxu0 0.0
        %3403 = vmatmul.mubr.f32.gmra.mrb[0].mxu0 %v3182
        %v3404 = vpop.f32.mrb[0].mxu0
        %v3405 = vadd.f32 %v3261, %v3404
        %v3406 = vpop.f32.mrb[0].mxu0
        %3407 = vmatprep.mubr.f32.mxu0 0.0
        %3408 = vmatmul.mubr.f32.gmra.mrb[0].mxu0 %v3183
        %v3409 = vpop.f32.mrb[0].mxu0
        %v3410 = vadd.f32 %v3266, %v3409
        %v3411 = vpop.f32.mrb[0].mxu0
        %3412 = vmatprep.mubr.f32.mxu0 0.0
        %3413 = vmatmul.mubr.f32.gmra.mrb[0].mxu0 %v3184
        %v3414 = vpop.f32.mrb[0].mxu0
        %v3415 = vadd.f32 %v3271, %v3414
        %v3416 = vpop.f32.mrb[0].mxu0
        %3417 = vmatprep.mubr.f32.mxu0 0.0
        %3418 = vmatmul.mubr.f32.gmra.mrb[0].mxu0 %v3185
        %v3419 = vpop.f32.mrb[0].mxu0
        %v3420 = vadd.f32 %v3276, %v3419
        %v3421 = vpop.f32.mrb[0].mxu0
        %3422 = vmatprep.mubr.f32.mxu0 0.0
        %3423 = vmatmul.mubr.f32.gmra.mrb[0].mxu0 %v3186
        %v3424 = vpop.f32.mrb[0].mxu0
        %v3425 = vadd.f32 %v3281, %v3424
        %v3426 = vpop.f32.mrb[0].mxu0
        %3427 = vmatprep.mubr.f32.mxu0 0.0
        %3428 = vmatmul.mubr.f32.gmra.mrb[0].mxu0 %v3187
        %v3429 = vpop.f32.mrb[0].mxu0
        %v3430 = vadd.f32 %v3286, %v3429
        %v3431 = vpop.f32.mrb[0].mxu0
        %3432 = vmatprep.mubr.f32.mxu0 0.0
        %3433 = vmatmul.mubr.f32.gmra.mrb[0].mxu0 %v3188
        %v3434 = vpop.f32.mrb[0].mxu0
        %v3435 = vadd.f32 %v3291, %v3434
        %v3436 = vpop.f32.mrb[0].mxu0
        %3437 = vmatprep.mubr.f32.mxu0 0.0
        %3438 = vmatmul.mubr.f32.gmra.mrb[0].mxu0 %v3189
        %v3439 = vpop.f32.mrb[0].mxu0
        %v3440 = vadd.f32 %v3296, %v3439
        %v3441 = vpop.f32.mrb[0].mxu0
        %3442 = vmatprep.mubr.f32.mxu0 0.0
        %3443 = vmatmul.mubr.f32.gmra.mrb[0].mxu0 %v3190
        %v3444 = vpop.f32.mrb[0].mxu0
        %v3445 = vadd.f32 %v3301, %v3444
        %v3446 = vpop.f32.mrb[0].mxu0
        %3447 = vdwg.mxu0
        %v3448 = vld [vmem:[#allocation10] sm:$0xff]
        %v3449 = vld [vmem:[#allocation10 + $0x8] sm:$0xff]
        %v3450 = vld [vmem:[#allocation10 + $0x10] sm:$0xff]
        %v3451 = vld [vmem:[#allocation10 + $0x18] sm:$0xff]
        %v3452 = vld [vmem:[#allocation10 + $0x20] sm:$0xff]
        %v3453 = vld [vmem:[#allocation10 + $0x28] sm:$0xff]
        %v3454 = vld [vmem:[#allocation10 + $0x30] sm:$0xff]
        %v3455 = vld [vmem:[#allocation10 + $0x38] sm:$0xff]
        %v3456 = vld [vmem:[#allocation10 + $0x40] sm:$0xff]
        %v3457 = vld [vmem:[#allocation10 + $0x48] sm:$0xff]
        %v3458 = vld [vmem:[#allocation10 + $0x50] sm:$0xff]
        %v3459 = vld [vmem:[#allocation10 + $0x58] sm:$0xff]
        %v3460 = vld [vmem:[#allocation10 + $0x60] sm:$0xff]
        %v3461 = vld [vmem:[#allocation10 + $0x68] sm:$0xff]
        %v3462 = vld [vmem:[#allocation10 + $0x70] sm:$0xff]
        %v3463 = vld [vmem:[#allocation10 + $0x78] sm:$0xff]
        %v3464 = vld [vmem:[#allocation12] sm:$0xff]
        %v3465 = vld [vmem:[#allocation12 + $0x8] sm:$0xff]
        %v3466 = vld [vmem:[#allocation12 + $0x10] sm:$0xff]
        %v3467 = vld [vmem:[#allocation12 + $0x18] sm:$0xff]
        %v3468 = vld [vmem:[#allocation12 + $0x20] sm:$0xff]
        %v3469 = vld [vmem:[#allocation12 + $0x28] sm:$0xff]
        %v3470 = vld [vmem:[#allocation12 + $0x30] sm:$0xff]
        %v3471 = vld [vmem:[#allocation12 + $0x38] sm:$0xff]
        %v3472 = vld [vmem:[#allocation12 + $0x40] sm:$0xff]
        %v3473 = vld [vmem:[#allocation12 + $0x48] sm:$0xff]
        %v3474 = vld [vmem:[#allocation12 + $0x50] sm:$0xff]
        %v3475 = vld [vmem:[#allocation12 + $0x58] sm:$0xff]
        %v3476 = vld [vmem:[#allocation12 + $0x60] sm:$0xff]
        %v3477 = vld [vmem:[#allocation12 + $0x68] sm:$0xff]
        %v3478 = vld [vmem:[#allocation12 + $0x70] sm:$0xff]
        %v3479 = vld [vmem:[#allocation12 + $0x78] sm:$0xff]
        %3480 = vmatprep.subr.mxu0 0.0
        %3481 = vmatpush1.msra.mxu0 %v3370
        %3482 = vmatprep.subr.mxu0 0.0
        %3483 = vmatpush1.msra.mxu0 %v3375
        %3484 = vmatprep.subr.mxu0 0.0
        %3485 = vmatpush1.msra.mxu0 %v3380
        %3486 = vmatprep.subr.mxu0 0.0
        %3487 = vmatpush1.msra.mxu0 %v3385
        %3488 = vmatprep.subr.mxu0 0.0
        %3489 = vmatpush1.msra.mxu0 %v3390
        %3490 = vmatprep.subr.mxu0 0.0
        %3491 = vmatpush1.msra.mxu0 %v3395
        %3492 = vmatprep.subr.mxu0 0.0
        %3493 = vmatpush1.msra.mxu0 %v3400
        %3494 = vmatprep.subr.mxu0 0.0
        %3495 = vmatpush1.msra.mxu0 %v3405
        %3496 = vmatprep.subr.mxu0 0.0
        %3497 = vmatpush1.msra.mxu0 %v3410
        %3498 = vmatprep.subr.mxu0 0.0
        %3499 = vmatpush1.msra.mxu0 %v3415
        %3500 = vmatprep.subr.mxu0 0.0
        %3501 = vmatpush1.msra.mxu0 %v3420
        %3502 = vmatprep.subr.mxu0 0.0
        %3503 = vmatpush1.msra.mxu0 %v3425
        %3504 = vmatprep.subr.mxu0 0.0
        %3505 = vmatpush1.msra.mxu0 %v3430
        %3506 = vmatprep.subr.mxu0 0.0
        %3507 = vmatpush1.msra.mxu0 %v3435
        %3508 = vmatprep.subr.mxu0 0.0
        %3509 = vmatpush1.msra.mxu0 %v3440
        %3510 = vmatprep.subr.mxu0 0.0
        %3511 = vmatpush1.msra.mxu0 %v3445
        %3512 = vmatprep.subr.mxu0 0.0
        %3513 = vmatpush1.msra.mxu0 0.0
        %3514 = vmatprep.subr.mxu0 0.0
        %3515 = vmatpush1.msra.mxu0 0.0
        %3516 = vmatprep.subr.mxu0 0.0
        %3517 = vmatpush1.msra.mxu0 0.0
        %3518 = vmatprep.subr.mxu0 0.0
        %3519 = vmatpush1.msra.mxu0 0.0
        %3520 = vmatprep.subr.mxu0 0.0
        %3521 = vmatpush1.msra.mxu0 0.0
        %3522 = vmatprep.subr.mxu0 0.0
        %3523 = vmatpush1.msra.mxu0 0.0
        %3524 = vmatprep.subr.mxu0 0.0
        %3525 = vmatpush1.msra.mxu0 0.0
        %3526 = vmatprep.subr.mxu0 0.0
        %3527 = vmatpush1.msra.mxu0 0.0
        %3528 = vmatprep.subr.mxu0 0.0
        %3529 = vmatpush1.msra.mxu0 0.0
        %3530 = vmatprep.subr.mxu0 0.0
        %3531 = vmatpush1.msra.mxu0 0.0
        %3532 = vmatprep.subr.mxu0 0.0
        %3533 = vmatpush1.msra.mxu0 0.0
        %3534 = vmatprep.subr.mxu0 0.0
        %3535 = vmatpush1.msra.mxu0 0.0
        %3536 = vmatprep.subr.mxu0 0.0
        %3537 = vmatpush1.msra.mxu0 0.0
        %3538 = vmatprep.subr.mxu0 0.0
        %3539 = vmatpush1.msra.mxu0 0.0
        %3540 = vmatprep.subr.mxu0 0.0
        %3541 = vmatpush1.msra.mxu0 0.0
        %3542 = vmatprep.subr.mxu0 0.0
        %3543 = vmatpush1.msra.mxu0 0.0
        %3544 = vmatprep.mubr.f32.mxu0 0.0
        %3545 = vmatmul.mubr.f32.gmra.mrb[0].mxu0 %v3464
        %v3546 = vpop.f32.mrb[0].mxu0
        %v3547 = vadd.f32 0.0, %v3546
        %v3548 = vpop.f32.mrb[0].mxu0
        %3549 = vmatprep.mubr.f32.mxu0 0.0
        %3550 = vmatmul.mubr.f32.gmra.mrb[0].mxu0 %v3465
        %v3551 = vpop.f32.mrb[0].mxu0
        %v3552 = vadd.f32 0.0, %v3551
        %v3553 = vpop.f32.mrb[0].mxu0
        %3554 = vmatprep.mubr.f32.mxu0 0.0
        %3555 = vmatmul.mubr.f32.gmra.mrb[0].mxu0 %v3466
        %v3556 = vpop.f32.mrb[0].mxu0
        %v3557 = vadd.f32 0.0, %v3556
        %v3558 = vpop.f32.mrb[0].mxu0
        %3559 = vmatprep.mubr.f32.mxu0 0.0
        %3560 = vmatmul.mubr.f32.gmra.mrb[0].mxu0 %v3467
        %v3561 = vpop.f32.mrb[0].mxu0
        %v3562 = vadd.f32 0.0, %v3561
        %v3563 = vpop.f32.mrb[0].mxu0
        %3564 = vmatprep.mubr.f32.mxu0 0.0
        %3565 = vmatmul.mubr.f32.gmra.mrb[0].mxu0 %v3468
        %v3566 = vpop.f32.mrb[0].mxu0
        %v3567 = vadd.f32 0.0, %v3566
        %v3568 = vpop.f32.mrb[0].mxu0
        %3569 = vmatprep.mubr.f32.mxu0 0.0
        %3570 = vmatmul.mubr.f32.gmra.mrb[0].mxu0 %v3469
        %v3571 = vpop.f32.mrb[0].mxu0
        %v3572 = vadd.f32 0.0, %v3571
        %v3573 = vpop.f32.mrb[0].mxu0
        %3574 = vmatprep.mubr.f32.mxu0 0.0
        %3575 = vmatmul.mubr.f32.gmra.mrb[0].mxu0 %v3470
        %v3576 = vpop.f32.mrb[0].mxu0
        %v3577 = vadd.f32 0.0, %v3576
        %v3578 = vpop.f32.mrb[0].mxu0
        %3579 = vmatprep.mubr.f32.mxu0 0.0
        %3580 = vmatmul.mubr.f32.gmra.mrb[0].mxu0 %v3471
        %v3581 = vpop.f32.mrb[0].mxu0
        %v3582 = vadd.f32 0.0, %v3581
        %v3583 = vpop.f32.mrb[0].mxu0
        %3584 = vmatprep.mubr.f32.mxu0 0.0
        %3585 = vmatmul.mubr.f32.gmra.mrb[0].mxu0 %v3472
        %v3586 = vpop.f32.mrb[0].mxu0
        %v3587 = vadd.f32 0.0, %v3586
        %v3588 = vpop.f32.mrb[0].mxu0
        %3589 = vmatprep.mubr.f32.mxu0 0.0
        %3590 = vmatmul.mubr.f32.gmra.mrb[0].mxu0 %v3473
        %v3591 = vpop.f32.mrb[0].mxu0
        %v3592 = vadd.f32 0.0, %v3591
        %v3593 = vpop.f32.mrb[0].mxu0
        %3594 = vmatprep.mubr.f32.mxu0 0.0
        %3595 = vmatmul.mubr.f32.gmra.mrb[0].mxu0 %v3474
        %v3596 = vpop.f32.mrb[0].mxu0
        %v3597 = vadd.f32 0.0, %v3596
        %v3598 = vpop.f32.mrb[0].mxu0
        %3599 = vmatprep.mubr.f32.mxu0 0.0
        %3600 = vmatmul.mubr.f32.gmra.mrb[0].mxu0 %v3475
        %v3601 = vpop.f32.mrb[0].mxu0
        %v3602 = vadd.f32 0.0, %v3601
        %v3603 = vpop.f32.mrb[0].mxu0
        %3604 = vmatprep.mubr.f32.mxu0 0.0
        %3605 = vmatmul.mubr.f32.gmra.mrb[0].mxu0 %v3476
        %v3606 = vpop.f32.mrb[0].mxu0
        %v3607 = vadd.f32 0.0, %v3606
        %v3608 = vpop.f32.mrb[0].mxu0
        %3609 = vmatprep.mubr.f32.mxu0 0.0
        %3610 = vmatmul.mubr.f32.gmra.mrb[0].mxu0 %v3477
        %v3611 = vpop.f32.mrb[0].mxu0
        %v3612 = vadd.f32 0.0, %v3611
        %v3613 = vpop.f32.mrb[0].mxu0
        %3614 = vmatprep.mubr.f32.mxu0 0.0
        %3615 = vmatmul.mubr.f32.gmra.mrb[0].mxu0 %v3478
        %v3616 = vpop.f32.mrb[0].mxu0
        %v3617 = vadd.f32 0.0, %v3616
        %v3618 = vpop.f32.mrb[0].mxu0
        %3619 = vmatprep.mubr.f32.mxu0 0.0
        %3620 = vmatmul.mubr.f32.gmra.mrb[0].mxu0 %v3479
        %v3621 = vpop.f32.mrb[0].mxu0
        %v3622 = vadd.f32 0.0, %v3621
        %v3623 = vpop.f32.mrb[0].mxu0
        %3624 = vdwg.mxu0
        %3625 = vmatprep.subr.mxu0 0.0
        %3626 = vmatpush1.msra.mxu0 %v476
        %3627 = vmatprep.subr.mxu0 0.0
        %3628 = vmatpush1.msra.mxu0 %v477
        %3629 = vmatprep.subr.mxu0 0.0
        %3630 = vmatpush1.msra.mxu0 %v478
        %3631 = vmatprep.subr.mxu0 0.0
        %3632 = vmatpush1.msra.mxu0 %v479
        %3633 = vmatprep.subr.mxu0 0.0
        %3634 = vmatpush1.msra.mxu0 %v480
        %3635 = vmatprep.subr.mxu0 0.0
        %3636 = vmatpush1.msra.mxu0 %v481
        %3637 = vmatprep.subr.mxu0 0.0
        %3638 = vmatpush1.msra.mxu0 %v482
        %3639 = vmatprep.subr.mxu0 0.0
        %3640 = vmatpush1.msra.mxu0 %v483
        %3641 = vmatprep.subr.mxu0 0.0
        %3642 = vmatpush1.msra.mxu0 %v484
        %3643 = vmatprep.subr.mxu0 0.0
        %3644 = vmatpush1.msra.mxu0 %v485
        %3645 = vmatprep.subr.mxu0 0.0
        %3646 = vmatpush1.msra.mxu0 %v486
        %3647 = vmatprep.subr.mxu0 0.0
        %3648 = vmatpush1.msra.mxu0 %v487
        %3649 = vmatprep.subr.mxu0 0.0
        %3650 = vmatpush1.msra.mxu0 %v488
        %3651 = vmatprep.subr.mxu0 0.0
        %3652 = vmatpush1.msra.mxu0 %v489
        %3653 = vmatprep.subr.mxu0 0.0
        %3654 = vmatpush1.msra.mxu0 %v490
        %3655 = vmatprep.subr.mxu0 0.0
        %3656 = vmatpush1.msra.mxu0 %v491
        %3657 = vmatprep.subr.mxu0 0.0
        %3658 = vmatpush1.msra.mxu0 0.0
        %3659 = vmatprep.subr.mxu0 0.0
        %3660 = vmatpush1.msra.mxu0 0.0
        %3661 = vmatprep.subr.mxu0 0.0
        %3662 = vmatpush1.msra.mxu0 0.0
        %3663 = vmatprep.subr.mxu0 0.0
        %3664 = vmatpush1.msra.mxu0 0.0
        %3665 = vmatprep.subr.mxu0 0.0
        %3666 = vmatpush1.msra.mxu0 0.0
        %3667 = vmatprep.subr.mxu0 0.0
        %3668 = vmatpush1.msra.mxu0 0.0
        %3669 = vmatprep.subr.mxu0 0.0
        %3670 = vmatpush1.msra.mxu0 0.0
        %3671 = vmatprep.subr.mxu0 0.0
        %3672 = vmatpush1.msra.mxu0 0.0
        %3673 = vmatprep.subr.mxu0 0.0
        %3674 = vmatpush1.msra.mxu0 0.0
        %3675 = vmatprep.subr.mxu0 0.0
        %3676 = vmatpush1.msra.mxu0 0.0
        %3677 = vmatprep.subr.mxu0 0.0
        %3678 = vmatpush1.msra.mxu0 0.0
        %3679 = vmatprep.subr.mxu0 0.0
        %3680 = vmatpush1.msra.mxu0 0.0
        %3681 = vmatprep.subr.mxu0 0.0
        %3682 = vmatpush1.msra.mxu0 0.0
        %3683 = vmatprep.subr.mxu0 0.0
        %3684 = vmatpush1.msra.mxu0 0.0
        %3685 = vmatprep.subr.mxu0 0.0
        %3686 = vmatpush1.msra.mxu0 0.0
        %3687 = vmatprep.subr.mxu0 0.0
        %3688 = vmatpush1.msra.mxu0 0.0
        %3689 = vmatprep.mubr.f32.mxu0 0.0
        %3690 = vmatmul.mubr.f32.gmra.mrb[0].mxu0 %v3448
        %v3691 = vpop.f32.mrb[0].mxu0
        %v3692 = vadd.f32 %v3547, %v3691
        %v3693 = vpop.f32.mrb[0].mxu0
        %3694 = vmatprep.mubr.f32.mxu0 0.0
        %3695 = vmatmul.mubr.f32.gmra.mrb[0].mxu0 %v3449
        %v3696 = vpop.f32.mrb[0].mxu0
        %v3697 = vadd.f32 %v3552, %v3696
        %v3698 = vpop.f32.mrb[0].mxu0
        %3699 = vmatprep.mubr.f32.mxu0 0.0
        %3700 = vmatmul.mubr.f32.gmra.mrb[0].mxu0 %v3450
        %v3701 = vpop.f32.mrb[0].mxu0
        %v3702 = vadd.f32 %v3557, %v3701
        %v3703 = vpop.f32.mrb[0].mxu0
        %3704 = vmatprep.mubr.f32.mxu0 0.0
        %3705 = vmatmul.mubr.f32.gmra.mrb[0].mxu0 %v3451
        %v3706 = vpop.f32.mrb[0].mxu0
        %v3707 = vadd.f32 %v3562, %v3706
        %v3708 = vpop.f32.mrb[0].mxu0
        %3709 = vmatprep.mubr.f32.mxu0 0.0
        %3710 = vmatmul.mubr.f32.gmra.mrb[0].mxu0 %v3452
        %v3711 = vpop.f32.mrb[0].mxu0
        %v3712 = vadd.f32 %v3567, %v3711
        %v3713 = vpop.f32.mrb[0].mxu0
        %3714 = vmatprep.mubr.f32.mxu0 0.0
        %3715 = vmatmul.mubr.f32.gmra.mrb[0].mxu0 %v3453
        %v3716 = vpop.f32.mrb[0].mxu0
        %v3717 = vadd.f32 %v3572, %v3716
        %v3718 = vpop.f32.mrb[0].mxu0
        %3719 = vmatprep.mubr.f32.mxu0 0.0
        %3720 = vmatmul.mubr.f32.gmra.mrb[0].mxu0 %v3454
        %v3721 = vpop.f32.mrb[0].mxu0
        %v3722 = vadd.f32 %v3577, %v3721
        %v3723 = vpop.f32.mrb[0].mxu0
        %3724 = vmatprep.mubr.f32.mxu0 0.0
        %3725 = vmatmul.mubr.f32.gmra.mrb[0].mxu0 %v3455
        %v3726 = vpop.f32.mrb[0].mxu0
        %v3727 = vadd.f32 %v3582, %v3726
        %v3728 = vpop.f32.mrb[0].mxu0
        %3729 = vmatprep.mubr.f32.mxu0 0.0
        %3730 = vmatmul.mubr.f32.gmra.mrb[0].mxu0 %v3456
        %v3731 = vpop.f32.mrb[0].mxu0
        %v3732 = vadd.f32 %v3587, %v3731
        %v3733 = vpop.f32.mrb[0].mxu0
        %3734 = vmatprep.mubr.f32.mxu0 0.0
        %3735 = vmatmul.mubr.f32.gmra.mrb[0].mxu0 %v3457
        %v3736 = vpop.f32.mrb[0].mxu0
        %v3737 = vadd.f32 %v3592, %v3736
        %v3738 = vpop.f32.mrb[0].mxu0
        %3739 = vmatprep.mubr.f32.mxu0 0.0
        %3740 = vmatmul.mubr.f32.gmra.mrb[0].mxu0 %v3458
        %v3741 = vpop.f32.mrb[0].mxu0
        %v3742 = vadd.f32 %v3597, %v3741
        %v3743 = vpop.f32.mrb[0].mxu0
        %3744 = vmatprep.mubr.f32.mxu0 0.0
        %3745 = vmatmul.mubr.f32.gmra.mrb[0].mxu0 %v3459
        %v3746 = vpop.f32.mrb[0].mxu0
        %v3747 = vadd.f32 %v3602, %v3746
        %v3748 = vpop.f32.mrb[0].mxu0
        %3749 = vmatprep.mubr.f32.mxu0 0.0
        %3750 = vmatmul.mubr.f32.gmra.mrb[0].mxu0 %v3460
        %v3751 = vpop.f32.mrb[0].mxu0
        %v3752 = vadd.f32 %v3607, %v3751
        %v3753 = vpop.f32.mrb[0].mxu0
        %3754 = vmatprep.mubr.f32.mxu0 0.0
        %3755 = vmatmul.mubr.f32.gmra.mrb[0].mxu0 %v3461
        %v3756 = vpop.f32.mrb[0].mxu0
        %v3757 = vadd.f32 %v3612, %v3756
        %v3758 = vpop.f32.mrb[0].mxu0
        %3759 = vmatprep.mubr.f32.mxu0 0.0
        %3760 = vmatmul.mubr.f32.gmra.mrb[0].mxu0 %v3462
        %v3761 = vpop.f32.mrb[0].mxu0
        %v3762 = vadd.f32 %v3617, %v3761
        %v3763 = vpop.f32.mrb[0].mxu0
        %3764 = vmatprep.mubr.f32.mxu0 0.0
        %3765 = vmatmul.mubr.f32.gmra.mrb[0].mxu0 %v3463
        %v3766 = vpop.f32.mrb[0].mxu0
        %v3767 = vadd.f32 %v3622, %v3766
        %v3768 = vpop.f32.mrb[0].mxu0
        %3769 = vdwg.mxu0
        %v3770 = vadd.f32 %v3692, %v476
        %v3771 = vadd.f32 %v3697, %v477
        %v3772 = vadd.f32 %v3702, %v478
        %v3773 = vadd.f32 %v3707, %v479
        %v3774 = vadd.f32 %v3712, %v480
        %v3775 = vadd.f32 %v3717, %v481
        %v3776 = vadd.f32 %v3722, %v482
        %v3777 = vadd.f32 %v3727, %v483
        %v3778 = vadd.f32 %v3732, %v484
        %v3779 = vadd.f32 %v3737, %v485
        %v3780 = vadd.f32 %v3742, %v486
        %v3781 = vadd.f32 %v3747, %v487
        %v3782 = vadd.f32 %v3752, %v488
        %v3783 = vadd.f32 %v3757, %v489
        %v3784 = vadd.f32 %v3762, %v490
        %v3785 = vadd.f32 %v3767, %v491
        %3786 = vst [vmem:[%s462] sm:$0xff] %v3770
        %3787 = vst [vmem:[%s462 + $0x8] sm:$0xff] %v3771
        %3788 = vst [vmem:[%s462 + $0x10] sm:$0xff] %v3772
        %3789 = vst [vmem:[%s462 + $0x18] sm:$0xff] %v3773
        %3790 = vst [vmem:[%s462 + $0x20] sm:$0xff] %v3774
        %3791 = vst [vmem:[%s462 + $0x28] sm:$0xff] %v3775
        %3792 = vst [vmem:[%s462 + $0x30] sm:$0xff] %v3776
        %3793 = vst [vmem:[%s462 + $0x38] sm:$0xff] %v3777
        %3794 = vst [vmem:[%s462 + $0x40] sm:$0xff] %v3778
        %3795 = vst [vmem:[%s462 + $0x48] sm:$0xff] %v3779
        %3796 = vst [vmem:[%s462 + $0x50] sm:$0xff] %v3780
        %3797 = vst [vmem:[%s462 + $0x58] sm:$0xff] %v3781
        %3798 = vst [vmem:[%s462 + $0x60] sm:$0xff] %v3782
        %3799 = vst [vmem:[%s462 + $0x68] sm:$0xff] %v3783
        %3800 = vst [vmem:[%s462 + $0x70] sm:$0xff] %v3784
        %3801 = vst [vmem:[%s462 + $0x78] sm:$0xff] %v3785
        %s3802 = sand.u32 %s271, 1
        %s3803 = scalar_lea.sflag [#allocation6], %s3802
        %s3804 = sand.u32 %s271, 1
        %s3805 = smul.addr %s3804, 128
        %s3806 = scalar_lea.vmem [#allocation13], %s3805
        // Predicated region
        $region85: #{attentional_gnn_forward.1} parent=59 // pred_check
          %p3807 = pneg %p281
        $region86: #{attentional_gnn_forward.1} parent=59 // pred_check_branch
          %3809 = sbr.rel (%p3807) target = $region88
        $region87: #{attentional_gnn_forward.1} parent=59 // pred_region
          %s3811 = ssub.s32 2048, 2048
          %3812 = vsyncadd %s3803, %s3811
          %s3813 = smul.addr %s31, 16
          %s3814 = sadd.s32 %s32, %s3813
          %s3815 = smul.addr %s3814, 128
          %s3816 = scalar_lea.hbm %s10, %s3815
          %s3817 = sshll.u32 %s3806, 4
          %s3818 = int_to_ptr.vmem [resolvable:$true] %s3817
          %3823 = dma.vmem_to_hbm [thread:$0]  %s3818, 2048, %s3816, %s3803, 128, 128, 8
        $region88: #{attentional_gnn_forward.1} parent=59 // pred_fallthru
          _
      $region60: #{attentional_gnn_forward.1} parent=5 // pred_fallthru
        _
      %p3824 = scmp.le.s32.totalorder 2, %s22
      // Predicated region
      $region89: #{attentional_gnn_forward.1} parent=5 // pred_check
        %p3825 = pneg %p3824
      $region90: #{attentional_gnn_forward.1} parent=5 // pred_check_branch
        %3827 = sbr.rel (%p3825) target = $region92
      $region91: #{attentional_gnn_forward.1} parent=5 // pred_region
        %s3828 = ssub.s32 %s22, 2
        // Predicated region
        $region93: #{attentional_gnn_forward.1} parent=91 // pred_check
          %p3829 = pneg %p287
        $region94: #{attentional_gnn_forward.1} parent=91 // pred_check_branch
          %3831 = sbr.rel (%p3829) target = $region96
        $region95: #{attentional_gnn_forward.1} parent=91 // pred_region
          %s3832 = sand.u32 %s272, 1
          %s3833 = scalar_lea.sflag [#allocation6], %s3832
          %s3834 = sand.u32 %s272, 1
          %s3835 = smul.addr %s3834, 128
          %s3836 = scalar_lea.vmem [#allocation13], %s3835
          %3837 = dma.done %s3833, 2048
        $region96: #{attentional_gnn_forward.1} parent=91 // pred_fallthru
          _
      $region92: #{attentional_gnn_forward.1} parent=5 // pred_fallthru
        _
    $region6: #{attentional_gnn_forward.1} parent=1 // loop_footer
      %s26 = sadd.s32 1, %s22
    $region7: #{attentional_gnn_forward.1} parent=1 // loop_footer_branch
      %21 = sbr.rel target = $region3
    $region8: #{attentional_gnn_forward.1} parent=1 // loop_exit
      _
    %3838 = vsyncpa [#allocation5], 1
    %s3839 = scalar_lea.sflag [#allocation5], 1
    %3840 = vsyncpa %s3839, 1
    %3841 = vsyncpa [#allocation8], 1
    %3842 = vsyncpa [#allocation11], 1
    %3843 = vsyncpa [#allocation6], 1
    %s3844 = scalar_lea.sflag [#allocation6], 1
    %3845 = vsyncpa %s3844, 1

</llo_original>
